<compile_context>
chip_gen: v5e
topology: v5e:2x2
jax: 0.10.0
libtpu: 0.0.40
codegen_flags: <defaults>
</compile_context>

<pallas_src>
import numpy as np
import jax
import jax.numpy as jnp
from jax.experimental import pallas as pl
from jax.experimental.pallas import tpu as pltpu


ALL_PADS = [0, 0, 1, 3, 7]
CONSTANT_FEATURES = 16


# ----------------------------------------------------------------------------
# transposed-conv phase decomposition (static tap schedule)
# ----------------------------------------------------------------------------
def _phase_offsets(k, pad, phase):
    """Shifts d and kernel taps t such that out[2m+phase] += y[m-d] * W[t]."""
    tau = phase + pad
    d_min = -(tau // 2)
    d_max = (k - 1 - tau) // 2
    ds = list(range(d_min, d_max + 1))
    taps = [2 * d + tau for d in ds]
    return ds, taps


def _tap_schedule(k, pad):
    """Canonical (phase_h, phase_w, dh, dw, th, tw) order, shared by the
    weight packing (wrapper) and the in-kernel accumulation loop."""
    pd = [_phase_offsets(k, pad, ph) for ph in (0, 1)]
    sched = []
    for ph in (0, 1):
        for pw in (0, 1):
            for dh, th in zip(*pd[ph]):
                for dw, tw in zip(*pd[pw]):
                    sched.append((ph, pw, dh, dw, th, tw))
    return sched


# ----------------------------------------------------------------------------
# fused stage kernel: 1x1 conv + ReLU + phase-decomposed ConvTranspose2d
# ----------------------------------------------------------------------------
def _make_stage_kernel(w, hw, cout, sched, dws_u, lpad, rpad,
                       compute_dtype, out_dtype):
    dw_idx = {d: i for i, d in enumerate(dws_u)}

    def kernel(x_ref, wpw_ref, bpw_ref, wtc_ref, btc_ref, mask_ref, o_ref):
        # --- 1x1 conv + ReLU (lane-dense matmul over all pixels) ---
        x = x_ref[0]                                            # (Cin, HW)
        y = jnp.dot(wpw_ref[...], x, preferred_element_type=jnp.float32)
        y = jnp.maximum(y + bpw_ref[...], 0.0).astype(compute_dtype)

        # --- zero-padded flat copy of y for the tap shifts (VMEM only) ---
        parts = []
        if lpad > 0:
            parts.append(jnp.zeros((cout, lpad), compute_dtype))
        parts.append(y)
        if rpad > 0:
            parts.append(jnp.zeros((cout, rpad), compute_dtype))
        yp = jnp.concatenate(parts, axis=1) if len(parts) > 1 else y

        masks = mask_ref[...]                                   # (ndw, HW)
        btc = btc_ref[...]                                      # (Cout, 1) f32

        # --- accumulate the (k/2)^2 taps of each of the 4 output phases ---
        accs = {(ph, pw): jnp.zeros((cout, hw), jnp.float32)
                for ph in (0, 1) for pw in (0, 1)}
        for t, (ph, pw, dh, dw, _, _) in enumerate(sched):
            start = lpad - (dh * w + dw)                        # static int
            piece = yp[:, start:start + hw]                     # (Cout, HW)
            if dw != 0:                                         # mask row wrap
                i = dw_idx[dw]
                piece = piece * masks[i:i + 1, :]
            wt = wtc_ref[t]                                     # (Cout, Cout)
            if cout == 1:
                accs[(ph, pw)] += (wt * piece).astype(jnp.float32)
            else:
                accs[(ph, pw)] += jnp.dot(wt, piece,
                                          preferred_element_type=jnp.float32)

        # --- bias + lane-dense per-phase stores (no in-kernel concat) ---
        for ph in (0, 1):
            for pw in (0, 1):
                p = 2 * ph + pw
                res = (accs[(ph, pw)] + btc).astype(out_dtype)
                o_ref[0, p * cout:(p + 1) * cout, :] = res

    return kernel


def _fused_stage(x, pw_w, pw_b, tc_w, tc_b, k, pad, compute_dtype, out_dtype):
    """One stage: relu(1x1 conv) followed by ConvTranspose2d(k, s=2, pad).
    Input  x: (N, Cin, H, W); output: (N, 4*Cout, H*W) with the 4 stride-2
    output phases stored as separate channel slabs (interleaved by the caller)."""
    n, cin, h, w = x.shape
    hw = h * w
    cout = pw_w.shape[0]
    x3 = x.reshape(n, cin, hw)                                  # free reshape

    sched = _tap_schedule(k, pad)
    shifts = [dh * w + dw for (_, _, dh, dw, _, _) in sched]
    lpad = max(max(shifts), 0)
    rpad = max(-min(shifts), 0)
    dws_u = sorted({dw for (_, _, _, dw, _, _) in sched})

    # --- tiny parameter packing ---
    wpw = pw_w[:, :, 0, 0].astype(x3.dtype)                     # (Cout, Cin)
    bpw = pw_b.reshape(cout, 1).astype(jnp.float32)
    wtc = jnp.stack([tc_w[:, :, th, tw].T
                     for (_, _, _, _, th, tw) in sched],
                    axis=0).astype(compute_dtype)               # (T, Cout, Cout)
    btc = tc_b.reshape(cout, 1).astype(jnp.float32)

    cols = np.arange(hw) % w
    masks = jnp.asarray(
        np.stack([((cols - d >= 0) & (cols - d < w)) for d in dws_u])
        .astype(np.float32)).astype(compute_dtype)              # (ndw, HW)

    kernel = _make_stage_kernel(w, hw, cout, sched, dws_u, lpad, rpad,
                                compute_dtype, out_dtype)
    return pl.pallas_call(
        kernel,
        out_shape=jax.ShapeDtypeStruct((n, 4 * cout, hw), out_dtype),
        grid=(n,),
        in_specs=[
            pl.BlockSpec((1, cin, hw), lambda i: (i, 0, 0)),
            pl.BlockSpec((cout, cin), lambda i: (0, 0)),
            pl.BlockSpec((cout, 1), lambda i: (0, 0)),
            pl.BlockSpec(wtc.shape, lambda i: (0, 0, 0)),
            pl.BlockSpec((cout, 1), lambda i: (0, 0)),
            pl.BlockSpec(masks.shape, lambda i: (0, 0)),
        ],
        out_specs=pl.BlockSpec((1, 4 * cout, hw), lambda i: (i, 0, 0)),
        compiler_params=pltpu.CompilerParams(
            dimension_semantics=("parallel",)),
    )(x3, wpw, bpw, wtc, btc, masks)


# ----------------------------------------------------------------------------
# bilinear resize (PyTorch align_corners=False) as separable matmuls
# ----------------------------------------------------------------------------
def _interp_matrix(out_size, in_size):
    scale = in_size / out_size
    d = jnp.arange(out_size, dtype=jnp.float32)
    src = jnp.maximum(scale * (d + 0.5) - 0.5, 0.0)
    i0 = jnp.clip(jnp.floor(src).astype(jnp.int32), 0, in_size - 1)
    i1 = jnp.minimum(i0 + 1, in_size - 1)
    w1 = src - i0.astype(jnp.float32)
    w0 = 1.0 - w1
    return (jax.nn.one_hot(i0, in_size, dtype=jnp.float32) * w0[:, None]
            + jax.nn.one_hot(i1, in_size, dtype=jnp.float32) * w1[:, None])


def _resize_kernel(img_ref, wh_ref, wwt_ref, o_ref):
    t = jnp.dot(wh_ref[...], img_ref[0], preferred_element_type=jnp.float32)
    o_ref[0] = jnp.dot(t, wwt_ref[...], preferred_element_type=jnp.float32)


def bilinear_resize_nchw(x, out_hw):
    n, c, h, w = x.shape
    oh, ow = out_hw
    wh = _interp_matrix(oh, h)       # (OH, H)
    wwt = _interp_matrix(ow, w).T    # (W, OW)
    nc = n * c
    img = x.reshape(nc, h, w).astype(jnp.float32)
    out = pl.pallas_call(
        _resize_kernel,
        out_shape=jax.ShapeDtypeStruct((nc, oh, ow), jnp.float32),
        grid=(nc,),
        in_specs=[
            pl.BlockSpec((1, h, w), lambda i: (i, 0, 0)),
            pl.BlockSpec((oh, h), lambda i: (0, 0)),
            pl.BlockSpec((w, ow), lambda i: (0, 0)),
        ],
        out_specs=pl.BlockSpec((1, oh, ow), lambda i: (i, 0, 0)),
        compiler_params=pltpu.CompilerParams(
            dimension_semantics=("parallel",)),
    )(img, wh, wwt)
    return out.reshape(n, c, oh, ow)


# ----------------------------------------------------------------------------
# UpConvBlock forward
# ----------------------------------------------------------------------------
def init_params(in_features, up_scale, key):
    """Deterministic synthetic parameters mirroring the PyTorch layer shapes."""
    params = []
    k = 2 ** up_scale
    cin = in_features
    for i in range(up_scale):
        cout = 1 if i == up_scale - 1 else CONSTANT_FEATURES
        key, k1, k2, k3, k4 = jax.random.split(key, 5)
        pw_w = 0.2 * jax.random.normal(k1, (cout, cin, 1, 1), jnp.float32)   # Conv2d (O,I,1,1)
        pw_b = 0.1 * jax.random.normal(k2, (cout,), jnp.float32)
        tc_w = 0.2 * jax.random.normal(k3, (cout, cout, k, k), jnp.float32)  # ConvT (I,O,K,K)
        tc_b = 0.1 * jax.random.normal(k4, (cout,), jnp.float32)
        params.append((pw_w, pw_b, tc_w, tc_b))
        cin = cout
    return params


def upconv_block_forward(x_nchw, params, up_scale, out_shape):
    k = 2 ** up_scale
    pad = ALL_PADS[up_scale]
    assert pad == k // 2 - 1, "phase decomposition assumes the DexiNed padding"

    x = x_nchw                                   # NCHW kept end to end
    n_stages = len(params)
    for idx, (pw_w, pw_b, tc_w, tc_b) in enumerate(params):
        n, cin, h, w = x.shape
        cout = pw_w.shape[0]
        last = idx == n_stages - 1
        compute_dtype = jnp.bfloat16 if cout >= 8 else jnp.float32
        out_dtype = jnp.float32 if (last or cout < 8) else jnp.bfloat16

        out = _fused_stage(x, pw_w, pw_b, tc_w, tc_b, k, pad,
                           compute_dtype, out_dtype)            # (N, 4*Cout, H*W)

        # depth-to-space: phase slabs -> standard (N, Cout, 2H, 2W) layout
        x = (out.reshape(n, 2, 2, cout, h, w)
                .transpose(0, 3, 4, 1, 5, 2)
                .reshape(n, cout, 2 * h, 2 * w))

    out = x.astype(jnp.float32)
    if out.shape[-2:] != tuple(out_shape):
        out = bilinear_resize_nchw(out, tuple(out_shape))
    return out


# ----------------------------------------------------------------------------
# Pure-JAX reference (f32, HIGHEST precision) for numerical verification
# ----------------------------------------------------------------------------
def _ref_bilinear_nchw(x, out_hw):
    n, c, h, w = x.shape
    oh, ow = out_hw

    def src(o_size, i_size):
        s = i_size / o_size
        sc = jnp.maximum(s * (jnp.arange(o_size, dtype=jnp.float32) + 0.5) - 0.5, 0.0)
        i0 = jnp.clip(jnp.floor(sc).astype(jnp.int32), 0, i_size - 1)
        i1 = jnp.minimum(i0 + 1, i_size - 1)
        return i0, i1, sc - i0.astype(jnp.float32)

    h0, h1, lh = src(oh, h)
    w0, w1, lw = src(ow, w)
    top = (x[:, :, h0, :] * (1.0 - lh)[None, None, :, None]
           + x[:, :, h1, :] * lh[None, None, :, None])
    return top[:, :, :, w0] * (1.0 - lw) + top[:, :, :, w1] * lw


def reference_forward(x_nchw, params, up_scale, out_shape):
    k = 2 ** up_scale
    pad = ALL_PADS[up_scale]
    hi = jax.lax.Precision.HIGHEST
    x = x_nchw
    for (pw_w, pw_b, tc_w, tc_b) in params:
        y = jax.lax.conv_general_dilated(
            x, pw_w, (1, 1), 'VALID',
            dimension_numbers=('NCHW', 'OIHW', 'NCHW'), precision=hi)
        y = jnp.maximum(y + pw_b[None, :, None, None], 0.0)
        wf = jnp.transpose(tc_w[:, :, ::-1, ::-1], (1, 0, 2, 3))  # -> OIHW
        z = jax.lax.conv_general_dilated(
            y, wf, (1, 1), [(k - 1 - pad, k - 1 - pad)] * 2,
            lhs_dilation=(2, 2),
            dimension_numbers=('NCHW', 'OIHW', 'NCHW'), precision=hi)
        x = z + tc_b[None, :, None, None]
    if x.shape[-2:] != tuple(out_shape):
        x = _ref_bilinear_nchw(x, tuple(out_shape))
    return x


# ----------------------------------------------------------------------------
if __name__ == "__main__":
    key = jax.random.PRNGKey(0)

    configs = [
        # (N, Cin, H, W, up_scale, out_shape)
        (2, 4, 16, 16, 2, (70, 66)),   # k=4 stages, conv out 64x64, resize runs
        (2, 4, 8, 8, 3, (64, 64)),     # k=8 stages, conv out 64x64, resize skipped
    ]
    for (n, cin, h, w, up_scale, out_shape) in configs:
        key, xk, pk = jax.random.split(key, 3)
        x = jax.random.normal(xk, (n, cin, h, w), jnp.float32)
        params = init_params(cin, up_scale, pk)

        fwd = jax.jit(upconv_block_forward, static_argnums=(2, 3))
        out = jax.block_until_ready(fwd(x, params, up_scale, out_shape))
        ref = reference_forward(x, params, up_scale, out_shape)

        assert out.shape == (n, 1, out_shape[0], out_shape[1]), out.shape
        err = float(jnp.max(jnp.abs(out - ref)))
        scale = float(jnp.max(jnp.abs(ref))) + 1e-6
        assert err <= 3e-2 * max(scale, 1.0), (
            f"up_scale={up_scale}: max abs err {err} (scale {scale})")

    print("KERNEL_OK")
</pallas_src>

<mosaic_0001>
module attributes {stable_mosaic.version = 11 : i64} {
  func.func @kernel(%arg0: i32, %arg1: memref<1x4x256xf32, #tpu.memory_space<vmem>>, %arg2: memref<16x4xf32, #tpu.memory_space<vmem>>, %arg3: memref<16x1xf32, #tpu.memory_space<vmem>>, %arg4: memref<16x16x16xbf16, #tpu.memory_space<vmem>>, %arg5: memref<16x1xf32, #tpu.memory_space<vmem>>, %arg6: memref<3x256xbf16, #tpu.memory_space<vmem>>, %arg7: memref<1x64x256xbf16, #tpu.memory_space<vmem>>) attributes {dimension_semantics = [#tpu.dimension_semantics<parallel>], iteration_bounds = array<i64: 2>, scalar_prefetch = 0 : i64, scratch_operands = 0 : i64, tpu.core_type = #tpu.core_type<tc>, window_params = [{transform_indices = @transform_0, window_bounds = array<i64: 1, 4, 256>}, {pipeline_mode = #tpu.pipeline_mode<synchronous>, transform_indices = @transform_1, window_bounds = array<i64: 16, 4>}, {pipeline_mode = #tpu.pipeline_mode<synchronous>, transform_indices = @transform_2, window_bounds = array<i64: 16, 1>}, {pipeline_mode = #tpu.pipeline_mode<synchronous>, transform_indices = @transform_3, window_bounds = array<i64: 16, 16, 16>}, {pipeline_mode = #tpu.pipeline_mode<synchronous>, transform_indices = @transform_4, window_bounds = array<i64: 16, 1>}, {pipeline_mode = #tpu.pipeline_mode<synchronous>, transform_indices = @transform_5, window_bounds = array<i64: 3, 256>}, {transform_indices = @transform_6, window_bounds = array<i64: 1, 64, 256>}]} {
    %c0 = arith.constant 0 : index
    %c0_0 = arith.constant 0 : index
    %c0_1 = arith.constant 0 : index
    %0 = vector.load %arg1[%c0, %c0_0, %c0_1] : memref<1x4x256xf32, #tpu.memory_space<vmem>>, vector<1x4x256xf32>
    %1 = vector.shape_cast %0 : vector<1x4x256xf32> to vector<4x256xf32>
    %c0_2 = arith.constant 0 : index
    %c0_3 = arith.constant 0 : index
    %2 = vector.load %arg2[%c0_2, %c0_3] : memref<16x4xf32, #tpu.memory_space<vmem>>, vector<16x4xf32>
    %cst = arith.constant dense<0.000000e+00> : vector<16x256xf32>
    %3 = tpu.matmul %2, %1, %cst {dimension_numbers = #tpu.dot_dimension_numbers<[1], [0], [0], [1], [0, 0, 1, 1], [], []>} : vector<16x4xf32>, vector<4x256xf32>, vector<16x256xf32> -> vector<16x256xf32>
    %c0_4 = arith.constant 0 : index
    %c0_5 = arith.constant 0 : index
    %4 = vector.load %arg3[%c0_4, %c0_5] : memref<16x1xf32, #tpu.memory_space<vmem>>, vector<16x1xf32>
    %5 = vector.broadcast %4 : vector<16x1xf32> to vector<16x256xf32>
    %6 = arith.addf %3, %5 : vector<16x256xf32>
    %cst_6 = arith.constant 0.000000e+00 : f32
    %7 = vector.broadcast %cst_6 : f32 to vector<16x256xf32>
    %8 = arith.maximumf %6, %7 : vector<16x256xf32>
    %9 = arith.truncf %8 : vector<16x256xf32> to vector<16x256xbf16>
    %cst_7 = arith.constant 0.000000e+00 : bf16
    %10 = vector.broadcast %cst_7 : bf16 to vector<16x17xbf16>
    %cst_8 = arith.constant 0.000000e+00 : bf16
    %11 = vector.broadcast %cst_8 : bf16 to vector<16x17xbf16>
    %12 = tpu.concatenate %10, %9, %11 in 1 : vector<16x17xbf16>, vector<16x256xbf16>, vector<16x17xbf16> -> vector<16x290xbf16>
    %c0_9 = arith.constant 0 : index
    %c0_10 = arith.constant 0 : index
    %13 = vector.load %arg6[%c0_9, %c0_10] : memref<3x256xbf16, #tpu.memory_space<vmem>>, vector<3x256xbf16>
    %c0_11 = arith.constant 0 : index
    %c0_12 = arith.constant 0 : index
    %14 = vector.load %arg5[%c0_11, %c0_12] : memref<16x1xf32, #tpu.memory_space<vmem>>, vector<16x1xf32>
    %cst_13 = arith.constant 0.000000e+00 : f32
    %15 = vector.broadcast %cst_13 : f32 to vector<16x256xf32>
    %cst_14 = arith.constant 0.000000e+00 : f32
    %16 = vector.broadcast %cst_14 : f32 to vector<16x256xf32>
    %cst_15 = arith.constant 0.000000e+00 : f32
    %17 = vector.broadcast %cst_15 : f32 to vector<16x256xf32>
    %cst_16 = arith.constant 0.000000e+00 : f32
    %18 = vector.broadcast %cst_16 : f32 to vector<16x256xf32>
    %19 = vector.extract_strided_slice %12 {offsets = [0, 17], sizes = [16, 256], strides = [1, 1]} : vector<16x290xbf16> to vector<16x256xbf16>
    %c0_17 = arith.constant 0 : index
    %c0_18 = arith.constant 0 : index
    %c0_19 = arith.constant 0 : index
    %20 = vector.load %arg4[%c0_17, %c0_18, %c0_19] : memref<16x16x16xbf16, #tpu.memory_space<vmem>>, vector<1x16x16xbf16>
    %21 = vector.shape_cast %20 : vector<1x16x16xbf16> to vector<16x16xbf16>
    %cst_20 = arith.constant dense<0.000000e+00> : vector<16x256xf32>
    %22 = tpu.matmul %21, %19, %cst_20 {dimension_numbers = #tpu.dot_dimension_numbers<[1], [0], [0], [1], [0, 0, 1, 1], [], []>} : vector<16x16xbf16>, vector<16x256xbf16>, vector<16x256xf32> -> vector<16x256xf32>
    %23 = arith.addf %15, %22 : vector<16x256xf32>
    %24 = vector.extract_strided_slice %12 {offsets = [0, 16], sizes = [16, 256], strides = [1, 1]} : vector<16x290xbf16> to vector<16x256xbf16>
    %25 = vector.extract_strided_slice %13 {offsets = [2, 0], sizes = [1, 256], strides = [1, 1]} : vector<3x256xbf16> to vector<1x256xbf16>
    %26 = vector.broadcast %25 : vector<1x256xbf16> to vector<16x256xbf16>
    %27 = arith.mulf %24, %26 : vector<16x256xbf16>
    %c1 = arith.constant 1 : index
    %c0_21 = arith.constant 0 : index
    %c0_22 = arith.constant 0 : index
    %28 = vector.load %arg4[%c1, %c0_21, %c0_22] : memref<16x16x16xbf16, #tpu.memory_space<vmem>>, vector<1x16x16xbf16>
    %29 = vector.shape_cast %28 : vector<1x16x16xbf16> to vector<16x16xbf16>
    %cst_23 = arith.constant dense<0.000000e+00> : vector<16x256xf32>
    %30 = tpu.matmul %29, %27, %cst_23 {dimension_numbers = #tpu.dot_dimension_numbers<[1], [0], [0], [1], [0, 0, 1, 1], [], []>} : vector<16x16xbf16>, vector<16x256xbf16>, vector<16x256xf32> -> vector<16x256xf32>
    %31 = arith.addf %23, %30 : vector<16x256xf32>
    %32 = vector.extract_strided_slice %12 {offsets = [0, 1], sizes = [16, 256], strides = [1, 1]} : vector<16x290xbf16> to vector<16x256xbf16>
    %c2 = arith.constant 2 : index
    %c0_24 = arith.constant 0 : index
    %c0_25 = arith.constant 0 : index
    %33 = vector.load %arg4[%c2, %c0_24, %c0_25] : memref<16x16x16xbf16, #tpu.memory_space<vmem>>, vector<1x16x16xbf16>
    %34 = vector.shape_cast %33 : vector<1x16x16xbf16> to vector<16x16xbf16>
    %cst_26 = arith.constant dense<0.000000e+00> : vector<16x256xf32>
    %35 = tpu.matmul %34, %32, %cst_26 {dimension_numbers = #tpu.dot_dimension_numbers<[1], [0], [0], [1], [0, 0, 1, 1], [], []>} : vector<16x16xbf16>, vector<16x256xbf16>, vector<16x256xf32> -> vector<16x256xf32>
    %36 = arith.addf %31, %35 : vector<16x256xf32>
    %37 = vector.extract_strided_slice %12 {offsets = [0, 0], sizes = [16, 256], strides = [1, 1]} : vector<16x290xbf16> to vector<16x256xbf16>
    %38 = vector.extract_strided_slice %13 {offsets = [2, 0], sizes = [1, 256], strides = [1, 1]} : vector<3x256xbf16> to vector<1x256xbf16>
    %39 = vector.broadcast %38 : vector<1x256xbf16> to vector<16x256xbf16>
    %40 = arith.mulf %37, %39 : vector<16x256xbf16>
    %c3 = arith.constant 3 : index
    %c0_27 = arith.constant 0 : index
    %c0_28 = arith.constant 0 : index
    %41 = vector.load %arg4[%c3, %c0_27, %c0_28] : memref<16x16x16xbf16, #tpu.memory_space<vmem>>, vector<1x16x16xbf16>
    %42 = vector.shape_cast %41 : vector<1x16x16xbf16> to vector<16x16xbf16>
    %cst_29 = arith.constant dense<0.000000e+00> : vector<16x256xf32>
    %43 = tpu.matmul %42, %40, %cst_29 {dimension_numbers = #tpu.dot_dimension_numbers<[1], [0], [0], [1], [0, 0, 1, 1], [], []>} : vector<16x16xbf16>, vector<16x256xbf16>, vector<16x256xf32> -> vector<16x256xf32>
    %44 = arith.addf %36, %43 : vector<16x256xf32>
    %45 = vector.extract_strided_slice %12 {offsets = [0, 18], sizes = [16, 256], strides = [1, 1]} : vector<16x290xbf16> to vector<16x256xbf16>
    %46 = vector.extract_strided_slice %13 {offsets = [0, 0], sizes = [1, 256], strides = [1, 1]} : vector<3x256xbf16> to vector<1x256xbf16>
    %47 = vector.broadcast %46 : vector<1x256xbf16> to vector<16x256xbf16>
    %48 = arith.mulf %45, %47 : vector<16x256xbf16>
    %c4 = arith.constant 4 : index
    %c0_30 = arith.constant 0 : index
    %c0_31 = arith.constant 0 : index
    %49 = vector.load %arg4[%c4, %c0_30, %c0_31] : memref<16x16x16xbf16, #tpu.memory_space<vmem>>, vector<1x16x16xbf16>
    %50 = vector.shape_cast %49 : vector<1x16x16xbf16> to vector<16x16xbf16>
    %cst_32 = arith.constant dense<0.000000e+00> : vector<16x256xf32>
    %51 = tpu.matmul %50, %48, %cst_32 {dimension_numbers = #tpu.dot_dimension_numbers<[1], [0], [0], [1], [0, 0, 1, 1], [], []>} : vector<16x16xbf16>, vector<16x256xbf16>, vector<16x256xf32> -> vector<16x256xf32>
    %52 = arith.addf %16, %51 : vector<16x256xf32>
    %53 = vector.extract_strided_slice %12 {offsets = [0, 17], sizes = [16, 256], strides = [1, 1]} : vector<16x290xbf16> to vector<16x256xbf16>
    %c5 = arith.constant 5 : index
    %c0_33 = arith.constant 0 : index
    %c0_34 = arith.constant 0 : index
    %54 = vector.load %arg4[%c5, %c0_33, %c0_34] : memref<16x16x16xbf16, #tpu.memory_space<vmem>>, vector<1x16x16xbf16>
    %55 = vector.shape_cast %54 : vector<1x16x16xbf16> to vector<16x16xbf16>
    %cst_35 = arith.constant dense<0.000000e+00> : vector<16x256xf32>
    %56 = tpu.matmul %55, %53, %cst_35 {dimension_numbers = #tpu.dot_dimension_numbers<[1], [0], [0], [1], [0, 0, 1, 1], [], []>} : vector<16x16xbf16>, vector<16x256xbf16>, vector<16x256xf32> -> vector<16x256xf32>
    %57 = arith.addf %52, %56 : vector<16x256xf32>
    %58 = vector.extract_strided_slice %12 {offsets = [0, 2], sizes = [16, 256], strides = [1, 1]} : vector<16x290xbf16> to vector<16x256xbf16>
    %59 = vector.extract_strided_slice %13 {offsets = [0, 0], sizes = [1, 256], strides = [1, 1]} : vector<3x256xbf16> to vector<1x256xbf16>
    %60 = vector.broadcast %59 : vector<1x256xbf16> to vector<16x256xbf16>
    %61 = arith.mulf %58, %60 : vector<16x256xbf16>
    %c6 = arith.constant 6 : index
    %c0_36 = arith.constant 0 : index
    %c0_37 = arith.constant 0 : index
    %62 = vector.load %arg4[%c6, %c0_36, %c0_37] : memref<16x16x16xbf16, #tpu.memory_space<vmem>>, vector<1x16x16xbf16>
    %63 = vector.shape_cast %62 : vector<1x16x16xbf16> to vector<16x16xbf16>
    %cst_38 = arith.constant dense<0.000000e+00> : vector<16x256xf32>
    %64 = tpu.matmul %63, %61, %cst_38 {dimension_numbers = #tpu.dot_dimension_numbers<[1], [0], [0], [1], [0, 0, 1, 1], [], []>} : vector<16x16xbf16>, vector<16x256xbf16>, vector<16x256xf32> -> vector<16x256xf32>
    %65 = arith.addf %57, %64 : vector<16x256xf32>
    %66 = vector.extract_strided_slice %12 {offsets = [0, 1], sizes = [16, 256], strides = [1, 1]} : vector<16x290xbf16> to vector<16x256xbf16>
    %c7 = arith.constant 7 : index
    %c0_39 = arith.constant 0 : index
    %c0_40 = arith.constant 0 : index
    %67 = vector.load %arg4[%c7, %c0_39, %c0_40] : memref<16x16x16xbf16, #tpu.memory_space<vmem>>, vector<1x16x16xbf16>
    %68 = vector.shape_cast %67 : vector<1x16x16xbf16> to vector<16x16xbf16>
    %cst_41 = arith.constant dense<0.000000e+00> : vector<16x256xf32>
    %69 = tpu.matmul %68, %66, %cst_41 {dimension_numbers = #tpu.dot_dimension_numbers<[1], [0], [0], [1], [0, 0, 1, 1], [], []>} : vector<16x16xbf16>, vector<16x256xbf16>, vector<16x256xf32> -> vector<16x256xf32>
    %70 = arith.addf %65, %69 : vector<16x256xf32>
    %71 = vector.extract_strided_slice %12 {offsets = [0, 33], sizes = [16, 256], strides = [1, 1]} : vector<16x290xbf16> to vector<16x256xbf16>
    %c8 = arith.constant 8 : index
    %c0_42 = arith.constant 0 : index
    %c0_43 = arith.constant 0 : index
    %72 = vector.load %arg4[%c8, %c0_42, %c0_43] : memref<16x16x16xbf16, #tpu.memory_space<vmem>>, vector<1x16x16xbf16>
    %73 = vector.shape_cast %72 : vector<1x16x16xbf16> to vector<16x16xbf16>
    %cst_44 = arith.constant dense<0.000000e+00> : vector<16x256xf32>
    %74 = tpu.matmul %73, %71, %cst_44 {dimension_numbers = #tpu.dot_dimension_numbers<[1], [0], [0], [1], [0, 0, 1, 1], [], []>} : vector<16x16xbf16>, vector<16x256xbf16>, vector<16x256xf32> -> vector<16x256xf32>
    %75 = arith.addf %17, %74 : vector<16x256xf32>
    %76 = vector.extract_strided_slice %12 {offsets = [0, 32], sizes = [16, 256], strides = [1, 1]} : vector<16x290xbf16> to vector<16x256xbf16>
    %77 = vector.extract_strided_slice %13 {offsets = [2, 0], sizes = [1, 256], strides = [1, 1]} : vector<3x256xbf16> to vector<1x256xbf16>
    %78 = vector.broadcast %77 : vector<1x256xbf16> to vector<16x256xbf16>
    %79 = arith.mulf %76, %78 : vector<16x256xbf16>
    %c9 = arith.constant 9 : index
    %c0_45 = arith.constant 0 : index
    %c0_46 = arith.constant 0 : index
    %80 = vector.load %arg4[%c9, %c0_45, %c0_46] : memref<16x16x16xbf16, #tpu.memory_space<vmem>>, vector<1x16x16xbf16>
    %81 = vector.shape_cast %80 : vector<1x16x16xbf16> to vector<16x16xbf16>
    %cst_47 = arith.constant dense<0.000000e+00> : vector<16x256xf32>
    %82 = tpu.matmul %81, %79, %cst_47 {dimension_numbers = #tpu.dot_dimension_numbers<[1], [0], [0], [1], [0, 0, 1, 1], [], []>} : vector<16x16xbf16>, vector<16x256xbf16>, vector<16x256xf32> -> vector<16x256xf32>
    %83 = arith.addf %75, %82 : vector<16x256xf32>
    %84 = vector.extract_strided_slice %12 {offsets = [0, 17], sizes = [16, 256], strides = [1, 1]} : vector<16x290xbf16> to vector<16x256xbf16>
    %c10 = arith.constant 10 : index
    %c0_48 = arith.constant 0 : index
    %c0_49 = arith.constant 0 : index
    %85 = vector.load %arg4[%c10, %c0_48, %c0_49] : memref<16x16x16xbf16, #tpu.memory_space<vmem>>, vector<1x16x16xbf16>
    %86 = vector.shape_cast %85 : vector<1x16x16xbf16> to vector<16x16xbf16>
    %cst_50 = arith.constant dense<0.000000e+00> : vector<16x256xf32>
    %87 = tpu.matmul %86, %84, %cst_50 {dimension_numbers = #tpu.dot_dimension_numbers<[1], [0], [0], [1], [0, 0, 1, 1], [], []>} : vector<16x16xbf16>, vector<16x256xbf16>, vector<16x256xf32> -> vector<16x256xf32>
    %88 = arith.addf %83, %87 : vector<16x256xf32>
    %89 = vector.extract_strided_slice %12 {offsets = [0, 16], sizes = [16, 256], strides = [1, 1]} : vector<16x290xbf16> to vector<16x256xbf16>
    %90 = vector.extract_strided_slice %13 {offsets = [2, 0], sizes = [1, 256], strides = [1, 1]} : vector<3x256xbf16> to vector<1x256xbf16>
    %91 = vector.broadcast %90 : vector<1x256xbf16> to vector<16x256xbf16>
    %92 = arith.mulf %89, %91 : vector<16x256xbf16>
    %c11 = arith.constant 11 : index
    %c0_51 = arith.constant 0 : index
    %c0_52 = arith.constant 0 : index
    %93 = vector.load %arg4[%c11, %c0_51, %c0_52] : memref<16x16x16xbf16, #tpu.memory_space<vmem>>, vector<1x16x16xbf16>
    %94 = vector.shape_cast %93 : vector<1x16x16xbf16> to vector<16x16xbf16>
    %cst_53 = arith.constant dense<0.000000e+00> : vector<16x256xf32>
    %95 = tpu.matmul %94, %92, %cst_53 {dimension_numbers = #tpu.dot_dimension_numbers<[1], [0], [0], [1], [0, 0, 1, 1], [], []>} : vector<16x16xbf16>, vector<16x256xbf16>, vector<16x256xf32> -> vector<16x256xf32>
    %96 = arith.addf %88, %95 : vector<16x256xf32>
    %97 = vector.extract_strided_slice %12 {offsets = [0, 34], sizes = [16, 256], strides = [1, 1]} : vector<16x290xbf16> to vector<16x256xbf16>
    %98 = vector.extract_strided_slice %13 {offsets = [0, 0], sizes = [1, 256], strides = [1, 1]} : vector<3x256xbf16> to vector<1x256xbf16>
    %99 = vector.broadcast %98 : vector<1x256xbf16> to vector<16x256xbf16>
    %100 = arith.mulf %97, %99 : vector<16x256xbf16>
    %c12 = arith.constant 12 : index
    %c0_54 = arith.constant 0 : index
    %c0_55 = arith.constant 0 : index
    %101 = vector.load %arg4[%c12, %c0_54, %c0_55] : memref<16x16x16xbf16, #tpu.memory_space<vmem>>, vector<1x16x16xbf16>
    %102 = vector.shape_cast %101 : vector<1x16x16xbf16> to vector<16x16xbf16>
    %cst_56 = arith.constant dense<0.000000e+00> : vector<16x256xf32>
    %103 = tpu.matmul %102, %100, %cst_56 {dimension_numbers = #tpu.dot_dimension_numbers<[1], [0], [0], [1], [0, 0, 1, 1], [], []>} : vector<16x16xbf16>, vector<16x256xbf16>, vector<16x256xf32> -> vector<16x256xf32>
    %104 = arith.addf %18, %103 : vector<16x256xf32>
    %105 = vector.extract_strided_slice %12 {offsets = [0, 33], sizes = [16, 256], strides = [1, 1]} : vector<16x290xbf16> to vector<16x256xbf16>
    %c13 = arith.constant 13 : index
    %c0_57 = arith.constant 0 : index
    %c0_58 = arith.constant 0 : index
    %106 = vector.load %arg4[%c13, %c0_57, %c0_58] : memref<16x16x16xbf16, #tpu.memory_space<vmem>>, vector<1x16x16xbf16>
    %107 = vector.shape_cast %106 : vector<1x16x16xbf16> to vector<16x16xbf16>
    %cst_59 = arith.constant dense<0.000000e+00> : vector<16x256xf32>
    %108 = tpu.matmul %107, %105, %cst_59 {dimension_numbers = #tpu.dot_dimension_numbers<[1], [0], [0], [1], [0, 0, 1, 1], [], []>} : vector<16x16xbf16>, vector<16x256xbf16>, vector<16x256xf32> -> vector<16x256xf32>
    %109 = arith.addf %104, %108 : vector<16x256xf32>
    %110 = vector.extract_strided_slice %12 {offsets = [0, 18], sizes = [16, 256], strides = [1, 1]} : vector<16x290xbf16> to vector<16x256xbf16>
    %111 = vector.extract_strided_slice %13 {offsets = [0, 0], sizes = [1, 256], strides = [1, 1]} : vector<3x256xbf16> to vector<1x256xbf16>
    %112 = vector.broadcast %111 : vector<1x256xbf16> to vector<16x256xbf16>
    %113 = arith.mulf %110, %112 : vector<16x256xbf16>
    %c14 = arith.constant 14 : index
    %c0_60 = arith.constant 0 : index
    %c0_61 = arith.constant 0 : index
    %114 = vector.load %arg4[%c14, %c0_60, %c0_61] : memref<16x16x16xbf16, #tpu.memory_space<vmem>>, vector<1x16x16xbf16>
    %115 = vector.shape_cast %114 : vector<1x16x16xbf16> to vector<16x16xbf16>
    %cst_62 = arith.constant dense<0.000000e+00> : vector<16x256xf32>
    %116 = tpu.matmul %115, %113, %cst_62 {dimension_numbers = #tpu.dot_dimension_numbers<[1], [0], [0], [1], [0, 0, 1, 1], [], []>} : vector<16x16xbf16>, vector<16x256xbf16>, vector<16x256xf32> -> vector<16x256xf32>
    %117 = arith.addf %109, %116 : vector<16x256xf32>
    %118 = vector.extract_strided_slice %12 {offsets = [0, 17], sizes = [16, 256], strides = [1, 1]} : vector<16x290xbf16> to vector<16x256xbf16>
    %c15 = arith.constant 15 : index
    %c0_63 = arith.constant 0 : index
    %c0_64 = arith.constant 0 : index
    %119 = vector.load %arg4[%c15, %c0_63, %c0_64] : memref<16x16x16xbf16, #tpu.memory_space<vmem>>, vector<1x16x16xbf16>
    %120 = vector.shape_cast %119 : vector<1x16x16xbf16> to vector<16x16xbf16>
    %cst_65 = arith.constant dense<0.000000e+00> : vector<16x256xf32>
    %121 = tpu.matmul %120, %118, %cst_65 {dimension_numbers = #tpu.dot_dimension_numbers<[1], [0], [0], [1], [0, 0, 1, 1], [], []>} : vector<16x16xbf16>, vector<16x256xbf16>, vector<16x256xf32> -> vector<16x256xf32>
    %122 = arith.addf %117, %121 : vector<16x256xf32>
    %123 = vector.broadcast %14 : vector<16x1xf32> to vector<16x256xf32>
    %124 = arith.addf %44, %123 : vector<16x256xf32>
    %125 = arith.truncf %124 : vector<16x256xf32> to vector<16x256xbf16>
    %c0_66 = arith.constant 0 : index
    %c0_67 = arith.constant 0 : index
    %c0_68 = arith.constant 0 : index
    %126 = vector.load %arg7[%c0_66, %c0_67, %c0_68] : memref<1x64x256xbf16, #tpu.memory_space<vmem>>, vector<1x16x256xbf16>
    %127 = vector.shape_cast %126 : vector<1x16x256xbf16> to vector<16x256xbf16>
    %128 = vector.shape_cast %125 : vector<16x256xbf16> to vector<1x16x256xbf16>
    tpu.vector_store %arg7[%c0_66, %c0_67, %c0_68], %128 {strides = array<i32>} : memref<1x64x256xbf16, #tpu.memory_space<vmem>>, vector<1x16x256xbf16>,
    %129 = vector.broadcast %14 : vector<16x1xf32> to vector<16x256xf32>
    %130 = arith.addf %70, %129 : vector<16x256xf32>
    %131 = arith.truncf %130 : vector<16x256xf32> to vector<16x256xbf16>
    %c0_69 = arith.constant 0 : index
    %c16 = arith.constant 16 : index
    %c0_70 = arith.constant 0 : index
    %132 = vector.load %arg7[%c0_69, %c16, %c0_70] : memref<1x64x256xbf16, #tpu.memory_space<vmem>>, vector<1x16x256xbf16>
    %133 = vector.shape_cast %132 : vector<1x16x256xbf16> to vector<16x256xbf16>
    %134 = vector.shape_cast %131 : vector<16x256xbf16> to vector<1x16x256xbf16>
    tpu.vector_store %arg7[%c0_69, %c16, %c0_70], %134 {strides = array<i32>} : memref<1x64x256xbf16, #tpu.memory_space<vmem>>, vector<1x16x256xbf16>,
    %135 = vector.broadcast %14 : vector<16x1xf32> to vector<16x256xf32>
    %136 = arith.addf %96, %135 : vector<16x256xf32>
    %137 = arith.truncf %136 : vector<16x256xf32> to vector<16x256xbf16>
    %c0_71 = arith.constant 0 : index
    %c32 = arith.constant 32 : index
    %c0_72 = arith.constant 0 : index
    %138 = vector.load %arg7[%c0_71, %c32, %c0_72] : memref<1x64x256xbf16, #tpu.memory_space<vmem>>, vector<1x16x256xbf16>
    %139 = vector.shape_cast %138 : vector<1x16x256xbf16> to vector<16x256xbf16>
    %140 = vector.shape_cast %137 : vector<16x256xbf16> to vector<1x16x256xbf16>
    tpu.vector_store %arg7[%c0_71, %c32, %c0_72], %140 {strides = array<i32>} : memref<1x64x256xbf16, #tpu.memory_space<vmem>>, vector<1x16x256xbf16>,
    %141 = vector.broadcast %14 : vector<16x1xf32> to vector<16x256xf32>
    %142 = arith.addf %122, %141 : vector<16x256xf32>
    %143 = arith.truncf %142 : vector<16x256xf32> to vector<16x256xbf16>
    %c0_73 = arith.constant 0 : index
    %c48 = arith.constant 48 : index
    %c0_74 = arith.constant 0 : index
    %144 = vector.load %arg7[%c0_73, %c48, %c0_74] : memref<1x64x256xbf16, #tpu.memory_space<vmem>>, vector<1x16x256xbf16>
    %145 = vector.shape_cast %144 : vector<1x16x256xbf16> to vector<16x256xbf16>
    %146 = vector.shape_cast %143 : vector<16x256xbf16> to vector<1x16x256xbf16>
    tpu.vector_store %arg7[%c0_73, %c48, %c0_74], %146 {strides = array<i32>} : memref<1x64x256xbf16, #tpu.memory_space<vmem>>, vector<1x16x256xbf16>,
    return
  }
  func.func @transform_0(%arg0: i32) -> (i32, i32, i32) {
    %c0_i32 = arith.constant 0 : i32
    %c0_i32_0 = arith.constant 0 : i32
    %c0_i32_1 = arith.constant 0 : i32
    return %arg0, %c0_i32, %c0_i32_0 : i32, i32, i32
  }
  func.func @transform_1(%arg0: i32) -> (i32, i32) {
    %c0_i32 = arith.constant 0 : i32
    %c0_i32_0 = arith.constant 0 : i32
    %c0_i32_1 = arith.constant 0 : i32
    return %c0_i32, %c0_i32_0 : i32, i32
  }
  func.func @transform_2(%arg0: i32) -> (i32, i32) {
    %c0_i32 = arith.constant 0 : i32
    %c0_i32_0 = arith.constant 0 : i32
    %c0_i32_1 = arith.constant 0 : i32
    return %c0_i32, %c0_i32_0 : i32, i32
  }
  func.func @transform_3(%arg0: i32) -> (i32, i32, i32) {
    %c0_i32 = arith.constant 0 : i32
    %c0_i32_0 = arith.constant 0 : i32
    %c0_i32_1 = arith.constant 0 : i32
    %c0_i32_2 = arith.constant 0 : i32
    return %c0_i32, %c0_i32_0, %c0_i32_1 : i32, i32, i32
  }
  func.func @transform_4(%arg0: i32) -> (i32, i32) {
    %c0_i32 = arith.constant 0 : i32
    %c0_i32_0 = arith.constant 0 : i32
    %c0_i32_1 = arith.constant 0 : i32
    return %c0_i32, %c0_i32_0 : i32, i32
  }
  func.func @transform_5(%arg0: i32) -> (i32, i32) {
    %c0_i32 = arith.constant 0 : i32
    %c0_i32_0 = arith.constant 0 : i32
    %c0_i32_1 = arith.constant 0 : i32
    return %c0_i32, %c0_i32_0 : i32, i32
  }
  func.func @transform_6(%arg0: i32) -> (i32, i32, i32) {
    %c0_i32 = arith.constant 0 : i32
    %c0_i32_0 = arith.constant 0 : i32
    %c0_i32_1 = arith.constant 0 : i32
    return %arg0, %c0_i32, %c0_i32_0 : i32, i32, i32
  }
}

module attributes {stable_mosaic.version = 11 : i64} {
  func.func @kernel(%arg0: i32, %arg1: memref<1x16x1024xbf16, #tpu.memory_space<vmem>>, %arg2: memref<1x16xbf16, #tpu.memory_space<vmem>>, %arg3: memref<1x1xf32, #tpu.memory_space<vmem>>, %arg4: memref<16x1x1xf32, #tpu.memory_space<vmem>>, %arg5: memref<1x1xf32, #tpu.memory_space<vmem>>, %arg6: memref<3x1024xf32, #tpu.memory_space<vmem>>, %arg7: memref<1x4x1024xf32, #tpu.memory_space<vmem>>) attributes {dimension_semantics = [#tpu.dimension_semantics<parallel>], iteration_bounds = array<i64: 2>, scalar_prefetch = 0 : i64, scratch_operands = 0 : i64, tpu.core_type = #tpu.core_type<tc>, window_params = [{transform_indices = @transform_0, window_bounds = array<i64: 1, 16, 1024>}, {pipeline_mode = #tpu.pipeline_mode<synchronous>, transform_indices = @transform_1, window_bounds = array<i64: 1, 16>}, {pipeline_mode = #tpu.pipeline_mode<synchronous>, transform_indices = @transform_2, window_bounds = array<i64: 1, 1>}, {pipeline_mode = #tpu.pipeline_mode<synchronous>, transform_indices = @transform_3, window_bounds = array<i64: 16, 1, 1>}, {pipeline_mode = #tpu.pipeline_mode<synchronous>, transform_indices = @transform_4, window_bounds = array<i64: 1, 1>}, {pipeline_mode = #tpu.pipeline_mode<synchronous>, transform_indices = @transform_5, window_bounds = array<i64: 3, 1024>}, {transform_indices = @transform_6, window_bounds = array<i64: 1, 4, 1024>}]} {
    %c0 = arith.constant 0 : index
    %c0_0 = arith.constant 0 : index
    %c0_1 = arith.constant 0 : index
    %0 = vector.load %arg1[%c0, %c0_0, %c0_1] : memref<1x16x1024xbf16, #tpu.memory_space<vmem>>, vector<1x16x1024xbf16>
    %1 = vector.shape_cast %0 : vector<1x16x1024xbf16> to vector<16x1024xbf16>
    %c0_2 = arith.constant 0 : index
    %c0_3 = arith.constant 0 : index
    %2 = vector.load %arg2[%c0_2, %c0_3] : memref<1x16xbf16, #tpu.memory_space<vmem>>, vector<1x16xbf16>
    %cst = arith.constant dense<0.000000e+00> : vector<1x1024xf32>
    %3 = tpu.matmul %2, %1, %cst {dimension_numbers = #tpu.dot_dimension_numbers<[1], [0], [0], [1], [0, 0, 1, 1], [], []>} : vector<1x16xbf16>, vector<16x1024xbf16>, vector<1x1024xf32> -> vector<1x1024xf32>
    %c0_4 = arith.constant 0 : index
    %c0_5 = arith.constant 0 : index
    %4 = vector.load %arg3[%c0_4, %c0_5] : memref<1x1xf32, #tpu.memory_space<vmem>>, vector<1x1xf32>
    %5 = vector.broadcast %4 : vector<1x1xf32> to vector<1x1024xf32>
    %6 = arith.addf %3, %5 : vector<1x1024xf32>
    %cst_6 = arith.constant 0.000000e+00 : f32
    %7 = vector.broadcast %cst_6 : f32 to vector<1x1024xf32>
    %8 = arith.maximumf %6, %7 : vector<1x1024xf32>
    %cst_7 = arith.constant 0.000000e+00 : f32
    %9 = vector.broadcast %cst_7 : f32 to vector<1x33xf32>
    %cst_8 = arith.constant 0.000000e+00 : f32
    %10 = vector.broadcast %cst_8 : f32 to vector<1x33xf32>
    %11 = tpu.concatenate %9, %8, %10 in 1 : vector<1x33xf32>, vector<1x1024xf32>, vector<1x33xf32> -> vector<1x1090xf32>
    %c0_9 = arith.constant 0 : index
    %c0_10 = arith.constant 0 : index
    %12 = vector.load %arg6[%c0_9, %c0_10] : memref<3x1024xf32, #tpu.memory_space<vmem>>, vector<3x1024xf32>
    %c0_11 = arith.constant 0 : index
    %c0_12 = arith.constant 0 : index
    %13 = vector.load %arg5[%c0_11, %c0_12] : memref<1x1xf32, #tpu.memory_space<vmem>>, vector<1x1xf32>
    %cst_13 = arith.constant 0.000000e+00 : f32
    %14 = vector.broadcast %cst_13 : f32 to vector<1x1024xf32>
    %cst_14 = arith.constant 0.000000e+00 : f32
    %15 = vector.broadcast %cst_14 : f32 to vector<1x1024xf32>
    %cst_15 = arith.constant 0.000000e+00 : f32
    %16 = vector.broadcast %cst_15 : f32 to vector<1x1024xf32>
    %cst_16 = arith.constant 0.000000e+00 : f32
    %17 = vector.broadcast %cst_16 : f32 to vector<1x1024xf32>
    %18 = vector.extract_strided_slice %11 {offsets = [0, 33], sizes = [1, 1024], strides = [1, 1]} : vector<1x1090xf32> to vector<1x1024xf32>
    %c0_17 = arith.constant 0 : index
    %c0_18 = arith.constant 0 : index
    %c0_19 = arith.constant 0 : index
    %19 = vector.load %arg4[%c0_17, %c0_18, %c0_19] : memref<16x1x1xf32, #tpu.memory_space<vmem>>, vector<1x1x1xf32>
    %20 = vector.shape_cast %19 : vector<1x1x1xf32> to vector<1x1xf32>
    %21 = vector.broadcast %20 : vector<1x1xf32> to vector<1x1024xf32>
    %22 = arith.mulf %21, %18 : vector<1x1024xf32>
    %23 = arith.addf %14, %22 : vector<1x1024xf32>
    %24 = vector.extract_strided_slice %11 {offsets = [0, 32], sizes = [1, 1024], strides = [1, 1]} : vector<1x1090xf32> to vector<1x1024xf32>
    %25 = vector.extract_strided_slice %12 {offsets = [2, 0], sizes = [1, 1024], strides = [1, 1]} : vector<3x1024xf32> to vector<1x1024xf32>
    %26 = arith.mulf %24, %25 : vector<1x1024xf32>
    %c1 = arith.constant 1 : index
    %c0_20 = arith.constant 0 : index
    %c0_21 = arith.constant 0 : index
    %27 = vector.load %arg4[%c1, %c0_20, %c0_21] : memref<16x1x1xf32, #tpu.memory_space<vmem>>, vector<1x1x1xf32>
    %28 = vector.shape_cast %27 : vector<1x1x1xf32> to vector<1x1xf32>
    %29 = vector.broadcast %28 : vector<1x1xf32> to vector<1x1024xf32>
    %30 = arith.mulf %29, %26 : vector<1x1024xf32>
    %31 = arith.addf %23, %30 : vector<1x1024xf32>
    %32 = vector.extract_strided_slice %11 {offsets = [0, 1], sizes = [1, 1024], strides = [1, 1]} : vector<1x1090xf32> to vector<1x1024xf32>
    %c2 = arith.constant 2 : index
    %c0_22 = arith.constant 0 : index
    %c0_23 = arith.constant 0 : index
    %33 = vector.load %arg4[%c2, %c0_22, %c0_23] : memref<16x1x1xf32, #tpu.memory_space<vmem>>, vector<1x1x1xf32>
    %34 = vector.shape_cast %33 : vector<1x1x1xf32> to vector<1x1xf32>
    %35 = vector.broadcast %34 : vector<1x1xf32> to vector<1x1024xf32>
    %36 = arith.mulf %35, %32 : vector<1x1024xf32>
    %37 = arith.addf %31, %36 : vector<1x1024xf32>
    %38 = vector.extract_strided_slice %11 {offsets = [0, 0], sizes = [1, 1024], strides = [1, 1]} : vector<1x1090xf32> to vector<1x1024xf32>
    %39 = vector.extract_strided_slice %12 {offsets = [2, 0], sizes = [1, 1024], strides = [1, 1]} : vector<3x1024xf32> to vector<1x1024xf32>
    %40 = arith.mulf %38, %39 : vector<1x1024xf32>
    %c3 = arith.constant 3 : index
    %c0_24 = arith.constant 0 : index
    %c0_25 = arith.constant 0 : index
    %41 = vector.load %arg4[%c3, %c0_24, %c0_25] : memref<16x1x1xf32, #tpu.memory_space<vmem>>, vector<1x1x1xf32>
    %42 = vector.shape_cast %41 : vector<1x1x1xf32> to vector<1x1xf32>
    %43 = vector.broadcast %42 : vector<1x1xf32> to vector<1x1024xf32>
    %44 = arith.mulf %43, %40 : vector<1x1024xf32>
    %45 = arith.addf %37, %44 : vector<1x1024xf32>
    %46 = vector.extract_strided_slice %11 {offsets = [0, 34], sizes = [1, 1024], strides = [1, 1]} : vector<1x1090xf32> to vector<1x1024xf32>
    %47 = vector.extract_strided_slice %12 {offsets = [0, 0], sizes = [1, 1024], strides = [1, 1]} : vector<3x1024xf32> to vector<1x1024xf32>
    %48 = arith.mulf %46, %47 : vector<1x1024xf32>
    %c4 = arith.constant 4 : index
    %c0_26 = arith.constant 0 : index
    %c0_27 = arith.constant 0 : index
    %49 = vector.load %arg4[%c4, %c0_26, %c0_27] : memref<16x1x1xf32, #tpu.memory_space<vmem>>, vector<1x1x1xf32>
    %50 = vector.shape_cast %49 : vector<1x1x1xf32> to vector<1x1xf32>
    %51 = vector.broadcast %50 : vector<1x1xf32> to vector<1x1024xf32>
    %52 = arith.mulf %51, %48 : vector<1x1024xf32>
    %53 = arith.addf %15, %52 : vector<1x1024xf32>
    %54 = vector.extract_strided_slice %11 {offsets = [0, 33], sizes = [1, 1024], strides = [1, 1]} : vector<1x1090xf32> to vector<1x1024xf32>
    %c5 = arith.constant 5 : index
    %c0_28 = arith.constant 0 : index
    %c0_29 = arith.constant 0 : index
    %55 = vector.load %arg4[%c5, %c0_28, %c0_29] : memref<16x1x1xf32, #tpu.memory_space<vmem>>, vector<1x1x1xf32>
    %56 = vector.shape_cast %55 : vector<1x1x1xf32> to vector<1x1xf32>
    %57 = vector.broadcast %56 : vector<1x1xf32> to vector<1x1024xf32>
    %58 = arith.mulf %57, %54 : vector<1x1024xf32>
    %59 = arith.addf %53, %58 : vector<1x1024xf32>
    %60 = vector.extract_strided_slice %11 {offsets = [0, 2], sizes = [1, 1024], strides = [1, 1]} : vector<1x1090xf32> to vector<1x1024xf32>
    %61 = vector.extract_strided_slice %12 {offsets = [0, 0], sizes = [1, 1024], strides = [1, 1]} : vector<3x1024xf32> to vector<1x1024xf32>
    %62 = arith.mulf %60, %61 : vector<1x1024xf32>
    %c6 = arith.constant 6 : index
    %c0_30 = arith.constant 0 : index
    %c0_31 = arith.constant 0 : index
    %63 = vector.load %arg4[%c6, %c0_30, %c0_31] : memref<16x1x1xf32, #tpu.memory_space<vmem>>, vector<1x1x1xf32>
    %64 = vector.shape_cast %63 : vector<1x1x1xf32> to vector<1x1xf32>
    %65 = vector.broadcast %64 : vector<1x1xf32> to vector<1x1024xf32>
    %66 = arith.mulf %65, %62 : vector<1x1024xf32>
    %67 = arith.addf %59, %66 : vector<1x1024xf32>
    %68 = vector.extract_strided_slice %11 {offsets = [0, 1], sizes = [1, 1024], strides = [1, 1]} : vector<1x1090xf32> to vector<1x1024xf32>
    %c7 = arith.constant 7 : index
    %c0_32 = arith.constant 0 : index
    %c0_33 = arith.constant 0 : index
    %69 = vector.load %arg4[%c7, %c0_32, %c0_33] : memref<16x1x1xf32, #tpu.memory_space<vmem>>, vector<1x1x1xf32>
    %70 = vector.shape_cast %69 : vector<1x1x1xf32> to vector<1x1xf32>
    %71 = vector.broadcast %70 : vector<1x1xf32> to vector<1x1024xf32>
    %72 = arith.mulf %71, %68 : vector<1x1024xf32>
    %73 = arith.addf %67, %72 : vector<1x1024xf32>
    %74 = vector.extract_strided_slice %11 {offsets = [0, 65], sizes = [1, 1024], strides = [1, 1]} : vector<1x1090xf32> to vector<1x1024xf32>
    %c8 = arith.constant 8 : index
    %c0_34 = arith.constant 0 : index
    %c0_35 = arith.constant 0 : index
    %75 = vector.load %arg4[%c8, %c0_34, %c0_35] : memref<16x1x1xf32, #tpu.memory_space<vmem>>, vector<1x1x1xf32>
    %76 = vector.shape_cast %75 : vector<1x1x1xf32> to vector<1x1xf32>
    %77 = vector.broadcast %76 : vector<1x1xf32> to vector<1x1024xf32>
    %78 = arith.mulf %77, %74 : vector<1x1024xf32>
    %79 = arith.addf %16, %78 : vector<1x1024xf32>
    %80 = vector.extract_strided_slice %11 {offsets = [0, 64], sizes = [1, 1024], strides = [1, 1]} : vector<1x1090xf32> to vector<1x1024xf32>
    %81 = vector.extract_strided_slice %12 {offsets = [2, 0], sizes = [1, 1024], strides = [1, 1]} : vector<3x1024xf32> to vector<1x1024xf32>
    %82 = arith.mulf %80, %81 : vector<1x1024xf32>
    %c9 = arith.constant 9 : index
    %c0_36 = arith.constant 0 : index
    %c0_37 = arith.constant 0 : index
    %83 = vector.load %arg4[%c9, %c0_36, %c0_37] : memref<16x1x1xf32, #tpu.memory_space<vmem>>, vector<1x1x1xf32>
    %84 = vector.shape_cast %83 : vector<1x1x1xf32> to vector<1x1xf32>
    %85 = vector.broadcast %84 : vector<1x1xf32> to vector<1x1024xf32>
    %86 = arith.mulf %85, %82 : vector<1x1024xf32>
    %87 = arith.addf %79, %86 : vector<1x1024xf32>
    %88 = vector.extract_strided_slice %11 {offsets = [0, 33], sizes = [1, 1024], strides = [1, 1]} : vector<1x1090xf32> to vector<1x1024xf32>
    %c10 = arith.constant 10 : index
    %c0_38 = arith.constant 0 : index
    %c0_39 = arith.constant 0 : index
    %89 = vector.load %arg4[%c10, %c0_38, %c0_39] : memref<16x1x1xf32, #tpu.memory_space<vmem>>, vector<1x1x1xf32>
    %90 = vector.shape_cast %89 : vector<1x1x1xf32> to vector<1x1xf32>
    %91 = vector.broadcast %90 : vector<1x1xf32> to vector<1x1024xf32>
    %92 = arith.mulf %91, %88 : vector<1x1024xf32>
    %93 = arith.addf %87, %92 : vector<1x1024xf32>
    %94 = vector.extract_strided_slice %11 {offsets = [0, 32], sizes = [1, 1024], strides = [1, 1]} : vector<1x1090xf32> to vector<1x1024xf32>
    %95 = vector.extract_strided_slice %12 {offsets = [2, 0], sizes = [1, 1024], strides = [1, 1]} : vector<3x1024xf32> to vector<1x1024xf32>
    %96 = arith.mulf %94, %95 : vector<1x1024xf32>
    %c11 = arith.constant 11 : index
    %c0_40 = arith.constant 0 : index
    %c0_41 = arith.constant 0 : index
    %97 = vector.load %arg4[%c11, %c0_40, %c0_41] : memref<16x1x1xf32, #tpu.memory_space<vmem>>, vector<1x1x1xf32>
    %98 = vector.shape_cast %97 : vector<1x1x1xf32> to vector<1x1xf32>
    %99 = vector.broadcast %98 : vector<1x1xf32> to vector<1x1024xf32>
    %100 = arith.mulf %99, %96 : vector<1x1024xf32>
    %101 = arith.addf %93, %100 : vector<1x1024xf32>
    %102 = vector.extract_strided_slice %11 {offsets = [0, 66], sizes = [1, 1024], strides = [1, 1]} : vector<1x1090xf32> to vector<1x1024xf32>
    %103 = vector.extract_strided_slice %12 {offsets = [0, 0], sizes = [1, 1024], strides = [1, 1]} : vector<3x1024xf32> to vector<1x1024xf32>
    %104 = arith.mulf %102, %103 : vector<1x1024xf32>
    %c12 = arith.constant 12 : index
    %c0_42 = arith.constant 0 : index
    %c0_43 = arith.constant 0 : index
    %105 = vector.load %arg4[%c12, %c0_42, %c0_43] : memref<16x1x1xf32, #tpu.memory_space<vmem>>, vector<1x1x1xf32>
    %106 = vector.shape_cast %105 : vector<1x1x1xf32> to vector<1x1xf32>
    %107 = vector.broadcast %106 : vector<1x1xf32> to vector<1x1024xf32>
    %108 = arith.mulf %107, %104 : vector<1x1024xf32>
    %109 = arith.addf %17, %108 : vector<1x1024xf32>
    %110 = vector.extract_strided_slice %11 {offsets = [0, 65], sizes = [1, 1024], strides = [1, 1]} : vector<1x1090xf32> to vector<1x1024xf32>
    %c13 = arith.constant 13 : index
    %c0_44 = arith.constant 0 : index
    %c0_45 = arith.constant 0 : index
    %111 = vector.load %arg4[%c13, %c0_44, %c0_45] : memref<16x1x1xf32, #tpu.memory_space<vmem>>, vector<1x1x1xf32>
    %112 = vector.shape_cast %111 : vector<1x1x1xf32> to vector<1x1xf32>
    %113 = vector.broadcast %112 : vector<1x1xf32> to vector<1x1024xf32>
    %114 = arith.mulf %113, %110 : vector<1x1024xf32>
    %115 = arith.addf %109, %114 : vector<1x1024xf32>
    %116 = vector.extract_strided_slice %11 {offsets = [0, 34], sizes = [1, 1024], strides = [1, 1]} : vector<1x1090xf32> to vector<1x1024xf32>
    %117 = vector.extract_strided_slice %12 {offsets = [0, 0], sizes = [1, 1024], strides = [1, 1]} : vector<3x1024xf32> to vector<1x1024xf32>
    %118 = arith.mulf %116, %117 : vector<1x1024xf32>
    %c14 = arith.constant 14 : index
    %c0_46 = arith.constant 0 : index
    %c0_47 = arith.constant 0 : index
    %119 = vector.load %arg4[%c14, %c0_46, %c0_47] : memref<16x1x1xf32, #tpu.memory_space<vmem>>, vector<1x1x1xf32>
    %120 = vector.shape_cast %119 : vector<1x1x1xf32> to vector<1x1xf32>
    %121 = vector.broadcast %120 : vector<1x1xf32> to vector<1x1024xf32>
    %122 = arith.mulf %121, %118 : vector<1x1024xf32>
    %123 = arith.addf %115, %122 : vector<1x1024xf32>
    %124 = vector.extract_strided_slice %11 {offsets = [0, 33], sizes = [1, 1024], strides = [1, 1]} : vector<1x1090xf32> to vector<1x1024xf32>
    %c15 = arith.constant 15 : index
    %c0_48 = arith.constant 0 : index
    %c0_49 = arith.constant 0 : index
    %125 = vector.load %arg4[%c15, %c0_48, %c0_49] : memref<16x1x1xf32, #tpu.memory_space<vmem>>, vector<1x1x1xf32>
    %126 = vector.shape_cast %125 : vector<1x1x1xf32> to vector<1x1xf32>
    %127 = vector.broadcast %126 : vector<1x1xf32> to vector<1x1024xf32>
    %128 = arith.mulf %127, %124 : vector<1x1024xf32>
    %129 = arith.addf %123, %128 : vector<1x1024xf32>
    %130 = vector.broadcast %13 : vector<1x1xf32> to vector<1x1024xf32>
    %131 = arith.addf %45, %130 : vector<1x1024xf32>
    %c0_50 = arith.constant 0 : index
    %c0_51 = arith.constant 0 : index
    %c0_52 = arith.constant 0 : index
    %132 = vector.load %arg7[%c0_50, %c0_51, %c0_52] : memref<1x4x1024xf32, #tpu.memory_space<vmem>>, vector<1x1x1024xf32>
    %133 = vector.shape_cast %132 : vector<1x1x1024xf32> to vector<1x1024xf32>
    %134 = vector.shape_cast %131 : vector<1x1024xf32> to vector<1x1x1024xf32>
    tpu.vector_store %arg7[%c0_50, %c0_51, %c0_52], %134 {strides = array<i32>} : memref<1x4x1024xf32, #tpu.memory_space<vmem>>, vector<1x1x1024xf32>,
    %135 = vector.broadcast %13 : vector<1x1xf32> to vector<1x1024xf32>
    %136 = arith.addf %73, %135 : vector<1x1024xf32>
    %c0_53 = arith.constant 0 : index
    %c1_54 = arith.constant 1 : index
    %c0_55 = arith.constant 0 : index
    %137 = vector.load %arg7[%c0_53, %c1_54, %c0_55] : memref<1x4x1024xf32, #tpu.memory_space<vmem>>, vector<1x1x1024xf32>
    %138 = vector.shape_cast %137 : vector<1x1x1024xf32> to vector<1x1024xf32>
    %139 = vector.shape_cast %136 : vector<1x1024xf32> to vector<1x1x1024xf32>
    tpu.vector_store %arg7[%c0_53, %c1_54, %c0_55], %139 {strides = array<i32>} : memref<1x4x1024xf32, #tpu.memory_space<vmem>>, vector<1x1x1024xf32>,
    %140 = vector.broadcast %13 : vector<1x1xf32> to vector<1x1024xf32>
    %141 = arith.addf %101, %140 : vector<1x1024xf32>
    %c0_56 = arith.constant 0 : index
    %c2_57 = arith.constant 2 : index
    %c0_58 = arith.constant 0 : index
    %142 = vector.load %arg7[%c0_56, %c2_57, %c0_58] : memref<1x4x1024xf32, #tpu.memory_space<vmem>>, vector<1x1x1024xf32>
    %143 = vector.shape_cast %142 : vector<1x1x1024xf32> to vector<1x1024xf32>
    %144 = vector.shape_cast %141 : vector<1x1024xf32> to vector<1x1x1024xf32>
    tpu.vector_store %arg7[%c0_56, %c2_57, %c0_58], %144 {strides = array<i32>} : memref<1x4x1024xf32, #tpu.memory_space<vmem>>, vector<1x1x1024xf32>,
    %145 = vector.broadcast %13 : vector<1x1xf32> to vector<1x1024xf32>
    %146 = arith.addf %129, %145 : vector<1x1024xf32>
    %c0_59 = arith.constant 0 : index
    %c3_60 = arith.constant 3 : index
    %c0_61 = arith.constant 0 : index
    %147 = vector.load %arg7[%c0_59, %c3_60, %c0_61] : memref<1x4x1024xf32, #tpu.memory_space<vmem>>, vector<1x1x1024xf32>
    %148 = vector.shape_cast %147 : vector<1x1x1024xf32> to vector<1x1024xf32>
    %149 = vector.shape_cast %146 : vector<1x1024xf32> to vector<1x1x1024xf32>
    tpu.vector_store %arg7[%c0_59, %c3_60, %c0_61], %149 {strides = array<i32>} : memref<1x4x1024xf32, #tpu.memory_space<vmem>>, vector<1x1x1024xf32>,
    return
  }
  func.func @transform_0(%arg0: i32) -> (i32, i32, i32) {
    %c0_i32 = arith.constant 0 : i32
    %c0_i32_0 = arith.constant 0 : i32
    %c0_i32_1 = arith.constant 0 : i32
    return %arg0, %c0_i32, %c0_i32_0 : i32, i32, i32
  }
  func.func @transform_1(%arg0: i32) -> (i32, i32) {
    %c0_i32 = arith.constant 0 : i32
    %c0_i32_0 = arith.constant 0 : i32
    %c0_i32_1 = arith.constant 0 : i32
    return %c0_i32, %c0_i32_0 : i32, i32
  }
  func.func @transform_2(%arg0: i32) -> (i32, i32) {
    %c0_i32 = arith.constant 0 : i32
    %c0_i32_0 = arith.constant 0 : i32
    %c0_i32_1 = arith.constant 0 : i32
    return %c0_i32, %c0_i32_0 : i32, i32
  }
  func.func @transform_3(%arg0: i32) -> (i32, i32, i32) {
    %c0_i32 = arith.constant 0 : i32
    %c0_i32_0 = arith.constant 0 : i32
    %c0_i32_1 = arith.constant 0 : i32
    %c0_i32_2 = arith.constant 0 : i32
    return %c0_i32, %c0_i32_0, %c0_i32_1 : i32, i32, i32
  }
  func.func @transform_4(%arg0: i32) -> (i32, i32) {
    %c0_i32 = arith.constant 0 : i32
    %c0_i32_0 = arith.constant 0 : i32
    %c0_i32_1 = arith.constant 0 : i32
    return %c0_i32, %c0_i32_0 : i32, i32
  }
  func.func @transform_5(%arg0: i32) -> (i32, i32) {
    %c0_i32 = arith.constant 0 : i32
    %c0_i32_0 = arith.constant 0 : i32
    %c0_i32_1 = arith.constant 0 : i32
    return %c0_i32, %c0_i32_0 : i32, i32
  }
  func.func @transform_6(%arg0: i32) -> (i32, i32, i32) {
    %c0_i32 = arith.constant 0 : i32
    %c0_i32_0 = arith.constant 0 : i32
    %c0_i32_1 = arith.constant 0 : i32
    return %arg0, %c0_i32, %c0_i32_0 : i32, i32, i32
  }
}

module attributes {stable_mosaic.version = 11 : i64} {
  func.func @_resize_kernel(%arg0: i32, %arg1: memref<1x64x64xf32, #tpu.memory_space<vmem>>, %arg2: memref<70x64xf32, #tpu.memory_space<vmem>>, %arg3: memref<64x66xf32, #tpu.memory_space<vmem>>, %arg4: memref<1x70x66xf32, #tpu.memory_space<vmem>>) attributes {dimension_semantics = [#tpu.dimension_semantics<parallel>], iteration_bounds = array<i64: 2>, scalar_prefetch = 0 : i64, scratch_operands = 0 : i64, tpu.core_type = #tpu.core_type<tc>, window_params = [{transform_indices = @transform_0, window_bounds = array<i64: 1, 64, 64>}, {pipeline_mode = #tpu.pipeline_mode<synchronous>, transform_indices = @transform_1, window_bounds = array<i64: 70, 64>}, {pipeline_mode = #tpu.pipeline_mode<synchronous>, transform_indices = @transform_2, window_bounds = array<i64: 64, 66>}, {transform_indices = @transform_3, window_bounds = array<i64: 1, 70, 66>}]} {
    %c0 = arith.constant 0 : index
    %c0_0 = arith.constant 0 : index
    %0 = vector.load %arg2[%c0, %c0_0] : memref<70x64xf32, #tpu.memory_space<vmem>>, vector<70x64xf32>
    %c0_1 = arith.constant 0 : index
    %c0_2 = arith.constant 0 : index
    %c0_3 = arith.constant 0 : index
    %1 = vector.load %arg1[%c0_1, %c0_2, %c0_3] : memref<1x64x64xf32, #tpu.memory_space<vmem>>, vector<1x64x64xf32>
    %2 = vector.shape_cast %1 : vector<1x64x64xf32> to vector<64x64xf32>
    %cst = arith.constant dense<0.000000e+00> : vector<70x64xf32>
    %3 = tpu.matmul %0, %2, %cst {dimension_numbers = #tpu.dot_dimension_numbers<[1], [0], [0], [1], [0, 0, 1, 1], [], []>} : vector<70x64xf32>, vector<64x64xf32>, vector<70x64xf32> -> vector<70x64xf32>
    %c0_4 = arith.constant 0 : index
    %c0_5 = arith.constant 0 : index
    %4 = vector.load %arg3[%c0_4, %c0_5] : memref<64x66xf32, #tpu.memory_space<vmem>>, vector<64x66xf32>
    %cst_6 = arith.constant dense<0.000000e+00> : vector<70x66xf32>
    %5 = tpu.matmul %3, %4, %cst_6 {dimension_numbers = #tpu.dot_dimension_numbers<[1], [0], [0], [1], [0, 0, 1, 1], [], []>} : vector<70x64xf32>, vector<64x66xf32>, vector<70x66xf32> -> vector<70x66xf32>
    %c0_7 = arith.constant 0 : index
    %c0_8 = arith.constant 0 : index
    %c0_9 = arith.constant 0 : index
    %6 = vector.load %arg4[%c0_7, %c0_8, %c0_9] : memref<1x70x66xf32, #tpu.memory_space<vmem>>, vector<1x70x66xf32>
    %7 = vector.shape_cast %6 : vector<1x70x66xf32> to vector<70x66xf32>
    %8 = vector.shape_cast %5 : vector<70x66xf32> to vector<1x70x66xf32>
    tpu.vector_store %arg4[%c0_7, %c0_8, %c0_9], %8 {strides = array<i32>} : memref<1x70x66xf32, #tpu.memory_space<vmem>>, vector<1x70x66xf32>,
    return
  }
  func.func @transform_0(%arg0: i32) -> (i32, i32, i32) {
    %c0_i32 = arith.constant 0 : i32
    %c0_i32_0 = arith.constant 0 : i32
    %c0_i32_1 = arith.constant 0 : i32
    return %arg0, %c0_i32, %c0_i32_0 : i32, i32, i32
  }
  func.func @transform_1(%arg0: i32) -> (i32, i32) {
    %c0_i32 = arith.constant 0 : i32
    %c0_i32_0 = arith.constant 0 : i32
    %c0_i32_1 = arith.constant 0 : i32
    return %c0_i32, %c0_i32_0 : i32, i32
  }
  func.func @transform_2(%arg0: i32) -> (i32, i32) {
    %c0_i32 = arith.constant 0 : i32
    %c0_i32_0 = arith.constant 0 : i32
    %c0_i32_1 = arith.constant 0 : i32
    return %c0_i32, %c0_i32_0 : i32, i32
  }
  func.func @transform_3(%arg0: i32) -> (i32, i32, i32) {
    %c0_i32 = arith.constant 0 : i32
    %c0_i32_0 = arith.constant 0 : i32
    %c0_i32_1 = arith.constant 0 : i32
    return %arg0, %c0_i32, %c0_i32_0 : i32, i32, i32
  }
}

</mosaic_0001>

<llo_original>
// kernel: upconv_block_forward.3
$region0: #{upconv_block_forward.3}
  #allocation0 [shape = 'u32[]', space=smem, size = 0x4, offset = 0x4, fixed_abs, tag = 'smem constant byte address 0x4 - core index']
  #allocation1 [shape = 'u32[72,128]{1,0:T(1,128)}', space=vmem, size = 0x9000, scoped, tag = 'internal scratch']
  %s0 = inlined_call_operand.vmem [shape: f32[2,4,256], index: 0, kind: input, shape index: {}]
  %s1 = inlined_call_operand.vmem [shape: f32[16,4], index: 1, kind: input, shape index: {}]
  %s2 = inlined_call_operand.vmem [shape: f32[16,1], index: 2, kind: input, shape index: {}]
  %s3 = inlined_call_operand.vmem [shape: bf16[16,16,16], index: 3, kind: input, shape index: {}]
  %s4 = inlined_call_operand.vmem [shape: f32[16,1], index: 4, kind: input, shape index: {}]
  %s5 = inlined_call_operand.hbm [shape: bf16[3,256], index: 5, kind: input, shape index: {}]
  %s6 = inlined_call_operand.vmem [shape: bf16[2,64,256], index: 6, kind: output, shape index: {}]
  %s7 = sld [smem:[#allocation0]]
  $region61: #{upconv_block_forward.3} parent=0
    _
  %s9 = ssub.s32 1, %s7
  %s10 = scalar_select 0, %s9, %s7
  $region1: #{upconv_block_forward.3} parent=0
    #allocation2 [shape = 'u8[2048]{0}', space=vmem, size = 0x800, scoped, tag = 'input window, operand 5, single buffered']
    #allocation3 [shape = 's32[2]{0}', space=sflag, size = 0x8, scoped, tag = 'scoped memory for upconv_block_forward.3']
    %11 = vsyncpa [#allocation3], 0
    loop: start=0, step=1, limit=4
    $region2: #{upconv_block_forward.3} parent=1 // loop_pre_header
      _
    $region3: #{upconv_block_forward.3} parent=1 // loop_header
      %s13 = sphi 0, %s17
      %p14 = scmp.ge.s32.totalorder %s13, 4
      %s23 = sphi 0, %s25
      %s26 = sphi 0, %s23
      %s27 = sphi 0, %s26
      %s43 = sphi 0, %s27
      %s47 = sphi 0, %s47
      %s49 = sphi 0, %s47
      %s50 = sphi 0, %s49
      %s64 = sphi 0, %s50
      %s68 = sphi 0, %s68
      %s70 = sphi 0, %s68
      %s71 = sphi 0, %s70
      %s85 = sphi 0, %s71
      %s89 = sphi 0, %s89
      %s91 = sphi 0, %s89
      %s92 = sphi 0, %s91
      %s106 = sphi 0, %s92
      %s110 = sphi 0, %s110
      %s112 = sphi 0, %s110
      %s113 = sphi 0, %s112
      %s127 = sphi 0, %s113
      %s131 = sphi 0, %s131
      %s133 = sphi 0, %s131
      %s134 = sphi 0, %s133
      %s148 = sphi 0, %s134
      %s154 = sphi 0, %s156
      %s157 = sphi 0, %s154
      %s158 = sphi 0, %s157
      %s174 = sphi 0, %s158
    $region4: #{upconv_block_forward.3} parent=1 // loop_header_branch
      %16 = sbr.rel (%p14) target = $region8
    $region5: #{upconv_block_forward.3} parent=1 // loop_body
      %s18 = ssub.s32 %s13, 1
      %s19 = ssub.s32 %s13, 2
      %s20 = sadd.s32 %s13, 1
      %s21 = ssub.s32 %s13, %s20
      %p22 = scmp.eq.s32.totalorder %s21, 0
      %s24 = sadd.s32 %s23, 1
      %s25 = scalar_select %p22, %s23, %s24
      %p28 = pneg %p22
      %p29 = scmp.eq.s32.totalorder %s13, 1
      %p30 = por %p28, %p29
      %p31 = scmp.ne.s32.totalorder %s23, %s26
      %p32 = scmp.eq.s32.totalorder %s13, 0
      %p33 = por %p31, %p32
      %p34 = scmp.ne.s32.totalorder %s23, %s26
      %p35 = scmp.eq.s32.totalorder %s18, 1
      %p36 = por %p34, %p35
      %p37 = scmp.ne.s32.totalorder %s26, %s27
      %p38 = scmp.eq.s32.totalorder %s18, 0
      %p39 = por %p37, %p38
      %p40 = scmp.ne.s32.totalorder %s26, %s27
      %p41 = scmp.eq.s32.totalorder %s19, 1
      %p42 = por %p40, %p41
      %p44 = scmp.ne.s32.totalorder %s27, %s43
      %p45 = scmp.eq.s32.totalorder %s19, 0
      %p46 = por %p44, %p45
      %s48 = sadd.s32 %s47, 1
      %p51 = scmp.eq.s32.totalorder %s13, 1
      %p52 = scmp.ne.s32.totalorder %s47, %s49
      %p53 = scmp.eq.s32.totalorder %s13, 0
      %p54 = por %p52, %p53
      %p55 = scmp.ne.s32.totalorder %s47, %s49
      %p56 = scmp.eq.s32.totalorder %s18, 1
      %p57 = por %p55, %p56
      %p58 = scmp.ne.s32.totalorder %s49, %s50
      %p59 = scmp.eq.s32.totalorder %s18, 0
      %p60 = por %p58, %p59
      %p61 = scmp.ne.s32.totalorder %s49, %s50
      %p62 = scmp.eq.s32.totalorder %s19, 1
      %p63 = por %p61, %p62
      %p65 = scmp.ne.s32.totalorder %s50, %s64
      %p66 = scmp.eq.s32.totalorder %s19, 0
      %p67 = por %p65, %p66
      %s69 = sadd.s32 %s68, 1
      %p72 = scmp.eq.s32.totalorder %s13, 1
      %p73 = scmp.ne.s32.totalorder %s68, %s70
      %p74 = scmp.eq.s32.totalorder %s13, 0
      %p75 = por %p73, %p74
      %p76 = scmp.ne.s32.totalorder %s68, %s70
      %p77 = scmp.eq.s32.totalorder %s18, 1
      %p78 = por %p76, %p77
      %p79 = scmp.ne.s32.totalorder %s70, %s71
      %p80 = scmp.eq.s32.totalorder %s18, 0
      %p81 = por %p79, %p80
      %p82 = scmp.ne.s32.totalorder %s70, %s71
      %p83 = scmp.eq.s32.totalorder %s19, 1
      %p84 = por %p82, %p83
      %p86 = scmp.ne.s32.totalorder %s71, %s85
      %p87 = scmp.eq.s32.totalorder %s19, 0
      %p88 = por %p86, %p87
      %s90 = sadd.s32 %s89, 1
      %p93 = scmp.eq.s32.totalorder %s13, 1
      %p94 = scmp.ne.s32.totalorder %s89, %s91
      %p95 = scmp.eq.s32.totalorder %s13, 0
      %p96 = por %p94, %p95
      %p97 = scmp.ne.s32.totalorder %s89, %s91
      %p98 = scmp.eq.s32.totalorder %s18, 1
      %p99 = por %p97, %p98
      %p100 = scmp.ne.s32.totalorder %s91, %s92
      %p101 = scmp.eq.s32.totalorder %s18, 0
      %p102 = por %p100, %p101
      %p103 = scmp.ne.s32.totalorder %s91, %s92
      %p104 = scmp.eq.s32.totalorder %s19, 1
      %p105 = por %p103, %p104
      %p107 = scmp.ne.s32.totalorder %s92, %s106
      %p108 = scmp.eq.s32.totalorder %s19, 0
      %p109 = por %p107, %p108
      %s111 = sadd.s32 %s110, 1
      %p114 = scmp.eq.s32.totalorder %s13, 1
      %p115 = scmp.ne.s32.totalorder %s110, %s112
      %p116 = scmp.eq.s32.totalorder %s13, 0
      %p117 = por %p115, %p116
      %p118 = scmp.ne.s32.totalorder %s110, %s112
      %p119 = scmp.eq.s32.totalorder %s18, 1
      %p120 = por %p118, %p119
      %p121 = scmp.ne.s32.totalorder %s112, %s113
      %p122 = scmp.eq.s32.totalorder %s18, 0
      %p123 = por %p121, %p122
      %p124 = scmp.ne.s32.totalorder %s112, %s113
      %p125 = scmp.eq.s32.totalorder %s19, 1
      %p126 = por %p124, %p125
      %p128 = scmp.ne.s32.totalorder %s113, %s127
      %p129 = scmp.eq.s32.totalorder %s19, 0
      %p130 = por %p128, %p129
      %s132 = sadd.s32 %s131, 1
      %p135 = scmp.eq.s32.totalorder %s13, 1
      %p136 = scmp.ne.s32.totalorder %s131, %s133
      %p137 = scmp.eq.s32.totalorder %s13, 0
      %p138 = por %p136, %p137
      %p139 = scmp.ne.s32.totalorder %s131, %s133
      %p140 = scmp.eq.s32.totalorder %s18, 1
      %p141 = por %p139, %p140
      %p142 = scmp.ne.s32.totalorder %s133, %s134
      %p143 = scmp.eq.s32.totalorder %s18, 0
      %p144 = por %p142, %p143
      %p145 = scmp.ne.s32.totalorder %s133, %s134
      %p146 = scmp.eq.s32.totalorder %s19, 1
      %p147 = por %p145, %p146
      %p149 = scmp.ne.s32.totalorder %s134, %s148
      %p150 = scmp.eq.s32.totalorder %s19, 0
      %p151 = por %p149, %p150
      %s152 = ssub.s32 %s13, %s20
      %p153 = scmp.eq.s32.totalorder %s152, 0
      %s155 = sadd.s32 %s154, 1
      %s156 = scalar_select %p153, %s154, %s155
      %p159 = pneg %p153
      %p160 = scmp.eq.s32.totalorder %s13, 1
      %p161 = por %p159, %p160
      %p162 = scmp.ne.s32.totalorder %s154, %s157
      %p163 = scmp.eq.s32.totalorder %s13, 0
      %p164 = por %p162, %p163
      %p165 = scmp.ne.s32.totalorder %s154, %s157
      %p166 = scmp.eq.s32.totalorder %s18, 1
      %p167 = por %p165, %p166
      %p168 = scmp.ne.s32.totalorder %s157, %s158
      %p169 = scmp.eq.s32.totalorder %s18, 0
      %p170 = por %p168, %p169
      %p171 = scmp.ne.s32.totalorder %s157, %s158
      %p172 = scmp.eq.s32.totalorder %s19, 1
      %p173 = por %p171, %p172
      %p175 = scmp.ne.s32.totalorder %s158, %s174
      %p176 = scmp.eq.s32.totalorder %s19, 0
      %p177 = por %p175, %p176
      %p178 = scmp.le.s32.totalorder 1, %s13
      %p179 = scmp.lt.s32.totalorder %s13, 3
      %p180 = pnand %p178, %p179
      %p181 = pneg %p180
      // Predicated region
      $region9: #{upconv_block_forward.3} parent=5 // pred_check
        _
      $region10: #{upconv_block_forward.3} parent=5 // pred_check_branch
        %183 = sbr.rel (%p180) target = $region12
      $region11: #{upconv_block_forward.3} parent=5 // pred_region
        %s184 = ssub.s32 %s13, 1
        // Predicated region
        $region13: #{upconv_block_forward.3} parent=11 // pred_check
          %p185 = pneg %p60
        $region14: #{upconv_block_forward.3} parent=11 // pred_check_branch
          %187 = sbr.rel (%p185) target = $region16
        $region15: #{upconv_block_forward.3} parent=11 // pred_region
          _
        $region16: #{upconv_block_forward.3} parent=11 // pred_fallthru
          _
        // Predicated region
        $region17: #{upconv_block_forward.3} parent=11 // pred_check
          %p188 = pneg %p81
        $region18: #{upconv_block_forward.3} parent=11 // pred_check_branch
          %190 = sbr.rel (%p188) target = $region20
        $region19: #{upconv_block_forward.3} parent=11 // pred_region
          _
        $region20: #{upconv_block_forward.3} parent=11 // pred_fallthru
          _
        // Predicated region
        $region21: #{upconv_block_forward.3} parent=11 // pred_check
          %p191 = pneg %p102
        $region22: #{upconv_block_forward.3} parent=11 // pred_check_branch
          %193 = sbr.rel (%p191) target = $region24
        $region23: #{upconv_block_forward.3} parent=11 // pred_region
          _
        $region24: #{upconv_block_forward.3} parent=11 // pred_fallthru
          _
        // Predicated region
        $region25: #{upconv_block_forward.3} parent=11 // pred_check
          %p194 = pneg %p123
        $region26: #{upconv_block_forward.3} parent=11 // pred_check_branch
          %196 = sbr.rel (%p194) target = $region28
        $region27: #{upconv_block_forward.3} parent=11 // pred_region
          _
        $region28: #{upconv_block_forward.3} parent=11 // pred_fallthru
          _
        // Predicated region
        $region29: #{upconv_block_forward.3} parent=11 // pred_check
          %p197 = pneg %p144
        $region30: #{upconv_block_forward.3} parent=11 // pred_check_branch
          %199 = sbr.rel (%p197) target = $region32
        $region31: #{upconv_block_forward.3} parent=11 // pred_region
          %201 = vsyncadd [#allocation3], 0
          %s203 = sshll.u32 %s5, 4
          %s204 = int_to_ptr.hbm [resolvable:$true] %s203
          %s205 = sshll.u32 [#allocation2], 4
          %s206 = int_to_ptr.vmem [resolvable:$true] %s205
          %208 = dma.hbm_to_vmem [thread:$0]  %s204, 64, %s206, [#allocation3]
        $region32: #{upconv_block_forward.3} parent=11 // pred_fallthru
          _
      $region12: #{upconv_block_forward.3} parent=5 // pred_fallthru
        _
      %p209 = scmp.lt.s32.totalorder %s13, 2
      // Predicated region
      $region33: #{upconv_block_forward.3} parent=5 // pred_check
        %p210 = pneg %p209
      $region34: #{upconv_block_forward.3} parent=5 // pred_check_branch
        %212 = sbr.rel (%p210) target = $region36
      $region35: #{upconv_block_forward.3} parent=5 // pred_region
        // Predicated region
        $region37: #{upconv_block_forward.3} parent=35 // pred_check
          %p213 = pneg %p33
        $region38: #{upconv_block_forward.3} parent=35 // pred_check_branch
          %215 = sbr.rel (%p213) target = $region40
        $region39: #{upconv_block_forward.3} parent=35 // pred_region
          %p216 = scmp.lt.s32.totalorder %s13, 1
          %s217 = scalar_select %p216, %s13, 1
          %s218 = smul.addr %s217, 2
          %s219 = smul.addr %s218, 4
          %s220 = scalar_lea.vmem %s0, %s219
        $region40: #{upconv_block_forward.3} parent=35 // pred_fallthru
          _
      $region36: #{upconv_block_forward.3} parent=5 // pred_fallthru
        _
      %p221 = scmp.le.s32.totalorder 1, %s13
      %p222 = scmp.lt.s32.totalorder %s13, 3
      %p223 = pnand %p221, %p222
      %p224 = pneg %p223
      // Predicated region
      $region41: #{upconv_block_forward.3} parent=5 // pred_check
        _
      $region42: #{upconv_block_forward.3} parent=5 // pred_check_branch
        %226 = sbr.rel (%p223) target = $region44
      $region43: #{upconv_block_forward.3} parent=5 // pred_region
        %s227 = ssub.s32 %s13, 1
        // Predicated region
        $region45: #{upconv_block_forward.3} parent=43 // pred_check
          %p228 = pneg %p144
        $region46: #{upconv_block_forward.3} parent=43 // pred_check_branch
          %230 = sbr.rel (%p228) target = $region48
        $region47: #{upconv_block_forward.3} parent=43 // pred_region
          %232 = dma.done [#allocation3], 64
        $region48: #{upconv_block_forward.3} parent=43 // pred_fallthru
          _
        %p233 = scmp.lt.s32.totalorder %s18, 1
        %s234 = scalar_select %p233, %s18, 1
        %s235 = smul.addr %s234, 2
        %s236 = smul.addr %s235, 4
        %s237 = scalar_lea.vmem %s0, %s236
        %p238 = pneg %p39
        %p239 = pneg %p36
        %p240 = pneg %p60
        %p241 = pneg %p57
        %p242 = pneg %p81
        %p243 = pneg %p78
        %p244 = pneg %p102
        %p245 = pneg %p99
        %p246 = pneg %p123
        %p247 = pneg %p120
        %p248 = pneg %p144
        %p249 = pneg %p141
        %p250 = pneg %p170
        %p251 = pneg %p167
        %p252 = scmp.lt.s32.totalorder %s18, 1
        %s253 = scalar_select %p252, %s18, 1
        %s254 = smul.addr %s253, 16
        %s255 = smul.addr %s254, 4
        %s256 = scalar_lea.vmem %s6, %s255
        %p257 = scmp.lt.s32.totalorder %s18, 1
        %s258 = scalar_select %p257, %s18, 1
        %s259 = smul.addr %s258, 2
        %s260 = smul.addr %s259, 4
        %s261 = scalar_lea.vmem %s0, %s260
        %p262 = scmp.lt.s32.totalorder %s18, 1
        %s263 = scalar_select %p262, %s18, 1
        %s264 = smul.addr %s263, 16
        %s265 = smul.addr %s264, 4
        %s266 = scalar_lea.vmem %s6, %s265
        %v268 = vld [vmem:[%s261] sm:$0xff]
        %v269 = vld [vmem:[%s1] sm:$0xff]
        %v270 = vld [vmem:[%s1 + $0x8] sm:$0xff]
        %v271 = vld [vmem:[%s2] sm:$0xff]
        %v272 = vld [vmem:[%s2 + $0x8] sm:$0xff]
        %274 = vset.pattern.permute.xlu0 0
        %275 = vperm.xlu0 %274, %v271
        %v276 = vpop.permute.xlu0 %275
        %279 = vset.pattern.permute.xlu0 0
        %280 = vperm.xlu0 %279, %v272
        %v281 = vpop.permute.xlu0 %280
        %284 = vst [vmem:[#allocation1] ss:$2 sm:$0xff] %v268
        %v285 = vld.sshfl [vmem:[#allocation1] sm:$0xff pattern:$0x75316420]
        %v286 = vld.sshfl [vmem:[#allocation1 + $0x8] sm:$0xff pattern:$0x75316420]
        %vm287 = vcmask 31744
        %v289 = vsel %vm287, %v269, 0
        %v292 = vsel %vm287, %v270, 0
        %vm294 = vcmask 1043456
        %v295 = vsel %vm294, %v285, 0
        %v297 = vsel %vm294, %v286, 0
        %299 = vmatpush.msra.mxu0 0.0
        %300 = vmatpush.msra.mxu0 0.0
        %301 = vmatpush.msra.mxu0 0.0
        %302 = vmatpush.msra.mxu0 0.0
        %303 = vmatpush.msra.mxu0 0.0
        %304 = vmatpush.msra.mxu0 0.0
        %305 = vmatpush.msra.mxu0 0.0
        %306 = vmatpush.msra.mxu0 0.0
        %307 = vmatpush.msra.mxu0 0.0
        %308 = vmatpush.msra.mxu0 0.0
        %309 = vmatpush.msra.mxu0 0.0
        %310 = vmatpush.msra.mxu0 0.0
        %311 = vmatpush.msra.mxu0 0.0
        %312 = vmatpush.msra.mxu0 0.0
        %313 = vmatpush.msra.mxu0 0.0
        %314 = vmatpush.msra.mxu0 %v295
        %315 = vmatmul.f32.gmra.mxu0 %v289
        %v316 = vpop.f32.mrf.mxu0
        %v317 = vadd.f32 %v276, %v316
        %318 = vmatmul.f32.gmra.mxu0 %v292
        %v319 = vpop.f32.mrf.mxu0
        %v320 = vadd.f32 %v281, %v319
        %321 = vdwg.mxu0
        %322 = vmatpush.msra.mxu0 0.0
        %323 = vmatpush.msra.mxu0 0.0
        %324 = vmatpush.msra.mxu0 0.0
        %325 = vmatpush.msra.mxu0 0.0
        %326 = vmatpush.msra.mxu0 0.0
        %327 = vmatpush.msra.mxu0 0.0
        %328 = vmatpush.msra.mxu0 0.0
        %329 = vmatpush.msra.mxu0 0.0
        %330 = vmatpush.msra.mxu0 0.0
        %331 = vmatpush.msra.mxu0 0.0
        %332 = vmatpush.msra.mxu0 0.0
        %333 = vmatpush.msra.mxu0 0.0
        %334 = vmatpush.msra.mxu0 0.0
        %335 = vmatpush.msra.mxu0 0.0
        %336 = vmatpush.msra.mxu0 0.0
        %337 = vmatpush.msra.mxu0 %v297
        %338 = vmatmul.f32.gmra.mxu0 %v289
        %v339 = vpop.f32.mrf.mxu0
        %v340 = vadd.f32 %v276, %v339
        %341 = vmatmul.f32.gmra.mxu0 %v292
        %v342 = vpop.f32.mrf.mxu0
        %v343 = vadd.f32 %v281, %v342
        %344 = vdwg.mxu0
        %v345 = vmax.f32 %v317, 0.0
        %v346 = vmax.f32 %v340, 0.0
        %v347 = vmax.f32 %v320, 0.0
        %v348 = vmax.f32 %v343, 0.0
        %v349 = vpack.c.bf16 %v346, %v345
        %v350 = vpack.c.bf16 %v348, %v347
        %v353 = vunpack.c.l.b16 %v349
        %v354 = vunpack.c.h.b16 %v349
        %v355 = vunpack.c.l.b16 %v350
        %v356 = vunpack.c.h.b16 %v350
        %v357 = vpack.c.b16 %v355, %v353
        %v358 = vpack.c.b16 %v356, %v354
        %359 = vrot.lane.b32.xlu0 %v357, 17
        %v360 = vpop.permute.xlu0 %359
        %361 = vrot.lane.b32.xlu0 %v358, 17
        %v362 = vpop.permute.xlu0 %361
        %vm363 = vcmask 138240
        %v364 = vsel %vm363, %v360, %v362
        %vm366 = vcmask 138240
        %v369 = vsel %vm366, 0, %v360
        %v372 = vsel %vm366, %v362, 0
        %v374 = vld [vmem:[#allocation2] sm:$0xf]
        %v375 = vld [vmem:[%s4] sm:$0xff]
        %v376 = vld [vmem:[%s4 + $0x8] sm:$0xff]
        %v377 = vld [vmem:[%s3] sm:$0xf]
        %v378 = vld [vmem:[%s3 + $0x4] sm:$0xf]
        %380 = vst [vmem:[#allocation1] ss:$4 sm:$0xff] %v374
        %v381 = vld.sshfl [vmem:[#allocation1] sm:$0xff pattern:$0x73625140]
        %v382 = vld.sshfl [vmem:[#allocation1 + $0x8] sm:$0xff pattern:$0x73625140]
        %v383 = vpack.i.b16 %v381, %v381
        %v385 = vperm.slane %v383, 1
        %v386 = vpack.i.b16 %v382, %v382
        %v388 = vperm.slane %v386, 1
        %v389 = vunpack.c.l.bf16 %v369
        %v390 = vunpack.c.l.bf16 %v364
        %v391 = vunpack.c.l.bf16 %v372
        %v392 = vunpack.c.h.bf16 %v369
        %v393 = vunpack.c.h.bf16 %v364
        %v394 = vunpack.c.h.bf16 %v372
        %v395 = vunpack.c.l.bf16 %v385
        %v396 = vunpack.c.l.bf16 %v388
        %399 = vrot.lane.b32.xlu0 %v395, 16
        %v400 = vpop.permute.xlu0 %399
        %401 = vrot.lane.b32.xlu0 %v396, 16
        %v402 = vpop.permute.xlu0 %401
        %vm403 = vcmask 130048
        %v404 = vsel %vm403, %v400, %v402
        %v408 = vmul.f32 %v389, %v400
        %v409 = vmul.f32 %v390, %v404
        %v410 = vmul.f32 %v391, %v402
        %v411 = vmul.f32 %v392, %v400
        %v412 = vmul.f32 %v393, %v404
        %v413 = vmul.f32 %v394, %v402
        %v414 = vpack.c.bf16 %v411, %v408
        %v415 = vpack.c.bf16 %v412, %v409
        %v416 = vpack.c.bf16 %v413, %v410
        %s417 = scalar_lea.vmem %s3, 8
        %v418 = vld [vmem:[%s417] sm:$0xf]
        %v419 = vld [vmem:[%s417 + $0x4] sm:$0xf]
        %v422 = vunpack.c.l.b16 %v418
        %v423 = vunpack.c.l.b16 %v419
        %v424 = vpack.c.b16 %v423, %v422
        %428 = vrot.lane.b32.xlu0 %v414, 112
        %v429 = vpop.permute.xlu0 %428
        %430 = vrot.lane.b32.xlu0 %v415, 112
        %v431 = vpop.permute.xlu0 %430
        %432 = vrot.lane.b32.xlu0 %v416, 112
        %v433 = vpop.permute.xlu0 %432
        %vm434 = vcmask 916480
        %v435 = vsel %vm434, %v429, %v431
        %v436 = vsel %vm434, %v431, %v433
        %v440 = vsel %vm403, %v424, 0
        %442 = vmatpush.bf16.msra.mxu0 0
        %443 = vmatpush.bf16.msra.mxu0 0
        %444 = vmatpush.bf16.msra.mxu0 0
        %445 = vmatpush.bf16.msra.mxu0 0
        %446 = vmatpush.bf16.msra.mxu0 0
        %447 = vmatpush.bf16.msra.mxu0 0
        %448 = vmatpush.bf16.msra.mxu0 0
        %449 = vmatpush.bf16.msra.mxu0 %v435
        %450 = vmatmul.bf16.gmra.mxu0 %v440
        %v451 = vpop.f32.mrf.mxu0
        %v452 = vadd.f32 0.0, %v451
        %v453 = vpop.f32.mrf.mxu0
        %v454 = vadd.f32 0.0, %v453
        %455 = vdwg.mxu0
        %456 = vmatpush.bf16.msra.mxu0 0
        %457 = vmatpush.bf16.msra.mxu0 0
        %458 = vmatpush.bf16.msra.mxu0 0
        %459 = vmatpush.bf16.msra.mxu0 0
        %460 = vmatpush.bf16.msra.mxu0 0
        %461 = vmatpush.bf16.msra.mxu0 0
        %462 = vmatpush.bf16.msra.mxu0 0
        %463 = vmatpush.bf16.msra.mxu0 %v436
        %464 = vmatmul.bf16.gmra.mxu0 %v440
        %v465 = vpop.f32.mrf.mxu0
        %v466 = vadd.f32 0.0, %v465
        %v467 = vpop.f32.mrf.mxu0
        %v468 = vadd.f32 0.0, %v467
        %469 = vdwg.mxu0
        %v472 = vunpack.c.l.b16 %v377
        %v473 = vunpack.c.l.b16 %v378
        %v474 = vpack.c.b16 %v473, %v472
        %477 = vrot.lane.b32.xlu0 %v369, 111
        %v478 = vpop.permute.xlu0 %477
        %479 = vrot.lane.b32.xlu0 %v364, 111
        %v480 = vpop.permute.xlu0 %479
        %481 = vrot.lane.b32.xlu0 %v372, 111
        %v482 = vpop.permute.xlu0 %481
        %vm483 = vcmask 908288
        %v484 = vsel %vm483, %v478, %v480
        %v485 = vsel %vm483, %v480, %v482
        %v489 = vsel %vm403, %v474, 0
        %491 = vmatpush.bf16.msra.mxu0 0
        %492 = vmatpush.bf16.msra.mxu0 0
        %493 = vmatpush.bf16.msra.mxu0 0
        %494 = vmatpush.bf16.msra.mxu0 0
        %495 = vmatpush.bf16.msra.mxu0 0
        %496 = vmatpush.bf16.msra.mxu0 0
        %497 = vmatpush.bf16.msra.mxu0 0
        %498 = vmatpush.bf16.msra.mxu0 %v484
        %499 = vmatmul.bf16.gmra.mxu0 %v489
        %v500 = vpop.f32.mrf.mxu0
        %v501 = vadd.f32 %v452, %v500
        %v502 = vpop.f32.mrf.mxu0
        %v503 = vadd.f32 %v454, %v502
        %504 = vdwg.mxu0
        %505 = vmatpush.bf16.msra.mxu0 0
        %506 = vmatpush.bf16.msra.mxu0 0
        %507 = vmatpush.bf16.msra.mxu0 0
        %508 = vmatpush.bf16.msra.mxu0 0
        %509 = vmatpush.bf16.msra.mxu0 0
        %510 = vmatpush.bf16.msra.mxu0 0
        %511 = vmatpush.bf16.msra.mxu0 0
        %512 = vmatpush.bf16.msra.mxu0 %v485
        %513 = vmatmul.bf16.gmra.mxu0 %v489
        %v514 = vpop.f32.mrf.mxu0
        %v515 = vadd.f32 %v466, %v514
        %v516 = vpop.f32.mrf.mxu0
        %v517 = vadd.f32 %v468, %v516
        %518 = vdwg.mxu0
        %s519 = scalar_lea.vmem %s3, 16
        %v520 = vld [vmem:[%s519] sm:$0xf]
        %v521 = vld [vmem:[%s519 + $0x4] sm:$0xf]
        %v524 = vunpack.c.l.b16 %v520
        %v525 = vunpack.c.l.b16 %v521
        %v526 = vpack.c.b16 %v525, %v524
        %527 = vrot.lane.b32.xlu0 %v369, 127
        %v528 = vpop.permute.xlu0 %527
        %529 = vrot.lane.b32.xlu0 %v364, 127
        %v530 = vpop.permute.xlu0 %529
        %531 = vrot.lane.b32.xlu0 %v372, 127
        %v532 = vpop.permute.xlu0 %531
        %vm533 = vcmask 1039360
        %v534 = vsel %vm533, %v528, %v530
        %v535 = vsel %vm533, %v530, %v532
        %v539 = vsel %vm403, %v526, 0
        %541 = vmatpush.bf16.msra.mxu0 0
        %542 = vmatpush.bf16.msra.mxu0 0
        %543 = vmatpush.bf16.msra.mxu0 0
        %544 = vmatpush.bf16.msra.mxu0 0
        %545 = vmatpush.bf16.msra.mxu0 0
        %546 = vmatpush.bf16.msra.mxu0 0
        %547 = vmatpush.bf16.msra.mxu0 0
        %548 = vmatpush.bf16.msra.mxu0 %v534
        %549 = vmatmul.bf16.gmra.mxu0 %v539
        %v550 = vpop.f32.mrf.mxu0
        %v551 = vadd.f32 0.0, %v550
        %v552 = vpop.f32.mrf.mxu0
        %v553 = vadd.f32 0.0, %v552
        %554 = vdwg.mxu0
        %555 = vmatpush.bf16.msra.mxu0 0
        %556 = vmatpush.bf16.msra.mxu0 0
        %557 = vmatpush.bf16.msra.mxu0 0
        %558 = vmatpush.bf16.msra.mxu0 0
        %559 = vmatpush.bf16.msra.mxu0 0
        %560 = vmatpush.bf16.msra.mxu0 0
        %561 = vmatpush.bf16.msra.mxu0 0
        %562 = vmatpush.bf16.msra.mxu0 %v535
        %563 = vmatmul.bf16.gmra.mxu0 %v539
        %v564 = vpop.f32.mrf.mxu0
        %v565 = vadd.f32 0.0, %v564
        %v566 = vpop.f32.mrf.mxu0
        %v567 = vadd.f32 0.0, %v566
        %568 = vdwg.mxu0
        %v569 = vadd.f32 %v501, %v551
        %v570 = vadd.f32 %v515, %v565
        %v571 = vadd.f32 %v503, %v553
        %v572 = vadd.f32 %v517, %v567
        %v573 = vmul.f32 %v389, %v395
        %v574 = vmul.f32 %v390, %v396
        %v575 = vmul.f32 %v392, %v395
        %v576 = vmul.f32 %v393, %v396
        %v577 = vpack.c.bf16 %v575, %v573
        %v578 = vpack.c.bf16 %v576, %v574
        %s579 = scalar_lea.vmem %s3, 24
        %v580 = vld [vmem:[%s579] sm:$0xf]
        %v581 = vld [vmem:[%s579 + $0x4] sm:$0xf]
        %v584 = vunpack.c.l.b16 %v580
        %v585 = vunpack.c.l.b16 %v581
        %v586 = vpack.c.b16 %v585, %v584
        %v588 = vsel %vm403, %v586, 0
        %590 = vmatpush.bf16.msra.mxu0 0
        %591 = vmatpush.bf16.msra.mxu0 0
        %592 = vmatpush.bf16.msra.mxu0 0
        %593 = vmatpush.bf16.msra.mxu0 0
        %594 = vmatpush.bf16.msra.mxu0 0
        %595 = vmatpush.bf16.msra.mxu0 0
        %596 = vmatpush.bf16.msra.mxu0 0
        %597 = vmatpush.bf16.msra.mxu0 %v577
        %598 = vmatmul.bf16.gmra.mxu0 %v588
        %v599 = vpop.f32.mrf.mxu0
        %v600 = vadd.f32 0.0, %v599
        %v601 = vpop.f32.mrf.mxu0
        %v602 = vadd.f32 0.0, %v601
        %603 = vdwg.mxu0
        %604 = vmatpush.bf16.msra.mxu0 0
        %605 = vmatpush.bf16.msra.mxu0 0
        %606 = vmatpush.bf16.msra.mxu0 0
        %607 = vmatpush.bf16.msra.mxu0 0
        %608 = vmatpush.bf16.msra.mxu0 0
        %609 = vmatpush.bf16.msra.mxu0 0
        %610 = vmatpush.bf16.msra.mxu0 0
        %611 = vmatpush.bf16.msra.mxu0 %v578
        %612 = vmatmul.bf16.gmra.mxu0 %v588
        %v613 = vpop.f32.mrf.mxu0
        %v614 = vadd.f32 0.0, %v613
        %v615 = vpop.f32.mrf.mxu0
        %v616 = vadd.f32 0.0, %v615
        %617 = vdwg.mxu0
        %v618 = vadd.f32 %v569, %v600
        %v619 = vadd.f32 %v570, %v614
        %v620 = vadd.f32 %v571, %v602
        %v621 = vadd.f32 %v572, %v616
        %622 = vst [vmem:[#allocation1] ss:$4 sm:$0xff] %v374
        %v623 = vld.sshfl [vmem:[#allocation1] sm:$0xff pattern:$0x73625140]
        %v624 = vld.sshfl [vmem:[#allocation1 + $0x8] sm:$0xff pattern:$0x73625140]
        %v625 = vpack.i.b16 %v623, %v623
        %v627 = vperm.slane %v625, 0
        %v628 = vpack.i.b16 %v624, %v624
        %v630 = vperm.slane %v628, 0
        %v631 = vunpack.c.l.bf16 %v627
        %v632 = vunpack.c.l.bf16 %v630
        %635 = vrot.lane.b32.xlu0 %v631, 18
        %v636 = vpop.permute.xlu0 %635
        %637 = vrot.lane.b32.xlu0 %v632, 18
        %v638 = vpop.permute.xlu0 %637
        %vm639 = vcmask 146432
        %v640 = vsel %vm639, %v636, %v638
        %v644 = vmul.f32 %v389, %v636
        %v645 = vmul.f32 %v390, %v640
        %v646 = vmul.f32 %v391, %v638
        %v647 = vmul.f32 %v392, %v636
        %v648 = vmul.f32 %v393, %v640
        %v649 = vmul.f32 %v394, %v638
        %v650 = vpack.c.bf16 %v647, %v644
        %v651 = vpack.c.bf16 %v648, %v645
        %v652 = vpack.c.bf16 %v649, %v646
        %s653 = scalar_lea.vmem %s3, 32
        %v654 = vld [vmem:[%s653] sm:$0xf]
        %v655 = vld [vmem:[%s653 + $0x4] sm:$0xf]
        %s656 = scalar_lea.vmem %s3, 40
        %v657 = vld [vmem:[%s656] sm:$0xf]
        %v658 = vld [vmem:[%s656 + $0x4] sm:$0xf]
        %v661 = vunpack.c.l.b16 %v657
        %v662 = vunpack.c.l.b16 %v658
        %v663 = vpack.c.b16 %v662, %v661
        %v665 = vsel %vm403, %v663, 0
        %667 = vmatpush.bf16.msra.mxu0 0
        %668 = vmatpush.bf16.msra.mxu0 0
        %669 = vmatpush.bf16.msra.mxu0 0
        %670 = vmatpush.bf16.msra.mxu0 0
        %671 = vmatpush.bf16.msra.mxu0 0
        %672 = vmatpush.bf16.msra.mxu0 0
        %673 = vmatpush.bf16.msra.mxu0 0
        %674 = vmatpush.bf16.msra.mxu0 %v484
        %675 = vmatmul.bf16.gmra.mxu0 %v665
        %v676 = vpop.f32.mrf.mxu0
        %v677 = vadd.f32 0.0, %v676
        %v678 = vpop.f32.mrf.mxu0
        %v679 = vadd.f32 0.0, %v678
        %680 = vdwg.mxu0
        %681 = vmatpush.bf16.msra.mxu0 0
        %682 = vmatpush.bf16.msra.mxu0 0
        %683 = vmatpush.bf16.msra.mxu0 0
        %684 = vmatpush.bf16.msra.mxu0 0
        %685 = vmatpush.bf16.msra.mxu0 0
        %686 = vmatpush.bf16.msra.mxu0 0
        %687 = vmatpush.bf16.msra.mxu0 0
        %688 = vmatpush.bf16.msra.mxu0 %v485
        %689 = vmatmul.bf16.gmra.mxu0 %v665
        %v690 = vpop.f32.mrf.mxu0
        %v691 = vadd.f32 0.0, %v690
        %v692 = vpop.f32.mrf.mxu0
        %v693 = vadd.f32 0.0, %v692
        %694 = vdwg.mxu0
        %v697 = vunpack.c.l.b16 %v654
        %v698 = vunpack.c.l.b16 %v655
        %v699 = vpack.c.b16 %v698, %v697
        %703 = vrot.lane.b32.xlu0 %v650, 110
        %v704 = vpop.permute.xlu0 %703
        %705 = vrot.lane.b32.xlu0 %v651, 110
        %v706 = vpop.permute.xlu0 %705
        %707 = vrot.lane.b32.xlu0 %v652, 110
        %v708 = vpop.permute.xlu0 %707
        %vm709 = vcmask 900096
        %v710 = vsel %vm709, %v704, %v706
        %v711 = vsel %vm709, %v706, %v708
        %v715 = vsel %vm403, %v699, 0
        %717 = vmatpush.bf16.msra.mxu0 0
        %718 = vmatpush.bf16.msra.mxu0 0
        %719 = vmatpush.bf16.msra.mxu0 0
        %720 = vmatpush.bf16.msra.mxu0 0
        %721 = vmatpush.bf16.msra.mxu0 0
        %722 = vmatpush.bf16.msra.mxu0 0
        %723 = vmatpush.bf16.msra.mxu0 0
        %724 = vmatpush.bf16.msra.mxu0 %v710
        %725 = vmatmul.bf16.gmra.mxu0 %v715
        %v726 = vpop.f32.mrf.mxu0
        %v727 = vadd.f32 %v677, %v726
        %v728 = vpop.f32.mrf.mxu0
        %v729 = vadd.f32 %v679, %v728
        %730 = vdwg.mxu0
        %731 = vmatpush.bf16.msra.mxu0 0
        %732 = vmatpush.bf16.msra.mxu0 0
        %733 = vmatpush.bf16.msra.mxu0 0
        %734 = vmatpush.bf16.msra.mxu0 0
        %735 = vmatpush.bf16.msra.mxu0 0
        %736 = vmatpush.bf16.msra.mxu0 0
        %737 = vmatpush.bf16.msra.mxu0 0
        %738 = vmatpush.bf16.msra.mxu0 %v711
        %739 = vmatmul.bf16.gmra.mxu0 %v715
        %v740 = vpop.f32.mrf.mxu0
        %v741 = vadd.f32 %v691, %v740
        %v742 = vpop.f32.mrf.mxu0
        %v743 = vadd.f32 %v693, %v742
        %744 = vdwg.mxu0
        %745 = vrot.lane.b32.xlu0 %v631, 2
        %v746 = vpop.permute.xlu0 %745
        %747 = vrot.lane.b32.xlu0 %v632, 2
        %v748 = vpop.permute.xlu0 %747
        %vm749 = vcmask 15360
        %v750 = vsel %vm749, %v746, %v748
        %v754 = vmul.f32 %v389, %v746
        %v755 = vmul.f32 %v390, %v750
        %v756 = vmul.f32 %v391, %v748
        %v757 = vmul.f32 %v392, %v746
        %v758 = vmul.f32 %v393, %v750
        %v759 = vmul.f32 %v394, %v748
        %v760 = vpack.c.bf16 %v757, %v754
        %v761 = vpack.c.bf16 %v758, %v755
        %v762 = vpack.c.bf16 %v759, %v756
        %s763 = scalar_lea.vmem %s3, 48
        %v764 = vld [vmem:[%s763] sm:$0xf]
        %v765 = vld [vmem:[%s763 + $0x4] sm:$0xf]
        %v768 = vunpack.c.l.b16 %v764
        %v769 = vunpack.c.l.b16 %v765
        %v770 = vpack.c.b16 %v769, %v768
        %774 = vrot.lane.b32.xlu0 %v760, 126
        %v775 = vpop.permute.xlu0 %774
        %776 = vrot.lane.b32.xlu0 %v761, 126
        %v777 = vpop.permute.xlu0 %776
        %778 = vrot.lane.b32.xlu0 %v762, 126
        %v779 = vpop.permute.xlu0 %778
        %vm780 = vcmask 1031168
        %v781 = vsel %vm780, %v775, %v777
        %v782 = vsel %vm780, %v777, %v779
        %v786 = vsel %vm403, %v770, 0
        %788 = vmatpush.bf16.msra.mxu0 0
        %789 = vmatpush.bf16.msra.mxu0 0
        %790 = vmatpush.bf16.msra.mxu0 0
        %791 = vmatpush.bf16.msra.mxu0 0
        %792 = vmatpush.bf16.msra.mxu0 0
        %793 = vmatpush.bf16.msra.mxu0 0
        %794 = vmatpush.bf16.msra.mxu0 0
        %795 = vmatpush.bf16.msra.mxu0 %v781
        %796 = vmatmul.bf16.gmra.mxu0 %v786
        %v797 = vpop.f32.mrf.mxu0
        %v798 = vadd.f32 0.0, %v797
        %v799 = vpop.f32.mrf.mxu0
        %v800 = vadd.f32 0.0, %v799
        %801 = vdwg.mxu0
        %802 = vmatpush.bf16.msra.mxu0 0
        %803 = vmatpush.bf16.msra.mxu0 0
        %804 = vmatpush.bf16.msra.mxu0 0
        %805 = vmatpush.bf16.msra.mxu0 0
        %806 = vmatpush.bf16.msra.mxu0 0
        %807 = vmatpush.bf16.msra.mxu0 0
        %808 = vmatpush.bf16.msra.mxu0 0
        %809 = vmatpush.bf16.msra.mxu0 %v782
        %810 = vmatmul.bf16.gmra.mxu0 %v786
        %v811 = vpop.f32.mrf.mxu0
        %v812 = vadd.f32 0.0, %v811
        %v813 = vpop.f32.mrf.mxu0
        %v814 = vadd.f32 0.0, %v813
        %815 = vdwg.mxu0
        %v816 = vadd.f32 %v727, %v798
        %v817 = vadd.f32 %v741, %v812
        %v818 = vadd.f32 %v729, %v800
        %v819 = vadd.f32 %v743, %v814
        %s820 = scalar_lea.vmem %s3, 56
        %v821 = vld [vmem:[%s820] sm:$0xf]
        %v822 = vld [vmem:[%s820 + $0x4] sm:$0xf]
        %v825 = vunpack.c.l.b16 %v821
        %v826 = vunpack.c.l.b16 %v822
        %v827 = vpack.c.b16 %v826, %v825
        %v829 = vsel %vm403, %v827, 0
        %831 = vmatpush.bf16.msra.mxu0 0
        %832 = vmatpush.bf16.msra.mxu0 0
        %833 = vmatpush.bf16.msra.mxu0 0
        %834 = vmatpush.bf16.msra.mxu0 0
        %835 = vmatpush.bf16.msra.mxu0 0
        %836 = vmatpush.bf16.msra.mxu0 0
        %837 = vmatpush.bf16.msra.mxu0 0
        %838 = vmatpush.bf16.msra.mxu0 %v534
        %839 = vmatmul.bf16.gmra.mxu0 %v829
        %v840 = vpop.f32.mrf.mxu0
        %v841 = vadd.f32 0.0, %v840
        %v842 = vpop.f32.mrf.mxu0
        %v843 = vadd.f32 0.0, %v842
        %844 = vdwg.mxu0
        %845 = vmatpush.bf16.msra.mxu0 0
        %846 = vmatpush.bf16.msra.mxu0 0
        %847 = vmatpush.bf16.msra.mxu0 0
        %848 = vmatpush.bf16.msra.mxu0 0
        %849 = vmatpush.bf16.msra.mxu0 0
        %850 = vmatpush.bf16.msra.mxu0 0
        %851 = vmatpush.bf16.msra.mxu0 0
        %852 = vmatpush.bf16.msra.mxu0 %v535
        %853 = vmatmul.bf16.gmra.mxu0 %v829
        %v854 = vpop.f32.mrf.mxu0
        %v855 = vadd.f32 0.0, %v854
        %v856 = vpop.f32.mrf.mxu0
        %v857 = vadd.f32 0.0, %v856
        %858 = vdwg.mxu0
        %v859 = vadd.f32 %v816, %v841
        %v860 = vadd.f32 %v817, %v855
        %v861 = vadd.f32 %v818, %v843
        %v862 = vadd.f32 %v819, %v857
        %s863 = scalar_lea.vmem %s3, 64
        %v864 = vld [vmem:[%s863] sm:$0xf]
        %v865 = vld [vmem:[%s863 + $0x4] sm:$0xf]
        %866 = vrot.lane.b32.xlu0 %v395, 32
        %v867 = vpop.permute.xlu0 %866
        %868 = vrot.lane.b32.xlu0 %v396, 32
        %v869 = vpop.permute.xlu0 %868
        %vm870 = vcmask 261120
        %v871 = vsel %vm870, %v867, %v869
        %v875 = vmul.f32 %v389, %v867
        %v876 = vmul.f32 %v390, %v871
        %v877 = vmul.f32 %v391, %v869
        %v878 = vmul.f32 %v392, %v867
        %v879 = vmul.f32 %v393, %v871
        %v880 = vmul.f32 %v394, %v869
        %v881 = vpack.c.bf16 %v878, %v875
        %v882 = vpack.c.bf16 %v879, %v876
        %v883 = vpack.c.bf16 %v880, %v877
        %s884 = scalar_lea.vmem %s3, 72
        %v885 = vld [vmem:[%s884] sm:$0xf]
        %v886 = vld [vmem:[%s884 + $0x4] sm:$0xf]
        %v889 = vunpack.c.l.b16 %v885
        %v890 = vunpack.c.l.b16 %v886
        %v891 = vpack.c.b16 %v890, %v889
        %895 = vrot.lane.b32.xlu0 %v881, 96
        %v896 = vpop.permute.xlu0 %895
        %897 = vrot.lane.b32.xlu0 %v882, 96
        %v898 = vpop.permute.xlu0 %897
        %899 = vrot.lane.b32.xlu0 %v883, 96
        %v900 = vpop.permute.xlu0 %899
        %vm901 = vcmask 785408
        %v902 = vsel %vm901, %v896, %v898
        %v903 = vsel %vm901, %v898, %v900
        %v907 = vsel %vm403, %v891, 0
        %909 = vmatpush.bf16.msra.mxu0 0
        %910 = vmatpush.bf16.msra.mxu0 0
        %911 = vmatpush.bf16.msra.mxu0 0
        %912 = vmatpush.bf16.msra.mxu0 0
        %913 = vmatpush.bf16.msra.mxu0 0
        %914 = vmatpush.bf16.msra.mxu0 0
        %915 = vmatpush.bf16.msra.mxu0 0
        %916 = vmatpush.bf16.msra.mxu0 %v902
        %917 = vmatmul.bf16.gmra.mxu0 %v907
        %v918 = vpop.f32.mrf.mxu0
        %v919 = vadd.f32 0.0, %v918
        %v920 = vpop.f32.mrf.mxu0
        %v921 = vadd.f32 0.0, %v920
        %922 = vdwg.mxu0
        %923 = vmatpush.bf16.msra.mxu0 0
        %924 = vmatpush.bf16.msra.mxu0 0
        %925 = vmatpush.bf16.msra.mxu0 0
        %926 = vmatpush.bf16.msra.mxu0 0
        %927 = vmatpush.bf16.msra.mxu0 0
        %928 = vmatpush.bf16.msra.mxu0 0
        %929 = vmatpush.bf16.msra.mxu0 0
        %930 = vmatpush.bf16.msra.mxu0 %v903
        %931 = vmatmul.bf16.gmra.mxu0 %v907
        %v932 = vpop.f32.mrf.mxu0
        %v933 = vadd.f32 0.0, %v932
        %v934 = vpop.f32.mrf.mxu0
        %v935 = vadd.f32 0.0, %v934
        %936 = vdwg.mxu0
        %v939 = vunpack.c.l.b16 %v864
        %v940 = vunpack.c.l.b16 %v865
        %v941 = vpack.c.b16 %v940, %v939
        %942 = vrot.lane.b32.xlu0 %v369, 95
        %v943 = vpop.permute.xlu0 %942
        %944 = vrot.lane.b32.xlu0 %v364, 95
        %v945 = vpop.permute.xlu0 %944
        %946 = vrot.lane.b32.xlu0 %v372, 95
        %v947 = vpop.permute.xlu0 %946
        %vm948 = vcmask 777216
        %v949 = vsel %vm948, %v943, %v945
        %v950 = vsel %vm948, %v945, %v947
        %v954 = vsel %vm403, %v941, 0
        %956 = vmatpush.bf16.msra.mxu0 0
        %957 = vmatpush.bf16.msra.mxu0 0
        %958 = vmatpush.bf16.msra.mxu0 0
        %959 = vmatpush.bf16.msra.mxu0 0
        %960 = vmatpush.bf16.msra.mxu0 0
        %961 = vmatpush.bf16.msra.mxu0 0
        %962 = vmatpush.bf16.msra.mxu0 0
        %963 = vmatpush.bf16.msra.mxu0 %v949
        %964 = vmatmul.bf16.gmra.mxu0 %v954
        %v965 = vpop.f32.mrf.mxu0
        %v966 = vadd.f32 %v919, %v965
        %v967 = vpop.f32.mrf.mxu0
        %v968 = vadd.f32 %v921, %v967
        %969 = vdwg.mxu0
        %970 = vmatpush.bf16.msra.mxu0 0
        %971 = vmatpush.bf16.msra.mxu0 0
        %972 = vmatpush.bf16.msra.mxu0 0
        %973 = vmatpush.bf16.msra.mxu0 0
        %974 = vmatpush.bf16.msra.mxu0 0
        %975 = vmatpush.bf16.msra.mxu0 0
        %976 = vmatpush.bf16.msra.mxu0 0
        %977 = vmatpush.bf16.msra.mxu0 %v950
        %978 = vmatmul.bf16.gmra.mxu0 %v954
        %v979 = vpop.f32.mrf.mxu0
        %v980 = vadd.f32 %v933, %v979
        %v981 = vpop.f32.mrf.mxu0
        %v982 = vadd.f32 %v935, %v981
        %983 = vdwg.mxu0
        %s984 = scalar_lea.vmem %s3, 80
        %v985 = vld [vmem:[%s984] sm:$0xf]
        %v986 = vld [vmem:[%s984 + $0x4] sm:$0xf]
        %v989 = vunpack.c.l.b16 %v985
        %v990 = vunpack.c.l.b16 %v986
        %v991 = vpack.c.b16 %v990, %v989
        %v993 = vsel %vm403, %v991, 0
        %995 = vmatpush.bf16.msra.mxu0 0
        %996 = vmatpush.bf16.msra.mxu0 0
        %997 = vmatpush.bf16.msra.mxu0 0
        %998 = vmatpush.bf16.msra.mxu0 0
        %999 = vmatpush.bf16.msra.mxu0 0
        %1000 = vmatpush.bf16.msra.mxu0 0
        %1001 = vmatpush.bf16.msra.mxu0 0
        %1002 = vmatpush.bf16.msra.mxu0 %v484
        %1003 = vmatmul.bf16.gmra.mxu0 %v993
        %v1004 = vpop.f32.mrf.mxu0
        %v1005 = vadd.f32 0.0, %v1004
        %v1006 = vpop.f32.mrf.mxu0
        %v1007 = vadd.f32 0.0, %v1006
        %1008 = vdwg.mxu0
        %1009 = vmatpush.bf16.msra.mxu0 0
        %1010 = vmatpush.bf16.msra.mxu0 0
        %1011 = vmatpush.bf16.msra.mxu0 0
        %1012 = vmatpush.bf16.msra.mxu0 0
        %1013 = vmatpush.bf16.msra.mxu0 0
        %1014 = vmatpush.bf16.msra.mxu0 0
        %1015 = vmatpush.bf16.msra.mxu0 0
        %1016 = vmatpush.bf16.msra.mxu0 %v485
        %1017 = vmatmul.bf16.gmra.mxu0 %v993
        %v1018 = vpop.f32.mrf.mxu0
        %v1019 = vadd.f32 0.0, %v1018
        %v1020 = vpop.f32.mrf.mxu0
        %v1021 = vadd.f32 0.0, %v1020
        %1022 = vdwg.mxu0
        %v1023 = vadd.f32 %v966, %v1005
        %v1024 = vadd.f32 %v980, %v1019
        %v1025 = vadd.f32 %v968, %v1007
        %v1026 = vadd.f32 %v982, %v1021
        %s1027 = scalar_lea.vmem %s3, 88
        %v1028 = vld [vmem:[%s1027] sm:$0xf]
        %v1029 = vld [vmem:[%s1027 + $0x4] sm:$0xf]
        %v1032 = vunpack.c.l.b16 %v1028
        %v1033 = vunpack.c.l.b16 %v1029
        %v1034 = vpack.c.b16 %v1033, %v1032
        %v1036 = vsel %vm403, %v1034, 0
        %1038 = vmatpush.bf16.msra.mxu0 0
        %1039 = vmatpush.bf16.msra.mxu0 0
        %1040 = vmatpush.bf16.msra.mxu0 0
        %1041 = vmatpush.bf16.msra.mxu0 0
        %1042 = vmatpush.bf16.msra.mxu0 0
        %1043 = vmatpush.bf16.msra.mxu0 0
        %1044 = vmatpush.bf16.msra.mxu0 0
        %1045 = vmatpush.bf16.msra.mxu0 %v435
        %1046 = vmatmul.bf16.gmra.mxu0 %v1036
        %v1047 = vpop.f32.mrf.mxu0
        %v1048 = vadd.f32 0.0, %v1047
        %v1049 = vpop.f32.mrf.mxu0
        %v1050 = vadd.f32 0.0, %v1049
        %1051 = vdwg.mxu0
        %1052 = vmatpush.bf16.msra.mxu0 0
        %1053 = vmatpush.bf16.msra.mxu0 0
        %1054 = vmatpush.bf16.msra.mxu0 0
        %1055 = vmatpush.bf16.msra.mxu0 0
        %1056 = vmatpush.bf16.msra.mxu0 0
        %1057 = vmatpush.bf16.msra.mxu0 0
        %1058 = vmatpush.bf16.msra.mxu0 0
        %1059 = vmatpush.bf16.msra.mxu0 %v436
        %1060 = vmatmul.bf16.gmra.mxu0 %v1036
        %v1061 = vpop.f32.mrf.mxu0
        %v1062 = vadd.f32 0.0, %v1061
        %v1063 = vpop.f32.mrf.mxu0
        %v1064 = vadd.f32 0.0, %v1063
        %1065 = vdwg.mxu0
        %v1066 = vadd.f32 %v1023, %v1048
        %v1067 = vadd.f32 %v1024, %v1062
        %v1068 = vadd.f32 %v1025, %v1050
        %v1069 = vadd.f32 %v1026, %v1064
        %1070 = vrot.lane.b32.xlu0 %v631, 34
        %v1071 = vpop.permute.xlu0 %1070
        %1072 = vrot.lane.b32.xlu0 %v632, 34
        %v1073 = vpop.permute.xlu0 %1072
        %vm1074 = vcmask 277504
        %v1075 = vsel %vm1074, %v1071, %v1073
        %v1079 = vmul.f32 %v389, %v1071
        %v1080 = vmul.f32 %v390, %v1075
        %v1081 = vmul.f32 %v391, %v1073
        %v1082 = vmul.f32 %v392, %v1071
        %v1083 = vmul.f32 %v393, %v1075
        %v1084 = vmul.f32 %v394, %v1073
        %v1085 = vpack.c.bf16 %v1082, %v1079
        %v1086 = vpack.c.bf16 %v1083, %v1080
        %v1087 = vpack.c.bf16 %v1084, %v1081
        %s1088 = scalar_lea.vmem %s3, 96
        %v1089 = vld [vmem:[%s1088] sm:$0xf]
        %v1090 = vld [vmem:[%s1088 + $0x4] sm:$0xf]
        %s1091 = scalar_lea.vmem %s3, 104
        %v1092 = vld [vmem:[%s1091] sm:$0xf]
        %v1093 = vld [vmem:[%s1091 + $0x4] sm:$0xf]
        %v1096 = vunpack.c.l.b16 %v1092
        %v1097 = vunpack.c.l.b16 %v1093
        %v1098 = vpack.c.b16 %v1097, %v1096
        %v1100 = vsel %vm403, %v1098, 0
        %1102 = vmatpush.bf16.msra.mxu0 0
        %1103 = vmatpush.bf16.msra.mxu0 0
        %1104 = vmatpush.bf16.msra.mxu0 0
        %1105 = vmatpush.bf16.msra.mxu0 0
        %1106 = vmatpush.bf16.msra.mxu0 0
        %1107 = vmatpush.bf16.msra.mxu0 0
        %1108 = vmatpush.bf16.msra.mxu0 0
        %1109 = vmatpush.bf16.msra.mxu0 %v949
        %1110 = vmatmul.bf16.gmra.mxu0 %v1100
        %v1111 = vpop.f32.mrf.mxu0
        %v1112 = vadd.f32 0.0, %v1111
        %v1113 = vpop.f32.mrf.mxu0
        %v1114 = vadd.f32 0.0, %v1113
        %1115 = vdwg.mxu0
        %1116 = vmatpush.bf16.msra.mxu0 0
        %1117 = vmatpush.bf16.msra.mxu0 0
        %1118 = vmatpush.bf16.msra.mxu0 0
        %1119 = vmatpush.bf16.msra.mxu0 0
        %1120 = vmatpush.bf16.msra.mxu0 0
        %1121 = vmatpush.bf16.msra.mxu0 0
        %1122 = vmatpush.bf16.msra.mxu0 0
        %1123 = vmatpush.bf16.msra.mxu0 %v950
        %1124 = vmatmul.bf16.gmra.mxu0 %v1100
        %v1125 = vpop.f32.mrf.mxu0
        %v1126 = vadd.f32 0.0, %v1125
        %v1127 = vpop.f32.mrf.mxu0
        %v1128 = vadd.f32 0.0, %v1127
        %1129 = vdwg.mxu0
        %v1132 = vunpack.c.l.b16 %v1089
        %v1133 = vunpack.c.l.b16 %v1090
        %v1134 = vpack.c.b16 %v1133, %v1132
        %1138 = vrot.lane.b32.xlu0 %v1085, 94
        %v1139 = vpop.permute.xlu0 %1138
        %1140 = vrot.lane.b32.xlu0 %v1086, 94
        %v1141 = vpop.permute.xlu0 %1140
        %1142 = vrot.lane.b32.xlu0 %v1087, 94
        %v1143 = vpop.permute.xlu0 %1142
        %vm1144 = vcmask 769024
        %v1145 = vsel %vm1144, %v1139, %v1141
        %v1146 = vsel %vm1144, %v1141, %v1143
        %v1150 = vsel %vm403, %v1134, 0
        %1152 = vmatpush.bf16.msra.mxu0 0
        %1153 = vmatpush.bf16.msra.mxu0 0
        %1154 = vmatpush.bf16.msra.mxu0 0
        %1155 = vmatpush.bf16.msra.mxu0 0
        %1156 = vmatpush.bf16.msra.mxu0 0
        %1157 = vmatpush.bf16.msra.mxu0 0
        %1158 = vmatpush.bf16.msra.mxu0 0
        %1159 = vmatpush.bf16.msra.mxu0 %v1145
        %1160 = vmatmul.bf16.gmra.mxu0 %v1150
        %v1161 = vpop.f32.mrf.mxu0
        %v1162 = vadd.f32 %v1112, %v1161
        %v1163 = vpop.f32.mrf.mxu0
        %v1164 = vadd.f32 %v1114, %v1163
        %1165 = vdwg.mxu0
        %1166 = vmatpush.bf16.msra.mxu0 0
        %1167 = vmatpush.bf16.msra.mxu0 0
        %1168 = vmatpush.bf16.msra.mxu0 0
        %1169 = vmatpush.bf16.msra.mxu0 0
        %1170 = vmatpush.bf16.msra.mxu0 0
        %1171 = vmatpush.bf16.msra.mxu0 0
        %1172 = vmatpush.bf16.msra.mxu0 0
        %1173 = vmatpush.bf16.msra.mxu0 %v1146
        %1174 = vmatmul.bf16.gmra.mxu0 %v1150
        %v1175 = vpop.f32.mrf.mxu0
        %v1176 = vadd.f32 %v1126, %v1175
        %v1177 = vpop.f32.mrf.mxu0
        %v1178 = vadd.f32 %v1128, %v1177
        %1179 = vdwg.mxu0
        %s1180 = scalar_lea.vmem %s3, 112
        %v1181 = vld [vmem:[%s1180] sm:$0xf]
        %v1182 = vld [vmem:[%s1180 + $0x4] sm:$0xf]
        %v1185 = vunpack.c.l.b16 %v1181
        %v1186 = vunpack.c.l.b16 %v1182
        %v1187 = vpack.c.b16 %v1186, %v1185
        %v1189 = vsel %vm403, %v1187, 0
        %1191 = vmatpush.bf16.msra.mxu0 0
        %1192 = vmatpush.bf16.msra.mxu0 0
        %1193 = vmatpush.bf16.msra.mxu0 0
        %1194 = vmatpush.bf16.msra.mxu0 0
        %1195 = vmatpush.bf16.msra.mxu0 0
        %1196 = vmatpush.bf16.msra.mxu0 0
        %1197 = vmatpush.bf16.msra.mxu0 0
        %1198 = vmatpush.bf16.msra.mxu0 %v710
        %1199 = vmatmul.bf16.gmra.mxu0 %v1189
        %v1200 = vpop.f32.mrf.mxu0
        %v1201 = vadd.f32 0.0, %v1200
        %v1202 = vpop.f32.mrf.mxu0
        %v1203 = vadd.f32 0.0, %v1202
        %1204 = vdwg.mxu0
        %1205 = vmatpush.bf16.msra.mxu0 0
        %1206 = vmatpush.bf16.msra.mxu0 0
        %1207 = vmatpush.bf16.msra.mxu0 0
        %1208 = vmatpush.bf16.msra.mxu0 0
        %1209 = vmatpush.bf16.msra.mxu0 0
        %1210 = vmatpush.bf16.msra.mxu0 0
        %1211 = vmatpush.bf16.msra.mxu0 0
        %1212 = vmatpush.bf16.msra.mxu0 %v711
        %1213 = vmatmul.bf16.gmra.mxu0 %v1189
        %v1214 = vpop.f32.mrf.mxu0
        %v1215 = vadd.f32 0.0, %v1214
        %v1216 = vpop.f32.mrf.mxu0
        %v1217 = vadd.f32 0.0, %v1216
        %1218 = vdwg.mxu0
        %v1219 = vadd.f32 %v1162, %v1201
        %v1220 = vadd.f32 %v1176, %v1215
        %v1221 = vadd.f32 %v1164, %v1203
        %v1222 = vadd.f32 %v1178, %v1217
        %s1223 = scalar_lea.vmem %s3, 120
        %v1224 = vld [vmem:[%s1223] sm:$0xf]
        %v1225 = vld [vmem:[%s1223 + $0x4] sm:$0xf]
        %v1228 = vunpack.c.l.b16 %v1224
        %v1229 = vunpack.c.l.b16 %v1225
        %v1230 = vpack.c.b16 %v1229, %v1228
        %v1232 = vsel %vm403, %v1230, 0
        %1234 = vmatpush.bf16.msra.mxu0 0
        %1235 = vmatpush.bf16.msra.mxu0 0
        %1236 = vmatpush.bf16.msra.mxu0 0
        %1237 = vmatpush.bf16.msra.mxu0 0
        %1238 = vmatpush.bf16.msra.mxu0 0
        %1239 = vmatpush.bf16.msra.mxu0 0
        %1240 = vmatpush.bf16.msra.mxu0 0
        %1241 = vmatpush.bf16.msra.mxu0 %v484
        %1242 = vmatmul.bf16.gmra.mxu0 %v1232
        %v1243 = vpop.f32.mrf.mxu0
        %v1244 = vadd.f32 0.0, %v1243
        %v1245 = vpop.f32.mrf.mxu0
        %v1246 = vadd.f32 0.0, %v1245
        %1247 = vdwg.mxu0
        %1248 = vmatpush.bf16.msra.mxu0 0
        %1249 = vmatpush.bf16.msra.mxu0 0
        %1250 = vmatpush.bf16.msra.mxu0 0
        %1251 = vmatpush.bf16.msra.mxu0 0
        %1252 = vmatpush.bf16.msra.mxu0 0
        %1253 = vmatpush.bf16.msra.mxu0 0
        %1254 = vmatpush.bf16.msra.mxu0 0
        %1255 = vmatpush.bf16.msra.mxu0 %v485
        %1256 = vmatmul.bf16.gmra.mxu0 %v1232
        %v1257 = vpop.f32.mrf.mxu0
        %v1258 = vadd.f32 0.0, %v1257
        %v1259 = vpop.f32.mrf.mxu0
        %v1260 = vadd.f32 0.0, %v1259
        %1261 = vdwg.mxu0
        %v1262 = vadd.f32 %v1219, %v1244
        %v1263 = vadd.f32 %v1220, %v1258
        %v1264 = vadd.f32 %v1221, %v1246
        %v1265 = vadd.f32 %v1222, %v1260
        %1267 = vset.pattern.permute.xlu0 0
        %1268 = vperm.xlu0 %1267, %v375
        %v1269 = vpop.permute.xlu0 %1268
        %1272 = vset.pattern.permute.xlu0 0
        %1273 = vperm.xlu0 %1272, %v376
        %v1274 = vpop.permute.xlu0 %1273
        %v1276 = vadd.f32 %v618, %v1269
        %v1277 = vadd.f32 %v619, %v1269
        %v1278 = vadd.f32 %v620, %v1274
        %v1279 = vadd.f32 %v621, %v1274
        %v1280 = vpack.c.bf16 %v1277, %v1276
        %v1281 = vpack.c.bf16 %v1279, %v1278
        %1282 = vst [vmem:[%s266] sm:$0xff] %v1280
        %1283 = vst [vmem:[%s266 + $0x8] sm:$0xff] %v1281
        %v1284 = vadd.f32 %v859, %v1269
        %v1285 = vadd.f32 %v860, %v1269
        %v1286 = vadd.f32 %v861, %v1274
        %v1287 = vadd.f32 %v862, %v1274
        %v1288 = vpack.c.bf16 %v1285, %v1284
        %v1289 = vpack.c.bf16 %v1287, %v1286
        %1290 = vst [vmem:[%s266 + $0x10] sm:$0xff] %v1288
        %1291 = vst [vmem:[%s266 + $0x18] sm:$0xff] %v1289
        %v1292 = vadd.f32 %v1066, %v1269
        %v1293 = vadd.f32 %v1067, %v1269
        %v1294 = vadd.f32 %v1068, %v1274
        %v1295 = vadd.f32 %v1069, %v1274
        %v1296 = vpack.c.bf16 %v1293, %v1292
        %v1297 = vpack.c.bf16 %v1295, %v1294
        %1298 = vst [vmem:[%s266 + $0x20] sm:$0xff] %v1296
        %1299 = vst [vmem:[%s266 + $0x28] sm:$0xff] %v1297
        %v1300 = vadd.f32 %v1262, %v1269
        %v1301 = vadd.f32 %v1263, %v1269
        %v1302 = vadd.f32 %v1264, %v1274
        %v1303 = vadd.f32 %v1265, %v1274
        %v1304 = vpack.c.bf16 %v1301, %v1300
        %v1305 = vpack.c.bf16 %v1303, %v1302
        %1306 = vst [vmem:[%s266 + $0x30] sm:$0xff] %v1304
        %1307 = vst [vmem:[%s266 + $0x38] sm:$0xff] %v1305
        %p1308 = scmp.lt.s32.totalorder %s18, 1
        %s1309 = scalar_select %p1308, %s18, 1
        %s1310 = smul.addr %s1309, 16
        %s1311 = smul.addr %s1310, 4
        %s1312 = scalar_lea.vmem %s6, %s1311
        // Predicated region
        $region49: #{upconv_block_forward.3} parent=43 // pred_check
          %p1313 = pneg %p167
        $region50: #{upconv_block_forward.3} parent=43 // pred_check_branch
          %1315 = sbr.rel (%p1313) target = $region52
        $region51: #{upconv_block_forward.3} parent=43 // pred_region
          _
        $region52: #{upconv_block_forward.3} parent=43 // pred_fallthru
          _
      $region44: #{upconv_block_forward.3} parent=5 // pred_fallthru
        _
      %p1316 = scmp.le.s32.totalorder 2, %s13
      // Predicated region
      $region53: #{upconv_block_forward.3} parent=5 // pred_check
        %p1317 = pneg %p1316
      $region54: #{upconv_block_forward.3} parent=5 // pred_check_branch
        %1319 = sbr.rel (%p1317) target = $region56
      $region55: #{upconv_block_forward.3} parent=5 // pred_region
        %s1320 = ssub.s32 %s13, 2
        // Predicated region
        $region57: #{upconv_block_forward.3} parent=55 // pred_check
          %p1321 = pneg %p173
        $region58: #{upconv_block_forward.3} parent=55 // pred_check_branch
          %1323 = sbr.rel (%p1321) target = $region60
        $region59: #{upconv_block_forward.3} parent=55 // pred_region
          %p1324 = scmp.lt.s32.totalorder %s19, 1
          %s1325 = scalar_select %p1324, %s19, 1
          %s1326 = smul.addr %s1325, 16
          %s1327 = smul.addr %s1326, 4
          %s1328 = scalar_lea.vmem %s6, %s1327
        $region60: #{upconv_block_forward.3} parent=55 // pred_fallthru
          _
      $region56: #{upconv_block_forward.3} parent=5 // pred_fallthru
        _
    $region6: #{upconv_block_forward.3} parent=1 // loop_footer
      %s17 = sadd.s32 1, %s13
    $region7: #{upconv_block_forward.3} parent=1 // loop_footer_branch
      %12 = sbr.rel target = $region3
    $region8: #{upconv_block_forward.3} parent=1 // loop_exit
      _
    %1329 = vsyncpa [#allocation3], 1
    %s1330 = scalar_lea.sflag [#allocation3], 1
    %1331 = vsyncpa %s1330, 1

// kernel: upconv_block_forward.4
$region0: #{upconv_block_forward.4}
  #allocation0 [shape = 'u32[]', space=smem, size = 0x4, offset = 0x4, fixed_abs, tag = 'smem constant byte address 0x4 - core index']
  #allocation1 [shape = 'u32[72,128]{1,0:T(1,128)}', space=vmem, size = 0x9000, scoped, tag = 'internal scratch']
  #allocation2 [shape = 'f32[1,1]{1,0:T(1,128)S(1)}', space=vmem, size = 0x200, scoped, tag = 'scoped memory for upconv_block_forward.4']
  #allocation3 [shape = 'f32[1,1]{1,0:T(1,128)S(1)}', space=vmem, size = 0x200, scoped, tag = 'scoped memory for upconv_block_forward.4']
  %s0 = inlined_call_operand.vmem [shape: bf16[2,16,1024], index: 0, kind: input, shape index: {}]
  %s1 = inlined_call_operand.vmem [shape: bf16[1,16], index: 1, kind: input, shape index: {}]
  %s2 = inlined_call_operand.<no memory space> [shape: f32[1,1], index: 2, kind: input, shape index: {}]
  %s3 = inlined_call_operand.vmem [shape: f32[16,1,1], index: 3, kind: input, shape index: {}]
  %s4 = inlined_call_operand.<no memory space> [shape: f32[1,1], index: 4, kind: input, shape index: {}]
  %s5 = inlined_call_operand.vmem [shape: f32[3,1024], index: 5, kind: input, shape index: {}]
  %s6 = inlined_call_operand.vmem [shape: f32[2,4,1024], index: 6, kind: output, shape index: {}]
  %s7 = sld [smem:[#allocation0]]
  $region57: #{upconv_block_forward.4} parent=0
    _
  %s9 = ssub.s32 1, %s7
  %s10 = scalar_select 0, %s9, %s7
  %v11 = vstv %s2
  %12 = vst [vmem:[#allocation2] sm:$0x1] %v11
  %v13 = vstv %s4
  %14 = vst [vmem:[#allocation3] sm:$0x1] %v13
  loop: start=0, step=1, limit=4
  $region2: #{upconv_block_forward.4} parent=0 // loop_pre_header
    _
  $region3: #{upconv_block_forward.4} parent=0 // loop_header
    %s16 = sphi 0, %s20
    %p17 = scmp.ge.s32.totalorder %s16, 4
    %s26 = sphi 0, %s28
    %s29 = sphi 0, %s26
    %s30 = sphi 0, %s29
    %s46 = sphi 0, %s30
    %s50 = sphi 0, %s50
    %s52 = sphi 0, %s50
    %s53 = sphi 0, %s52
    %s67 = sphi 0, %s53
    %s71 = sphi 0, %s71
    %s73 = sphi 0, %s71
    %s74 = sphi 0, %s73
    %s88 = sphi 0, %s74
    %s92 = sphi 0, %s92
    %s94 = sphi 0, %s92
    %s95 = sphi 0, %s94
    %s109 = sphi 0, %s95
    %s113 = sphi 0, %s113
    %s115 = sphi 0, %s113
    %s116 = sphi 0, %s115
    %s130 = sphi 0, %s116
    %s134 = sphi 0, %s134
    %s136 = sphi 0, %s134
    %s137 = sphi 0, %s136
    %s151 = sphi 0, %s137
    %s157 = sphi 0, %s159
    %s160 = sphi 0, %s157
    %s161 = sphi 0, %s160
    %s177 = sphi 0, %s161
  $region4: #{upconv_block_forward.4} parent=0 // loop_header_branch
    %19 = sbr.rel (%p17) target = $region8
  $region5: #{upconv_block_forward.4} parent=0 // loop_body
    %s21 = ssub.s32 %s16, 1
    %s22 = ssub.s32 %s16, 2
    %s23 = sadd.s32 %s16, 1
    %s24 = ssub.s32 %s16, %s23
    %p25 = scmp.eq.s32.totalorder %s24, 0
    %s27 = sadd.s32 %s26, 1
    %s28 = scalar_select %p25, %s26, %s27
    %p31 = pneg %p25
    %p32 = scmp.eq.s32.totalorder %s16, 1
    %p33 = por %p31, %p32
    %p34 = scmp.ne.s32.totalorder %s26, %s29
    %p35 = scmp.eq.s32.totalorder %s16, 0
    %p36 = por %p34, %p35
    %p37 = scmp.ne.s32.totalorder %s26, %s29
    %p38 = scmp.eq.s32.totalorder %s21, 1
    %p39 = por %p37, %p38
    %p40 = scmp.ne.s32.totalorder %s29, %s30
    %p41 = scmp.eq.s32.totalorder %s21, 0
    %p42 = por %p40, %p41
    %p43 = scmp.ne.s32.totalorder %s29, %s30
    %p44 = scmp.eq.s32.totalorder %s22, 1
    %p45 = por %p43, %p44
    %p47 = scmp.ne.s32.totalorder %s30, %s46
    %p48 = scmp.eq.s32.totalorder %s22, 0
    %p49 = por %p47, %p48
    %s51 = sadd.s32 %s50, 1
    %p54 = scmp.eq.s32.totalorder %s16, 1
    %p55 = scmp.ne.s32.totalorder %s50, %s52
    %p56 = scmp.eq.s32.totalorder %s16, 0
    %p57 = por %p55, %p56
    %p58 = scmp.ne.s32.totalorder %s50, %s52
    %p59 = scmp.eq.s32.totalorder %s21, 1
    %p60 = por %p58, %p59
    %p61 = scmp.ne.s32.totalorder %s52, %s53
    %p62 = scmp.eq.s32.totalorder %s21, 0
    %p63 = por %p61, %p62
    %p64 = scmp.ne.s32.totalorder %s52, %s53
    %p65 = scmp.eq.s32.totalorder %s22, 1
    %p66 = por %p64, %p65
    %p68 = scmp.ne.s32.totalorder %s53, %s67
    %p69 = scmp.eq.s32.totalorder %s22, 0
    %p70 = por %p68, %p69
    %s72 = sadd.s32 %s71, 1
    %p75 = scmp.eq.s32.totalorder %s16, 1
    %p76 = scmp.ne.s32.totalorder %s71, %s73
    %p77 = scmp.eq.s32.totalorder %s16, 0
    %p78 = por %p76, %p77
    %p79 = scmp.ne.s32.totalorder %s71, %s73
    %p80 = scmp.eq.s32.totalorder %s21, 1
    %p81 = por %p79, %p80
    %p82 = scmp.ne.s32.totalorder %s73, %s74
    %p83 = scmp.eq.s32.totalorder %s21, 0
    %p84 = por %p82, %p83
    %p85 = scmp.ne.s32.totalorder %s73, %s74
    %p86 = scmp.eq.s32.totalorder %s22, 1
    %p87 = por %p85, %p86
    %p89 = scmp.ne.s32.totalorder %s74, %s88
    %p90 = scmp.eq.s32.totalorder %s22, 0
    %p91 = por %p89, %p90
    %s93 = sadd.s32 %s92, 1
    %p96 = scmp.eq.s32.totalorder %s16, 1
    %p97 = scmp.ne.s32.totalorder %s92, %s94
    %p98 = scmp.eq.s32.totalorder %s16, 0
    %p99 = por %p97, %p98
    %p100 = scmp.ne.s32.totalorder %s92, %s94
    %p101 = scmp.eq.s32.totalorder %s21, 1
    %p102 = por %p100, %p101
    %p103 = scmp.ne.s32.totalorder %s94, %s95
    %p104 = scmp.eq.s32.totalorder %s21, 0
    %p105 = por %p103, %p104
    %p106 = scmp.ne.s32.totalorder %s94, %s95
    %p107 = scmp.eq.s32.totalorder %s22, 1
    %p108 = por %p106, %p107
    %p110 = scmp.ne.s32.totalorder %s95, %s109
    %p111 = scmp.eq.s32.totalorder %s22, 0
    %p112 = por %p110, %p111
    %s114 = sadd.s32 %s113, 1
    %p117 = scmp.eq.s32.totalorder %s16, 1
    %p118 = scmp.ne.s32.totalorder %s113, %s115
    %p119 = scmp.eq.s32.totalorder %s16, 0
    %p120 = por %p118, %p119
    %p121 = scmp.ne.s32.totalorder %s113, %s115
    %p122 = scmp.eq.s32.totalorder %s21, 1
    %p123 = por %p121, %p122
    %p124 = scmp.ne.s32.totalorder %s115, %s116
    %p125 = scmp.eq.s32.totalorder %s21, 0
    %p126 = por %p124, %p125
    %p127 = scmp.ne.s32.totalorder %s115, %s116
    %p128 = scmp.eq.s32.totalorder %s22, 1
    %p129 = por %p127, %p128
    %p131 = scmp.ne.s32.totalorder %s116, %s130
    %p132 = scmp.eq.s32.totalorder %s22, 0
    %p133 = por %p131, %p132
    %s135 = sadd.s32 %s134, 1
    %p138 = scmp.eq.s32.totalorder %s16, 1
    %p139 = scmp.ne.s32.totalorder %s134, %s136
    %p140 = scmp.eq.s32.totalorder %s16, 0
    %p141 = por %p139, %p140
    %p142 = scmp.ne.s32.totalorder %s134, %s136
    %p143 = scmp.eq.s32.totalorder %s21, 1
    %p144 = por %p142, %p143
    %p145 = scmp.ne.s32.totalorder %s136, %s137
    %p146 = scmp.eq.s32.totalorder %s21, 0
    %p147 = por %p145, %p146
    %p148 = scmp.ne.s32.totalorder %s136, %s137
    %p149 = scmp.eq.s32.totalorder %s22, 1
    %p150 = por %p148, %p149
    %p152 = scmp.ne.s32.totalorder %s137, %s151
    %p153 = scmp.eq.s32.totalorder %s22, 0
    %p154 = por %p152, %p153
    %s155 = ssub.s32 %s16, %s23
    %p156 = scmp.eq.s32.totalorder %s155, 0
    %s158 = sadd.s32 %s157, 1
    %s159 = scalar_select %p156, %s157, %s158
    %p162 = pneg %p156
    %p163 = scmp.eq.s32.totalorder %s16, 1
    %p164 = por %p162, %p163
    %p165 = scmp.ne.s32.totalorder %s157, %s160
    %p166 = scmp.eq.s32.totalorder %s16, 0
    %p167 = por %p165, %p166
    %p168 = scmp.ne.s32.totalorder %s157, %s160
    %p169 = scmp.eq.s32.totalorder %s21, 1
    %p170 = por %p168, %p169
    %p171 = scmp.ne.s32.totalorder %s160, %s161
    %p172 = scmp.eq.s32.totalorder %s21, 0
    %p173 = por %p171, %p172
    %p174 = scmp.ne.s32.totalorder %s160, %s161
    %p175 = scmp.eq.s32.totalorder %s22, 1
    %p176 = por %p174, %p175
    %p178 = scmp.ne.s32.totalorder %s161, %s177
    %p179 = scmp.eq.s32.totalorder %s22, 0
    %p180 = por %p178, %p179
    %p181 = scmp.le.s32.totalorder 1, %s16
    %p182 = scmp.lt.s32.totalorder %s16, 3
    %p183 = pnand %p181, %p182
    %p184 = pneg %p183
    // Predicated region
    $region9: #{upconv_block_forward.4} parent=5 // pred_check
      _
    $region10: #{upconv_block_forward.4} parent=5 // pred_check_branch
      %186 = sbr.rel (%p183) target = $region12
    $region11: #{upconv_block_forward.4} parent=5 // pred_region
      %s187 = ssub.s32 %s16, 1
      // Predicated region
      $region13: #{upconv_block_forward.4} parent=11 // pred_check
        %p188 = pneg %p63
      $region14: #{upconv_block_forward.4} parent=11 // pred_check_branch
        %190 = sbr.rel (%p188) target = $region16
      $region15: #{upconv_block_forward.4} parent=11 // pred_region
        _
      $region16: #{upconv_block_forward.4} parent=11 // pred_fallthru
        _
      // Predicated region
      $region17: #{upconv_block_forward.4} parent=11 // pred_check
        %p191 = pneg %p84
      $region18: #{upconv_block_forward.4} parent=11 // pred_check_branch
        %193 = sbr.rel (%p191) target = $region20
      $region19: #{upconv_block_forward.4} parent=11 // pred_region
        _
      $region20: #{upconv_block_forward.4} parent=11 // pred_fallthru
        _
      // Predicated region
      $region21: #{upconv_block_forward.4} parent=11 // pred_check
        %p194 = pneg %p105
      $region22: #{upconv_block_forward.4} parent=11 // pred_check_branch
        %196 = sbr.rel (%p194) target = $region24
      $region23: #{upconv_block_forward.4} parent=11 // pred_region
        _
      $region24: #{upconv_block_forward.4} parent=11 // pred_fallthru
        _
      // Predicated region
      $region25: #{upconv_block_forward.4} parent=11 // pred_check
        %p197 = pneg %p126
      $region26: #{upconv_block_forward.4} parent=11 // pred_check_branch
        %199 = sbr.rel (%p197) target = $region28
      $region27: #{upconv_block_forward.4} parent=11 // pred_region
        _
      $region28: #{upconv_block_forward.4} parent=11 // pred_fallthru
        _
      // Predicated region
      $region29: #{upconv_block_forward.4} parent=11 // pred_check
        %p200 = pneg %p147
      $region30: #{upconv_block_forward.4} parent=11 // pred_check_branch
        %202 = sbr.rel (%p200) target = $region32
      $region31: #{upconv_block_forward.4} parent=11 // pred_region
        _
      $region32: #{upconv_block_forward.4} parent=11 // pred_fallthru
        _
    $region12: #{upconv_block_forward.4} parent=5 // pred_fallthru
      _
    %p203 = scmp.lt.s32.totalorder %s16, 2
    // Predicated region
    $region33: #{upconv_block_forward.4} parent=5 // pred_check
      %p204 = pneg %p203
    $region34: #{upconv_block_forward.4} parent=5 // pred_check_branch
      %206 = sbr.rel (%p204) target = $region36
    $region35: #{upconv_block_forward.4} parent=5 // pred_region
      // Predicated region
      $region37: #{upconv_block_forward.4} parent=35 // pred_check
        %p207 = pneg %p36
      $region38: #{upconv_block_forward.4} parent=35 // pred_check_branch
        %209 = sbr.rel (%p207) target = $region40
      $region39: #{upconv_block_forward.4} parent=35 // pred_region
        %p210 = scmp.lt.s32.totalorder %s16, 1
        %s211 = scalar_select %p210, %s16, 1
        %s212 = smul.addr %s211, 16
        %s213 = smul.addr %s212, 4
        %s214 = scalar_lea.vmem %s0, %s213
      $region40: #{upconv_block_forward.4} parent=35 // pred_fallthru
        _
    $region36: #{upconv_block_forward.4} parent=5 // pred_fallthru
      _
    %p215 = scmp.le.s32.totalorder 1, %s16
    %p216 = scmp.lt.s32.totalorder %s16, 3
    %p217 = pnand %p215, %p216
    %p218 = pneg %p217
    // Predicated region
    $region41: #{upconv_block_forward.4} parent=5 // pred_check
      _
    $region42: #{upconv_block_forward.4} parent=5 // pred_check_branch
      %220 = sbr.rel (%p217) target = $region44
    $region43: #{upconv_block_forward.4} parent=5 // pred_region
      %s221 = ssub.s32 %s16, 1
      %p222 = scmp.lt.s32.totalorder %s21, 1
      %s223 = scalar_select %p222, %s21, 1
      %s224 = smul.addr %s223, 16
      %s225 = smul.addr %s224, 4
      %s226 = scalar_lea.vmem %s0, %s225
      %p227 = pneg %p42
      %p228 = pneg %p39
      %p229 = pneg %p63
      %p230 = pneg %p60
      %p231 = pneg %p84
      %p232 = pneg %p81
      %p233 = pneg %p105
      %p234 = pneg %p102
      %p235 = pneg %p126
      %p236 = pneg %p123
      %p237 = pneg %p147
      %p238 = pneg %p144
      %p239 = pneg %p173
      %p240 = pneg %p170
      %p241 = scmp.lt.s32.totalorder %s21, 1
      %s242 = scalar_select %p241, %s21, 1
      %s243 = smul.addr %s242, 8
      %s244 = smul.addr %s243, 4
      %s245 = scalar_lea.vmem %s6, %s244
      %p246 = scmp.lt.s32.totalorder %s21, 1
      %s247 = scalar_select %p246, %s21, 1
      %s248 = smul.addr %s247, 16
      %s249 = smul.addr %s248, 4
      %s250 = scalar_lea.vmem %s0, %s249
      %p251 = scmp.lt.s32.totalorder %s21, 1
      %s252 = scalar_select %p251, %s21, 1
      %s253 = smul.addr %s252, 8
      %s254 = smul.addr %s253, 4
      %s255 = scalar_lea.vmem %s6, %s254
      %v257 = vld [vmem:[%s250] sm:$0xff]
      %v258 = vld [vmem:[%s250 + $0x8] sm:$0xff]
      %v259 = vld [vmem:[%s250 + $0x10] sm:$0xff]
      %v260 = vld [vmem:[%s250 + $0x18] sm:$0xff]
      %v261 = vld [vmem:[%s250 + $0x20] sm:$0xff]
      %v262 = vld [vmem:[%s250 + $0x28] sm:$0xff]
      %v263 = vld [vmem:[%s250 + $0x30] sm:$0xff]
      %v264 = vld [vmem:[%s250 + $0x38] sm:$0xff]
      %v265 = vld [vmem:[%s1] sm:$0x1]
      %v266 = vld [vmem:[#allocation2] sm:$0x1]
      %268 = vset.pattern.permute.xlu0 0
      %269 = vperm.xlu0 %268, %v266
      %v270 = vpop.permute.xlu0 %269
      %v272 = vperm.slane %v270, 0
      %v281 = vunpack.c.l.b16 %v257
      %v282 = vunpack.c.h.b16 %v257
      %v283 = vunpack.c.l.b16 %v258
      %v284 = vunpack.c.h.b16 %v258
      %v285 = vunpack.c.l.b16 %v259
      %v286 = vunpack.c.h.b16 %v259
      %v287 = vunpack.c.l.b16 %v260
      %v288 = vunpack.c.h.b16 %v260
      %v289 = vunpack.c.l.b16 %v261
      %v290 = vunpack.c.h.b16 %v261
      %v291 = vunpack.c.l.b16 %v262
      %v292 = vunpack.c.h.b16 %v262
      %v293 = vunpack.c.l.b16 %v263
      %v294 = vunpack.c.h.b16 %v263
      %v295 = vunpack.c.l.b16 %v264
      %v296 = vunpack.c.h.b16 %v264
      %v297 = vpack.c.b16 %v289, %v281
      %v298 = vpack.c.b16 %v290, %v282
      %v299 = vpack.c.b16 %v291, %v283
      %v300 = vpack.c.b16 %v292, %v284
      %v301 = vpack.c.b16 %v293, %v285
      %v302 = vpack.c.b16 %v294, %v286
      %v303 = vpack.c.b16 %v295, %v287
      %v304 = vpack.c.b16 %v296, %v288
      %vm313 = vcmask 130048
      %v315 = vsel %vm313, %v265, 0
      %317 = vmatpush.bf16.msra.mxu0 0
      %318 = vmatpush.bf16.msra.mxu0 0
      %319 = vmatpush.bf16.msra.mxu0 0
      %320 = vmatpush.bf16.msra.mxu0 0
      %321 = vmatpush.bf16.msra.mxu0 0
      %322 = vmatpush.bf16.msra.mxu0 0
      %323 = vmatpush.bf16.msra.mxu0 0
      %324 = vmatpush.bf16.msra.mxu0 %v297
      %325 = vmatmul.bf16.gmra.mxu0 %v315
      %v326 = vpop.f32.mrf.mxu0
      %v327 = vadd.f32 %v272, %v326
      %v328 = vpop.f32.mrf.mxu0
      %329 = vdwg.mxu0
      %330 = vmatpush.bf16.msra.mxu0 0
      %331 = vmatpush.bf16.msra.mxu0 0
      %332 = vmatpush.bf16.msra.mxu0 0
      %333 = vmatpush.bf16.msra.mxu0 0
      %334 = vmatpush.bf16.msra.mxu0 0
      %335 = vmatpush.bf16.msra.mxu0 0
      %336 = vmatpush.bf16.msra.mxu0 0
      %337 = vmatpush.bf16.msra.mxu0 %v298
      %338 = vmatmul.bf16.gmra.mxu0 %v315
      %v339 = vpop.f32.mrf.mxu0
      %v340 = vadd.f32 %v272, %v339
      %v341 = vpop.f32.mrf.mxu0
      %342 = vdwg.mxu0
      %343 = vmatpush.bf16.msra.mxu0 0
      %344 = vmatpush.bf16.msra.mxu0 0
      %345 = vmatpush.bf16.msra.mxu0 0
      %346 = vmatpush.bf16.msra.mxu0 0
      %347 = vmatpush.bf16.msra.mxu0 0
      %348 = vmatpush.bf16.msra.mxu0 0
      %349 = vmatpush.bf16.msra.mxu0 0
      %350 = vmatpush.bf16.msra.mxu0 %v299
      %351 = vmatmul.bf16.gmra.mxu0 %v315
      %v352 = vpop.f32.mrf.mxu0
      %v353 = vadd.f32 %v272, %v352
      %v354 = vpop.f32.mrf.mxu0
      %355 = vdwg.mxu0
      %356 = vmatpush.bf16.msra.mxu0 0
      %357 = vmatpush.bf16.msra.mxu0 0
      %358 = vmatpush.bf16.msra.mxu0 0
      %359 = vmatpush.bf16.msra.mxu0 0
      %360 = vmatpush.bf16.msra.mxu0 0
      %361 = vmatpush.bf16.msra.mxu0 0
      %362 = vmatpush.bf16.msra.mxu0 0
      %363 = vmatpush.bf16.msra.mxu0 %v300
      %364 = vmatmul.bf16.gmra.mxu0 %v315
      %v365 = vpop.f32.mrf.mxu0
      %v366 = vadd.f32 %v272, %v365
      %v367 = vpop.f32.mrf.mxu0
      %368 = vdwg.mxu0
      %369 = vmatpush.bf16.msra.mxu0 0
      %370 = vmatpush.bf16.msra.mxu0 0
      %371 = vmatpush.bf16.msra.mxu0 0
      %372 = vmatpush.bf16.msra.mxu0 0
      %373 = vmatpush.bf16.msra.mxu0 0
      %374 = vmatpush.bf16.msra.mxu0 0
      %375 = vmatpush.bf16.msra.mxu0 0
      %376 = vmatpush.bf16.msra.mxu0 %v301
      %377 = vmatmul.bf16.gmra.mxu0 %v315
      %v378 = vpop.f32.mrf.mxu0
      %v379 = vadd.f32 %v272, %v378
      %v380 = vpop.f32.mrf.mxu0
      %381 = vdwg.mxu0
      %382 = vmatpush.bf16.msra.mxu0 0
      %383 = vmatpush.bf16.msra.mxu0 0
      %384 = vmatpush.bf16.msra.mxu0 0
      %385 = vmatpush.bf16.msra.mxu0 0
      %386 = vmatpush.bf16.msra.mxu0 0
      %387 = vmatpush.bf16.msra.mxu0 0
      %388 = vmatpush.bf16.msra.mxu0 0
      %389 = vmatpush.bf16.msra.mxu0 %v302
      %390 = vmatmul.bf16.gmra.mxu0 %v315
      %v391 = vpop.f32.mrf.mxu0
      %v392 = vadd.f32 %v272, %v391
      %v393 = vpop.f32.mrf.mxu0
      %394 = vdwg.mxu0
      %395 = vmatpush.bf16.msra.mxu0 0
      %396 = vmatpush.bf16.msra.mxu0 0
      %397 = vmatpush.bf16.msra.mxu0 0
      %398 = vmatpush.bf16.msra.mxu0 0
      %399 = vmatpush.bf16.msra.mxu0 0
      %400 = vmatpush.bf16.msra.mxu0 0
      %401 = vmatpush.bf16.msra.mxu0 0
      %402 = vmatpush.bf16.msra.mxu0 %v303
      %403 = vmatmul.bf16.gmra.mxu0 %v315
      %v404 = vpop.f32.mrf.mxu0
      %v405 = vadd.f32 %v272, %v404
      %v406 = vpop.f32.mrf.mxu0
      %407 = vdwg.mxu0
      %408 = vmatpush.bf16.msra.mxu0 0
      %409 = vmatpush.bf16.msra.mxu0 0
      %410 = vmatpush.bf16.msra.mxu0 0
      %411 = vmatpush.bf16.msra.mxu0 0
      %412 = vmatpush.bf16.msra.mxu0 0
      %413 = vmatpush.bf16.msra.mxu0 0
      %414 = vmatpush.bf16.msra.mxu0 0
      %415 = vmatpush.bf16.msra.mxu0 %v304
      %416 = vmatmul.bf16.gmra.mxu0 %v315
      %v417 = vpop.f32.mrf.mxu0
      %v418 = vadd.f32 %v272, %v417
      %v419 = vpop.f32.mrf.mxu0
      %420 = vdwg.mxu0
      %v421 = vmax.f32 %v327, 0.0
      %v422 = vmax.f32 %v340, 0.0
      %v423 = vmax.f32 %v353, 0.0
      %v424 = vmax.f32 %v366, 0.0
      %v425 = vmax.f32 %v379, 0.0
      %v426 = vmax.f32 %v392, 0.0
      %v427 = vmax.f32 %v405, 0.0
      %v428 = vmax.f32 %v418, 0.0
      %437 = vrot.lane.b32.xlu0 %v421, 33
      %v438 = vpop.permute.xlu0 %437
      %439 = vrot.lane.b32.xlu0 %v422, 33
      %v440 = vpop.permute.xlu0 %439
      %441 = vrot.lane.b32.xlu0 %v423, 33
      %v442 = vpop.permute.xlu0 %441
      %443 = vrot.lane.b32.xlu0 %v424, 33
      %v444 = vpop.permute.xlu0 %443
      %445 = vrot.lane.b32.xlu0 %v425, 33
      %v446 = vpop.permute.xlu0 %445
      %447 = vrot.lane.b32.xlu0 %v426, 33
      %v448 = vpop.permute.xlu0 %447
      %449 = vrot.lane.b32.xlu0 %v427, 33
      %v450 = vpop.permute.xlu0 %449
      %451 = vrot.lane.b32.xlu0 %v428, 33
      %v452 = vpop.permute.xlu0 %451
      %vm453 = vcmask 269312
      %v454 = vsel %vm453, %v438, %v440
      %v455 = vsel %vm453, %v440, %v442
      %v456 = vsel %vm453, %v442, %v444
      %v457 = vsel %vm453, %v444, %v446
      %v458 = vsel %vm453, %v446, %v448
      %v459 = vsel %vm453, %v448, %v450
      %v460 = vsel %vm453, %v450, %v452
      %v470 = vsel %vm453, 0.0, %v438
      %v471 = vsel %vm453, %v452, 0.0
      %v472 = vld [vmem:[%s5] sm:$0x77]
      %v473 = vld [vmem:[%s5 + $0x8] sm:$0x77]
      %v474 = vld [vmem:[%s5 + $0x10] sm:$0x77]
      %v475 = vld [vmem:[%s5 + $0x18] sm:$0x77]
      %v476 = vld [vmem:[#allocation3] sm:$0x1]
      %v477 = vld [vmem:[%s3] sm:$0x1]
      %479 = vset.pattern.permute.xlu0 0
      %480 = vperm.xlu0 %479, %v477
      %v481 = vpop.permute.xlu0 %480
      %v483 = vperm.slane %v481, 0
      %v484 = vmul.f32 %v483, %v470
      %v485 = vmul.f32 %v483, %v454
      %v486 = vmul.f32 %v483, %v455
      %v487 = vmul.f32 %v483, %v456
      %v488 = vmul.f32 %v483, %v457
      %v489 = vmul.f32 %v483, %v458
      %v490 = vmul.f32 %v483, %v459
      %v491 = vmul.f32 %v483, %v460
      %v492 = vmul.f32 %v483, %v471
      %v493 = vadd.f32 %v484, 0.0
      %v494 = vadd.f32 %v485, 0.0
      %v495 = vadd.f32 %v486, 0.0
      %v496 = vadd.f32 %v487, 0.0
      %v497 = vadd.f32 %v488, 0.0
      %v498 = vadd.f32 %v489, 0.0
      %v499 = vadd.f32 %v490, 0.0
      %v500 = vadd.f32 %v491, 0.0
      %v501 = vadd.f32 %v492, 0.0
      %v506 = vperm.slane %v472, 2
      %v507 = vperm.slane %v472, 6
      %v508 = vperm.slane %v473, 2
      %v509 = vperm.slane %v473, 6
      %v510 = vperm.slane %v474, 2
      %v511 = vperm.slane %v474, 6
      %v512 = vperm.slane %v475, 2
      %v513 = vperm.slane %v475, 6
      %514 = vrot.lane.b32.xlu0 %v506, 32
      %v515 = vpop.permute.xlu0 %514
      %516 = vrot.lane.b32.xlu0 %v507, 32
      %v517 = vpop.permute.xlu0 %516
      %518 = vrot.lane.b32.xlu0 %v508, 32
      %v519 = vpop.permute.xlu0 %518
      %520 = vrot.lane.b32.xlu0 %v509, 32
      %v521 = vpop.permute.xlu0 %520
      %522 = vrot.lane.b32.xlu0 %v510, 32
      %v523 = vpop.permute.xlu0 %522
      %524 = vrot.lane.b32.xlu0 %v511, 32
      %v525 = vpop.permute.xlu0 %524
      %526 = vrot.lane.b32.xlu0 %v512, 32
      %v527 = vpop.permute.xlu0 %526
      %528 = vrot.lane.b32.xlu0 %v513, 32
      %v529 = vpop.permute.xlu0 %528
      %vm530 = vcmask 261120
      %v531 = vsel %vm530, %v515, %v517
      %v532 = vsel %vm530, %v517, %v519
      %v533 = vsel %vm530, %v519, %v521
      %v534 = vsel %vm530, %v521, %v523
      %v535 = vsel %vm530, %v523, %v525
      %v536 = vsel %vm530, %v525, %v527
      %v537 = vsel %vm530, %v527, %v529
      %v547 = vmul.f32 %v470, %v515
      %v548 = vmul.f32 %v454, %v531
      %v549 = vmul.f32 %v455, %v532
      %v550 = vmul.f32 %v456, %v533
      %v551 = vmul.f32 %v457, %v534
      %v552 = vmul.f32 %v458, %v535
      %v553 = vmul.f32 %v459, %v536
      %v554 = vmul.f32 %v460, %v537
      %v555 = vmul.f32 %v471, %v529
      %s556 = scalar_lea.vmem %s3, 1
      %v557 = vld [vmem:[%s556] sm:$0x1]
      %559 = vset.pattern.permute.xlu0 0
      %560 = vperm.xlu0 %559, %v557
      %v561 = vpop.permute.xlu0 %560
      %v563 = vperm.slane %v561, 0
      %v564 = vmul.f32 %v563, %v547
      %v565 = vmul.f32 %v563, %v548
      %v566 = vmul.f32 %v563, %v549
      %v567 = vmul.f32 %v563, %v550
      %v568 = vmul.f32 %v563, %v551
      %v569 = vmul.f32 %v563, %v552
      %v570 = vmul.f32 %v563, %v553
      %v571 = vmul.f32 %v563, %v554
      %v572 = vmul.f32 %v563, %v555
      %582 = vrot.lane.b32.xlu0 %v564, 1
      %v583 = vpop.permute.xlu0 %582
      %584 = vrot.lane.b32.xlu0 %v565, 1
      %v585 = vpop.permute.xlu0 %584
      %586 = vrot.lane.b32.xlu0 %v566, 1
      %v587 = vpop.permute.xlu0 %586
      %588 = vrot.lane.b32.xlu0 %v567, 1
      %v589 = vpop.permute.xlu0 %588
      %590 = vrot.lane.b32.xlu0 %v568, 1
      %v591 = vpop.permute.xlu0 %590
      %592 = vrot.lane.b32.xlu0 %v569, 1
      %v593 = vpop.permute.xlu0 %592
      %594 = vrot.lane.b32.xlu0 %v570, 1
      %v595 = vpop.permute.xlu0 %594
      %596 = vrot.lane.b32.xlu0 %v571, 1
      %v597 = vpop.permute.xlu0 %596
      %598 = vrot.lane.b32.xlu0 %v572, 1
      %v599 = vpop.permute.xlu0 %598
      %vm600 = vcmask 7168
      %v601 = vsel %vm600, %v583, %v585
      %v602 = vsel %vm600, %v585, %v587
      %v603 = vsel %vm600, %v587, %v589
      %v604 = vsel %vm600, %v589, %v591
      %v605 = vsel %vm600, %v591, %v593
      %v606 = vsel %vm600, %v593, %v595
      %v607 = vsel %vm600, %v595, %v597
      %v608 = vsel %vm600, %v597, %v599
      %v618 = vadd.f32 %v493, %v583
      %v619 = vadd.f32 %v494, %v601
      %v620 = vadd.f32 %v495, %v602
      %v621 = vadd.f32 %v496, %v603
      %v622 = vadd.f32 %v497, %v604
      %v623 = vadd.f32 %v498, %v605
      %v624 = vadd.f32 %v499, %v606
      %v625 = vadd.f32 %v500, %v607
      %v626 = vadd.f32 %v501, %v608
      %s627 = scalar_lea.vmem %s3, 2
      %v628 = vld [vmem:[%s627] sm:$0x1]
      %630 = vset.pattern.permute.xlu0 0
      %631 = vperm.xlu0 %630, %v628
      %v632 = vpop.permute.xlu0 %631
      %v634 = vperm.slane %v632, 0
      %v635 = vmul.f32 %v634, %v470
      %v636 = vmul.f32 %v634, %v454
      %v637 = vmul.f32 %v634, %v455
      %v638 = vmul.f32 %v634, %v456
      %v639 = vmul.f32 %v634, %v457
      %v640 = vmul.f32 %v634, %v458
      %v641 = vmul.f32 %v634, %v459
      %v642 = vmul.f32 %v634, %v460
      %v643 = vmul.f32 %v634, %v471
      %653 = vrot.lane.b32.xlu0 %v635, 32
      %v654 = vpop.permute.xlu0 %653
      %655 = vrot.lane.b32.xlu0 %v636, 32
      %v656 = vpop.permute.xlu0 %655
      %657 = vrot.lane.b32.xlu0 %v637, 32
      %v658 = vpop.permute.xlu0 %657
      %659 = vrot.lane.b32.xlu0 %v638, 32
      %v660 = vpop.permute.xlu0 %659
      %661 = vrot.lane.b32.xlu0 %v639, 32
      %v662 = vpop.permute.xlu0 %661
      %663 = vrot.lane.b32.xlu0 %v640, 32
      %v664 = vpop.permute.xlu0 %663
      %665 = vrot.lane.b32.xlu0 %v641, 32
      %v666 = vpop.permute.xlu0 %665
      %667 = vrot.lane.b32.xlu0 %v642, 32
      %v668 = vpop.permute.xlu0 %667
      %669 = vrot.lane.b32.xlu0 %v643, 32
      %v670 = vpop.permute.xlu0 %669
      %v671 = vsel %vm530, %v654, %v656
      %v672 = vsel %vm530, %v656, %v658
      %v673 = vsel %vm530, %v658, %v660
      %v674 = vsel %vm530, %v660, %v662
      %v675 = vsel %vm530, %v662, %v664
      %v676 = vsel %vm530, %v664, %v666
      %v677 = vsel %vm530, %v666, %v668
      %v678 = vsel %vm530, %v668, %v670
      %v688 = vadd.f32 %v618, %v654
      %v689 = vadd.f32 %v619, %v671
      %v690 = vadd.f32 %v620, %v672
      %v691 = vadd.f32 %v621, %v673
      %v692 = vadd.f32 %v622, %v674
      %v693 = vadd.f32 %v623, %v675
      %v694 = vadd.f32 %v624, %v676
      %v695 = vadd.f32 %v625, %v677
      %v696 = vadd.f32 %v626, %v678
      %v705 = vmul.f32 %v470, %v506
      %v706 = vmul.f32 %v454, %v507
      %v707 = vmul.f32 %v455, %v508
      %v708 = vmul.f32 %v456, %v509
      %v709 = vmul.f32 %v457, %v510
      %v710 = vmul.f32 %v458, %v511
      %v711 = vmul.f32 %v459, %v512
      %v712 = vmul.f32 %v460, %v513
      %s713 = scalar_lea.vmem %s3, 3
      %v714 = vld [vmem:[%s713] sm:$0x1]
      %716 = vset.pattern.permute.xlu0 0
      %717 = vperm.xlu0 %716, %v714
      %v718 = vpop.permute.xlu0 %717
      %v720 = vperm.slane %v718, 0
      %v721 = vmul.f32 %v720, %v705
      %v722 = vmul.f32 %v720, %v706
      %v723 = vmul.f32 %v720, %v707
      %v724 = vmul.f32 %v720, %v708
      %v725 = vmul.f32 %v720, %v709
      %v726 = vmul.f32 %v720, %v710
      %v727 = vmul.f32 %v720, %v711
      %v728 = vmul.f32 %v720, %v712
      %737 = vrot.lane.b32.xlu0 %v721, 33
      %v738 = vpop.permute.xlu0 %737
      %739 = vrot.lane.b32.xlu0 %v722, 33
      %v740 = vpop.permute.xlu0 %739
      %741 = vrot.lane.b32.xlu0 %v723, 33
      %v742 = vpop.permute.xlu0 %741
      %743 = vrot.lane.b32.xlu0 %v724, 33
      %v744 = vpop.permute.xlu0 %743
      %745 = vrot.lane.b32.xlu0 %v725, 33
      %v746 = vpop.permute.xlu0 %745
      %747 = vrot.lane.b32.xlu0 %v726, 33
      %v748 = vpop.permute.xlu0 %747
      %749 = vrot.lane.b32.xlu0 %v727, 33
      %v750 = vpop.permute.xlu0 %749
      %751 = vrot.lane.b32.xlu0 %v728, 33
      %v752 = vpop.permute.xlu0 %751
      %v753 = vsel %vm453, %v738, %v740
      %v754 = vsel %vm453, %v740, %v742
      %v755 = vsel %vm453, %v742, %v744
      %v756 = vsel %vm453, %v744, %v746
      %v757 = vsel %vm453, %v746, %v748
      %v758 = vsel %vm453, %v748, %v750
      %v759 = vsel %vm453, %v750, %v752
      %v769 = vadd.f32 %v688, %v738
      %v770 = vadd.f32 %v689, %v753
      %v771 = vadd.f32 %v690, %v754
      %v772 = vadd.f32 %v691, %v755
      %v773 = vadd.f32 %v692, %v756
      %v774 = vadd.f32 %v693, %v757
      %v775 = vadd.f32 %v694, %v758
      %v776 = vadd.f32 %v695, %v759
      %v777 = vadd.f32 %v696, %v752
      %v778 = vperm.slane %v472, 0
      %v779 = vperm.slane %v472, 4
      %v780 = vperm.slane %v473, 0
      %v781 = vperm.slane %v473, 4
      %v782 = vperm.slane %v474, 0
      %v783 = vperm.slane %v474, 4
      %v784 = vperm.slane %v475, 0
      %v785 = vperm.slane %v475, 4
      %786 = vrot.lane.b32.xlu0 %v778, 34
      %v787 = vpop.permute.xlu0 %786
      %788 = vrot.lane.b32.xlu0 %v779, 34
      %v789 = vpop.permute.xlu0 %788
      %790 = vrot.lane.b32.xlu0 %v780, 34
      %v791 = vpop.permute.xlu0 %790
      %792 = vrot.lane.b32.xlu0 %v781, 34
      %v793 = vpop.permute.xlu0 %792
      %794 = vrot.lane.b32.xlu0 %v782, 34
      %v795 = vpop.permute.xlu0 %794
      %796 = vrot.lane.b32.xlu0 %v783, 34
      %v797 = vpop.permute.xlu0 %796
      %798 = vrot.lane.b32.xlu0 %v784, 34
      %v799 = vpop.permute.xlu0 %798
      %800 = vrot.lane.b32.xlu0 %v785, 34
      %v801 = vpop.permute.xlu0 %800
      %vm802 = vcmask 277504
      %v803 = vsel %vm802, %v787, %v789
      %v804 = vsel %vm802, %v789, %v791
      %v805 = vsel %vm802, %v791, %v793
      %v806 = vsel %vm802, %v793, %v795
      %v807 = vsel %vm802, %v795, %v797
      %v808 = vsel %vm802, %v797, %v799
      %v809 = vsel %vm802, %v799, %v801
      %v819 = vmul.f32 %v470, %v787
      %v820 = vmul.f32 %v454, %v803
      %v821 = vmul.f32 %v455, %v804
      %v822 = vmul.f32 %v456, %v805
      %v823 = vmul.f32 %v457, %v806
      %v824 = vmul.f32 %v458, %v807
      %v825 = vmul.f32 %v459, %v808
      %v826 = vmul.f32 %v460, %v809
      %v827 = vmul.f32 %v471, %v801
      %s828 = scalar_lea.vmem %s3, 4
      %v829 = vld [vmem:[%s828] sm:$0x1]
      %831 = vset.pattern.permute.xlu0 0
      %832 = vperm.xlu0 %831, %v829
      %v833 = vpop.permute.xlu0 %832
      %v835 = vperm.slane %v833, 0
      %v836 = vmul.f32 %v835, %v819
      %v837 = vmul.f32 %v835, %v820
      %v838 = vmul.f32 %v835, %v821
      %v839 = vmul.f32 %v835, %v822
      %v840 = vmul.f32 %v835, %v823
      %v841 = vmul.f32 %v835, %v824
      %v842 = vmul.f32 %v835, %v825
      %v843 = vmul.f32 %v835, %v826
      %v844 = vmul.f32 %v835, %v827
      %v845 = vadd.f32 %v836, 0.0
      %v846 = vadd.f32 %v837, 0.0
      %v847 = vadd.f32 %v838, 0.0
      %v848 = vadd.f32 %v839, 0.0
      %v849 = vadd.f32 %v840, 0.0
      %v850 = vadd.f32 %v841, 0.0
      %v851 = vadd.f32 %v842, 0.0
      %v852 = vadd.f32 %v843, 0.0
      %v853 = vadd.f32 %v844, 0.0
      %s854 = scalar_lea.vmem %s3, 5
      %v855 = vld [vmem:[%s854] sm:$0x1]
      %857 = vset.pattern.permute.xlu0 0
      %858 = vperm.xlu0 %857, %v855
      %v859 = vpop.permute.xlu0 %858
      %v861 = vperm.slane %v859, 0
      %v862 = vmul.f32 %v861, %v470
      %v863 = vmul.f32 %v861, %v454
      %v864 = vmul.f32 %v861, %v455
      %v865 = vmul.f32 %v861, %v456
      %v866 = vmul.f32 %v861, %v457
      %v867 = vmul.f32 %v861, %v458
      %v868 = vmul.f32 %v861, %v459
      %v869 = vmul.f32 %v861, %v460
      %v870 = vmul.f32 %v861, %v471
      %880 = vrot.lane.b32.xlu0 %v862, 1
      %v881 = vpop.permute.xlu0 %880
      %882 = vrot.lane.b32.xlu0 %v863, 1
      %v883 = vpop.permute.xlu0 %882
      %884 = vrot.lane.b32.xlu0 %v864, 1
      %v885 = vpop.permute.xlu0 %884
      %886 = vrot.lane.b32.xlu0 %v865, 1
      %v887 = vpop.permute.xlu0 %886
      %888 = vrot.lane.b32.xlu0 %v866, 1
      %v889 = vpop.permute.xlu0 %888
      %890 = vrot.lane.b32.xlu0 %v867, 1
      %v891 = vpop.permute.xlu0 %890
      %892 = vrot.lane.b32.xlu0 %v868, 1
      %v893 = vpop.permute.xlu0 %892
      %894 = vrot.lane.b32.xlu0 %v869, 1
      %v895 = vpop.permute.xlu0 %894
      %896 = vrot.lane.b32.xlu0 %v870, 1
      %v897 = vpop.permute.xlu0 %896
      %v898 = vsel %vm600, %v881, %v883
      %v899 = vsel %vm600, %v883, %v885
      %v900 = vsel %vm600, %v885, %v887
      %v901 = vsel %vm600, %v887, %v889
      %v902 = vsel %vm600, %v889, %v891
      %v903 = vsel %vm600, %v891, %v893
      %v904 = vsel %vm600, %v893, %v895
      %v905 = vsel %vm600, %v895, %v897
      %v915 = vadd.f32 %v845, %v881
      %v916 = vadd.f32 %v846, %v898
      %v917 = vadd.f32 %v847, %v899
      %v918 = vadd.f32 %v848, %v900
      %v919 = vadd.f32 %v849, %v901
      %v920 = vadd.f32 %v850, %v902
      %v921 = vadd.f32 %v851, %v903
      %v922 = vadd.f32 %v852, %v904
      %v923 = vadd.f32 %v853, %v905
      %924 = vrot.lane.b32.xlu0 %v778, 2
      %v925 = vpop.permute.xlu0 %924
      %926 = vrot.lane.b32.xlu0 %v779, 2
      %v927 = vpop.permute.xlu0 %926
      %928 = vrot.lane.b32.xlu0 %v780, 2
      %v929 = vpop.permute.xlu0 %928
      %930 = vrot.lane.b32.xlu0 %v781, 2
      %v931 = vpop.permute.xlu0 %930
      %932 = vrot.lane.b32.xlu0 %v782, 2
      %v933 = vpop.permute.xlu0 %932
      %934 = vrot.lane.b32.xlu0 %v783, 2
      %v935 = vpop.permute.xlu0 %934
      %936 = vrot.lane.b32.xlu0 %v784, 2
      %v937 = vpop.permute.xlu0 %936
      %938 = vrot.lane.b32.xlu0 %v785, 2
      %v939 = vpop.permute.xlu0 %938
      %vm940 = vcmask 15360
      %v941 = vsel %vm940, %v925, %v927
      %v942 = vsel %vm940, %v927, %v929
      %v943 = vsel %vm940, %v929, %v931
      %v944 = vsel %vm940, %v931, %v933
      %v945 = vsel %vm940, %v933, %v935
      %v946 = vsel %vm940, %v935, %v937
      %v947 = vsel %vm940, %v937, %v939
      %v957 = vmul.f32 %v470, %v925
      %v958 = vmul.f32 %v454, %v941
      %v959 = vmul.f32 %v455, %v942
      %v960 = vmul.f32 %v456, %v943
      %v961 = vmul.f32 %v457, %v944
      %v962 = vmul.f32 %v458, %v945
      %v963 = vmul.f32 %v459, %v946
      %v964 = vmul.f32 %v460, %v947
      %v965 = vmul.f32 %v471, %v939
      %s966 = scalar_lea.vmem %s3, 6
      %v967 = vld [vmem:[%s966] sm:$0x1]
      %969 = vset.pattern.permute.xlu0 0
      %970 = vperm.xlu0 %969, %v967
      %v971 = vpop.permute.xlu0 %970
      %v973 = vperm.slane %v971, 0
      %v974 = vmul.f32 %v973, %v957
      %v975 = vmul.f32 %v973, %v958
      %v976 = vmul.f32 %v973, %v959
      %v977 = vmul.f32 %v973, %v960
      %v978 = vmul.f32 %v973, %v961
      %v979 = vmul.f32 %v973, %v962
      %v980 = vmul.f32 %v973, %v963
      %v981 = vmul.f32 %v973, %v964
      %v982 = vmul.f32 %v973, %v965
      %992 = vrot.lane.b32.xlu0 %v974, 32
      %v993 = vpop.permute.xlu0 %992
      %994 = vrot.lane.b32.xlu0 %v975, 32
      %v995 = vpop.permute.xlu0 %994
      %996 = vrot.lane.b32.xlu0 %v976, 32
      %v997 = vpop.permute.xlu0 %996
      %998 = vrot.lane.b32.xlu0 %v977, 32
      %v999 = vpop.permute.xlu0 %998
      %1000 = vrot.lane.b32.xlu0 %v978, 32
      %v1001 = vpop.permute.xlu0 %1000
      %1002 = vrot.lane.b32.xlu0 %v979, 32
      %v1003 = vpop.permute.xlu0 %1002
      %1004 = vrot.lane.b32.xlu0 %v980, 32
      %v1005 = vpop.permute.xlu0 %1004
      %1006 = vrot.lane.b32.xlu0 %v981, 32
      %v1007 = vpop.permute.xlu0 %1006
      %1008 = vrot.lane.b32.xlu0 %v982, 32
      %v1009 = vpop.permute.xlu0 %1008
      %v1010 = vsel %vm530, %v993, %v995
      %v1011 = vsel %vm530, %v995, %v997
      %v1012 = vsel %vm530, %v997, %v999
      %v1013 = vsel %vm530, %v999, %v1001
      %v1014 = vsel %vm530, %v1001, %v1003
      %v1015 = vsel %vm530, %v1003, %v1005
      %v1016 = vsel %vm530, %v1005, %v1007
      %v1017 = vsel %vm530, %v1007, %v1009
      %v1027 = vadd.f32 %v915, %v993
      %v1028 = vadd.f32 %v916, %v1010
      %v1029 = vadd.f32 %v917, %v1011
      %v1030 = vadd.f32 %v918, %v1012
      %v1031 = vadd.f32 %v919, %v1013
      %v1032 = vadd.f32 %v920, %v1014
      %v1033 = vadd.f32 %v921, %v1015
      %v1034 = vadd.f32 %v922, %v1016
      %v1035 = vadd.f32 %v923, %v1017
      %s1036 = scalar_lea.vmem %s3, 7
      %v1037 = vld [vmem:[%s1036] sm:$0x1]
      %1039 = vset.pattern.permute.xlu0 0
      %1040 = vperm.xlu0 %1039, %v1037
      %v1041 = vpop.permute.xlu0 %1040
      %v1043 = vperm.slane %v1041, 0
      %v1044 = vmul.f32 %v1043, %v470
      %v1045 = vmul.f32 %v1043, %v454
      %v1046 = vmul.f32 %v1043, %v455
      %v1047 = vmul.f32 %v1043, %v456
      %v1048 = vmul.f32 %v1043, %v457
      %v1049 = vmul.f32 %v1043, %v458
      %v1050 = vmul.f32 %v1043, %v459
      %v1051 = vmul.f32 %v1043, %v460
      %v1052 = vmul.f32 %v1043, %v471
      %1062 = vrot.lane.b32.xlu0 %v1044, 33
      %v1063 = vpop.permute.xlu0 %1062
      %1064 = vrot.lane.b32.xlu0 %v1045, 33
      %v1065 = vpop.permute.xlu0 %1064
      %1066 = vrot.lane.b32.xlu0 %v1046, 33
      %v1067 = vpop.permute.xlu0 %1066
      %1068 = vrot.lane.b32.xlu0 %v1047, 33
      %v1069 = vpop.permute.xlu0 %1068
      %1070 = vrot.lane.b32.xlu0 %v1048, 33
      %v1071 = vpop.permute.xlu0 %1070
      %1072 = vrot.lane.b32.xlu0 %v1049, 33
      %v1073 = vpop.permute.xlu0 %1072
      %1074 = vrot.lane.b32.xlu0 %v1050, 33
      %v1075 = vpop.permute.xlu0 %1074
      %1076 = vrot.lane.b32.xlu0 %v1051, 33
      %v1077 = vpop.permute.xlu0 %1076
      %1078 = vrot.lane.b32.xlu0 %v1052, 33
      %v1079 = vpop.permute.xlu0 %1078
      %v1080 = vsel %vm453, %v1063, %v1065
      %v1081 = vsel %vm453, %v1065, %v1067
      %v1082 = vsel %vm453, %v1067, %v1069
      %v1083 = vsel %vm453, %v1069, %v1071
      %v1084 = vsel %vm453, %v1071, %v1073
      %v1085 = vsel %vm453, %v1073, %v1075
      %v1086 = vsel %vm453, %v1075, %v1077
      %v1087 = vsel %vm453, %v1077, %v1079
      %v1097 = vadd.f32 %v1027, %v1063
      %v1098 = vadd.f32 %v1028, %v1080
      %v1099 = vadd.f32 %v1029, %v1081
      %v1100 = vadd.f32 %v1030, %v1082
      %v1101 = vadd.f32 %v1031, %v1083
      %v1102 = vadd.f32 %v1032, %v1084
      %v1103 = vadd.f32 %v1033, %v1085
      %v1104 = vadd.f32 %v1034, %v1086
      %v1105 = vadd.f32 %v1035, %v1087
      %s1106 = scalar_lea.vmem %s3, 8
      %v1107 = vld [vmem:[%s1106] sm:$0x1]
      %1109 = vset.pattern.permute.xlu0 0
      %1110 = vperm.xlu0 %1109, %v1107
      %v1111 = vpop.permute.xlu0 %1110
      %v1113 = vperm.slane %v1111, 0
      %v1114 = vmul.f32 %v1113, %v470
      %v1115 = vmul.f32 %v1113, %v454
      %v1116 = vmul.f32 %v1113, %v455
      %v1117 = vmul.f32 %v1113, %v456
      %v1118 = vmul.f32 %v1113, %v457
      %v1119 = vmul.f32 %v1113, %v458
      %v1120 = vmul.f32 %v1113, %v459
      %v1121 = vmul.f32 %v1113, %v460
      %v1122 = vmul.f32 %v1113, %v471
      %v1123 = vadd.f32 %v1114, 0.0
      %v1124 = vadd.f32 %v1115, 0.0
      %v1125 = vadd.f32 %v1116, 0.0
      %v1126 = vadd.f32 %v1117, 0.0
      %v1127 = vadd.f32 %v1118, 0.0
      %v1128 = vadd.f32 %v1119, 0.0
      %v1129 = vadd.f32 %v1120, 0.0
      %v1130 = vadd.f32 %v1121, 0.0
      %v1131 = vadd.f32 %v1122, 0.0
      %1132 = vrot.lane.b32.xlu0 %v506, 64
      %v1133 = vpop.permute.xlu0 %1132
      %1134 = vrot.lane.b32.xlu0 %v507, 64
      %v1135 = vpop.permute.xlu0 %1134
      %1136 = vrot.lane.b32.xlu0 %v508, 64
      %v1137 = vpop.permute.xlu0 %1136
      %1138 = vrot.lane.b32.xlu0 %v509, 64
      %v1139 = vpop.permute.xlu0 %1138
      %1140 = vrot.lane.b32.xlu0 %v510, 64
      %v1141 = vpop.permute.xlu0 %1140
      %1142 = vrot.lane.b32.xlu0 %v511, 64
      %v1143 = vpop.permute.xlu0 %1142
      %1144 = vrot.lane.b32.xlu0 %v512, 64
      %v1145 = vpop.permute.xlu0 %1144
      %1146 = vrot.lane.b32.xlu0 %v513, 64
      %v1147 = vpop.permute.xlu0 %1146
      %vm1148 = vcmask 523264
      %v1149 = vsel %vm1148, %v1133, %v1135
      %v1150 = vsel %vm1148, %v1135, %v1137
      %v1151 = vsel %vm1148, %v1137, %v1139
      %v1152 = vsel %vm1148, %v1139, %v1141
      %v1153 = vsel %vm1148, %v1141, %v1143
      %v1154 = vsel %vm1148, %v1143, %v1145
      %v1155 = vsel %vm1148, %v1145, %v1147
      %v1165 = vmul.f32 %v470, %v1133
      %v1166 = vmul.f32 %v454, %v1149
      %v1167 = vmul.f32 %v455, %v1150
      %v1168 = vmul.f32 %v456, %v1151
      %v1169 = vmul.f32 %v457, %v1152
      %v1170 = vmul.f32 %v458, %v1153
      %v1171 = vmul.f32 %v459, %v1154
      %v1172 = vmul.f32 %v460, %v1155
      %v1173 = vmul.f32 %v471, %v1147
      %s1174 = scalar_lea.vmem %s3, 9
      %v1175 = vld [vmem:[%s1174] sm:$0x1]
      %1177 = vset.pattern.permute.xlu0 0
      %1178 = vperm.xlu0 %1177, %v1175
      %v1179 = vpop.permute.xlu0 %1178
      %v1181 = vperm.slane %v1179, 0
      %v1182 = vmul.f32 %v1181, %v1165
      %v1183 = vmul.f32 %v1181, %v1166
      %v1184 = vmul.f32 %v1181, %v1167
      %v1185 = vmul.f32 %v1181, %v1168
      %v1186 = vmul.f32 %v1181, %v1169
      %v1187 = vmul.f32 %v1181, %v1170
      %v1188 = vmul.f32 %v1181, %v1171
      %v1189 = vmul.f32 %v1181, %v1172
      %v1190 = vmul.f32 %v1181, %v1173
      %1200 = vrot.lane.b32.xlu0 %v1182, 1
      %v1201 = vpop.permute.xlu0 %1200
      %1202 = vrot.lane.b32.xlu0 %v1183, 1
      %v1203 = vpop.permute.xlu0 %1202
      %1204 = vrot.lane.b32.xlu0 %v1184, 1
      %v1205 = vpop.permute.xlu0 %1204
      %1206 = vrot.lane.b32.xlu0 %v1185, 1
      %v1207 = vpop.permute.xlu0 %1206
      %1208 = vrot.lane.b32.xlu0 %v1186, 1
      %v1209 = vpop.permute.xlu0 %1208
      %1210 = vrot.lane.b32.xlu0 %v1187, 1
      %v1211 = vpop.permute.xlu0 %1210
      %1212 = vrot.lane.b32.xlu0 %v1188, 1
      %v1213 = vpop.permute.xlu0 %1212
      %1214 = vrot.lane.b32.xlu0 %v1189, 1
      %v1215 = vpop.permute.xlu0 %1214
      %1216 = vrot.lane.b32.xlu0 %v1190, 1
      %v1217 = vpop.permute.xlu0 %1216
      %v1218 = vsel %vm600, %v1201, %v1203
      %v1219 = vsel %vm600, %v1203, %v1205
      %v1220 = vsel %vm600, %v1205, %v1207
      %v1221 = vsel %vm600, %v1207, %v1209
      %v1222 = vsel %vm600, %v1209, %v1211
      %v1223 = vsel %vm600, %v1211, %v1213
      %v1224 = vsel %vm600, %v1213, %v1215
      %v1225 = vsel %vm600, %v1215, %v1217
      %v1235 = vadd.f32 %v1123, %v1201
      %v1236 = vadd.f32 %v1124, %v1218
      %v1237 = vadd.f32 %v1125, %v1219
      %v1238 = vadd.f32 %v1126, %v1220
      %v1239 = vadd.f32 %v1127, %v1221
      %v1240 = vadd.f32 %v1128, %v1222
      %v1241 = vadd.f32 %v1129, %v1223
      %v1242 = vadd.f32 %v1130, %v1224
      %v1243 = vadd.f32 %v1131, %v1225
      %s1244 = scalar_lea.vmem %s3, 10
      %v1245 = vld [vmem:[%s1244] sm:$0x1]
      %1247 = vset.pattern.permute.xlu0 0
      %1248 = vperm.xlu0 %1247, %v1245
      %v1249 = vpop.permute.xlu0 %1248
      %v1251 = vperm.slane %v1249, 0
      %v1252 = vmul.f32 %v1251, %v470
      %v1253 = vmul.f32 %v1251, %v454
      %v1254 = vmul.f32 %v1251, %v455
      %v1255 = vmul.f32 %v1251, %v456
      %v1256 = vmul.f32 %v1251, %v457
      %v1257 = vmul.f32 %v1251, %v458
      %v1258 = vmul.f32 %v1251, %v459
      %v1259 = vmul.f32 %v1251, %v460
      %v1260 = vmul.f32 %v1251, %v471
      %1270 = vrot.lane.b32.xlu0 %v1252, 32
      %v1271 = vpop.permute.xlu0 %1270
      %1272 = vrot.lane.b32.xlu0 %v1253, 32
      %v1273 = vpop.permute.xlu0 %1272
      %1274 = vrot.lane.b32.xlu0 %v1254, 32
      %v1275 = vpop.permute.xlu0 %1274
      %1276 = vrot.lane.b32.xlu0 %v1255, 32
      %v1277 = vpop.permute.xlu0 %1276
      %1278 = vrot.lane.b32.xlu0 %v1256, 32
      %v1279 = vpop.permute.xlu0 %1278
      %1280 = vrot.lane.b32.xlu0 %v1257, 32
      %v1281 = vpop.permute.xlu0 %1280
      %1282 = vrot.lane.b32.xlu0 %v1258, 32
      %v1283 = vpop.permute.xlu0 %1282
      %1284 = vrot.lane.b32.xlu0 %v1259, 32
      %v1285 = vpop.permute.xlu0 %1284
      %1286 = vrot.lane.b32.xlu0 %v1260, 32
      %v1287 = vpop.permute.xlu0 %1286
      %v1288 = vsel %vm530, %v1271, %v1273
      %v1289 = vsel %vm530, %v1273, %v1275
      %v1290 = vsel %vm530, %v1275, %v1277
      %v1291 = vsel %vm530, %v1277, %v1279
      %v1292 = vsel %vm530, %v1279, %v1281
      %v1293 = vsel %vm530, %v1281, %v1283
      %v1294 = vsel %vm530, %v1283, %v1285
      %v1295 = vsel %vm530, %v1285, %v1287
      %v1305 = vadd.f32 %v1235, %v1271
      %v1306 = vadd.f32 %v1236, %v1288
      %v1307 = vadd.f32 %v1237, %v1289
      %v1308 = vadd.f32 %v1238, %v1290
      %v1309 = vadd.f32 %v1239, %v1291
      %v1310 = vadd.f32 %v1240, %v1292
      %v1311 = vadd.f32 %v1241, %v1293
      %v1312 = vadd.f32 %v1242, %v1294
      %v1313 = vadd.f32 %v1243, %v1295
      %s1314 = scalar_lea.vmem %s3, 11
      %v1315 = vld [vmem:[%s1314] sm:$0x1]
      %1317 = vset.pattern.permute.xlu0 0
      %1318 = vperm.xlu0 %1317, %v1315
      %v1319 = vpop.permute.xlu0 %1318
      %v1321 = vperm.slane %v1319, 0
      %v1322 = vmul.f32 %v1321, %v547
      %v1323 = vmul.f32 %v1321, %v548
      %v1324 = vmul.f32 %v1321, %v549
      %v1325 = vmul.f32 %v1321, %v550
      %v1326 = vmul.f32 %v1321, %v551
      %v1327 = vmul.f32 %v1321, %v552
      %v1328 = vmul.f32 %v1321, %v553
      %v1329 = vmul.f32 %v1321, %v554
      %v1330 = vmul.f32 %v1321, %v555
      %1340 = vrot.lane.b32.xlu0 %v1322, 33
      %v1341 = vpop.permute.xlu0 %1340
      %1342 = vrot.lane.b32.xlu0 %v1323, 33
      %v1343 = vpop.permute.xlu0 %1342
      %1344 = vrot.lane.b32.xlu0 %v1324, 33
      %v1345 = vpop.permute.xlu0 %1344
      %1346 = vrot.lane.b32.xlu0 %v1325, 33
      %v1347 = vpop.permute.xlu0 %1346
      %1348 = vrot.lane.b32.xlu0 %v1326, 33
      %v1349 = vpop.permute.xlu0 %1348
      %1350 = vrot.lane.b32.xlu0 %v1327, 33
      %v1351 = vpop.permute.xlu0 %1350
      %1352 = vrot.lane.b32.xlu0 %v1328, 33
      %v1353 = vpop.permute.xlu0 %1352
      %1354 = vrot.lane.b32.xlu0 %v1329, 33
      %v1355 = vpop.permute.xlu0 %1354
      %1356 = vrot.lane.b32.xlu0 %v1330, 33
      %v1357 = vpop.permute.xlu0 %1356
      %v1358 = vsel %vm453, %v1341, %v1343
      %v1359 = vsel %vm453, %v1343, %v1345
      %v1360 = vsel %vm453, %v1345, %v1347
      %v1361 = vsel %vm453, %v1347, %v1349
      %v1362 = vsel %vm453, %v1349, %v1351
      %v1363 = vsel %vm453, %v1351, %v1353
      %v1364 = vsel %vm453, %v1353, %v1355
      %v1365 = vsel %vm453, %v1355, %v1357
      %v1375 = vadd.f32 %v1305, %v1341
      %v1376 = vadd.f32 %v1306, %v1358
      %v1377 = vadd.f32 %v1307, %v1359
      %v1378 = vadd.f32 %v1308, %v1360
      %v1379 = vadd.f32 %v1309, %v1361
      %v1380 = vadd.f32 %v1310, %v1362
      %v1381 = vadd.f32 %v1311, %v1363
      %v1382 = vadd.f32 %v1312, %v1364
      %v1383 = vadd.f32 %v1313, %v1365
      %1384 = vrot.lane.b32.xlu0 %v778, 66
      %v1385 = vpop.permute.xlu0 %1384
      %1386 = vrot.lane.b32.xlu0 %v779, 66
      %v1387 = vpop.permute.xlu0 %1386
      %1388 = vrot.lane.b32.xlu0 %v780, 66
      %v1389 = vpop.permute.xlu0 %1388
      %1390 = vrot.lane.b32.xlu0 %v781, 66
      %v1391 = vpop.permute.xlu0 %1390
      %1392 = vrot.lane.b32.xlu0 %v782, 66
      %v1393 = vpop.permute.xlu0 %1392
      %1394 = vrot.lane.b32.xlu0 %v783, 66
      %v1395 = vpop.permute.xlu0 %1394
      %1396 = vrot.lane.b32.xlu0 %v784, 66
      %v1397 = vpop.permute.xlu0 %1396
      %1398 = vrot.lane.b32.xlu0 %v785, 66
      %v1399 = vpop.permute.xlu0 %1398
      %vm1400 = vcmask 539648
      %v1401 = vsel %vm1400, %v1385, %v1387
      %v1402 = vsel %vm1400, %v1387, %v1389
      %v1403 = vsel %vm1400, %v1389, %v1391
      %v1404 = vsel %vm1400, %v1391, %v1393
      %v1405 = vsel %vm1400, %v1393, %v1395
      %v1406 = vsel %vm1400, %v1395, %v1397
      %v1407 = vsel %vm1400, %v1397, %v1399
      %v1417 = vmul.f32 %v470, %v1385
      %v1418 = vmul.f32 %v454, %v1401
      %v1419 = vmul.f32 %v455, %v1402
      %v1420 = vmul.f32 %v456, %v1403
      %v1421 = vmul.f32 %v457, %v1404
      %v1422 = vmul.f32 %v458, %v1405
      %v1423 = vmul.f32 %v459, %v1406
      %v1424 = vmul.f32 %v460, %v1407
      %v1425 = vmul.f32 %v471, %v1399
      %s1426 = scalar_lea.vmem %s3, 12
      %v1427 = vld [vmem:[%s1426] sm:$0x1]
      %1429 = vset.pattern.permute.xlu0 0
      %1430 = vperm.xlu0 %1429, %v1427
      %v1431 = vpop.permute.xlu0 %1430
      %v1433 = vperm.slane %v1431, 0
      %v1434 = vmul.f32 %v1433, %v1417
      %v1435 = vmul.f32 %v1433, %v1418
      %v1436 = vmul.f32 %v1433, %v1419
      %v1437 = vmul.f32 %v1433, %v1420
      %v1438 = vmul.f32 %v1433, %v1421
      %v1439 = vmul.f32 %v1433, %v1422
      %v1440 = vmul.f32 %v1433, %v1423
      %v1441 = vmul.f32 %v1433, %v1424
      %v1442 = vmul.f32 %v1433, %v1425
      %v1443 = vadd.f32 %v1434, 0.0
      %v1444 = vadd.f32 %v1435, 0.0
      %v1445 = vadd.f32 %v1436, 0.0
      %v1446 = vadd.f32 %v1437, 0.0
      %v1447 = vadd.f32 %v1438, 0.0
      %v1448 = vadd.f32 %v1439, 0.0
      %v1449 = vadd.f32 %v1440, 0.0
      %v1450 = vadd.f32 %v1441, 0.0
      %v1451 = vadd.f32 %v1442, 0.0
      %s1452 = scalar_lea.vmem %s3, 13
      %v1453 = vld [vmem:[%s1452] sm:$0x1]
      %1455 = vset.pattern.permute.xlu0 0
      %1456 = vperm.xlu0 %1455, %v1453
      %v1457 = vpop.permute.xlu0 %1456
      %v1459 = vperm.slane %v1457, 0
      %v1460 = vmul.f32 %v1459, %v470
      %v1461 = vmul.f32 %v1459, %v454
      %v1462 = vmul.f32 %v1459, %v455
      %v1463 = vmul.f32 %v1459, %v456
      %v1464 = vmul.f32 %v1459, %v457
      %v1465 = vmul.f32 %v1459, %v458
      %v1466 = vmul.f32 %v1459, %v459
      %v1467 = vmul.f32 %v1459, %v460
      %v1468 = vmul.f32 %v1459, %v471
      %1478 = vrot.lane.b32.xlu0 %v1460, 1
      %v1479 = vpop.permute.xlu0 %1478
      %1480 = vrot.lane.b32.xlu0 %v1461, 1
      %v1481 = vpop.permute.xlu0 %1480
      %1482 = vrot.lane.b32.xlu0 %v1462, 1
      %v1483 = vpop.permute.xlu0 %1482
      %1484 = vrot.lane.b32.xlu0 %v1463, 1
      %v1485 = vpop.permute.xlu0 %1484
      %1486 = vrot.lane.b32.xlu0 %v1464, 1
      %v1487 = vpop.permute.xlu0 %1486
      %1488 = vrot.lane.b32.xlu0 %v1465, 1
      %v1489 = vpop.permute.xlu0 %1488
      %1490 = vrot.lane.b32.xlu0 %v1466, 1
      %v1491 = vpop.permute.xlu0 %1490
      %1492 = vrot.lane.b32.xlu0 %v1467, 1
      %v1493 = vpop.permute.xlu0 %1492
      %1494 = vrot.lane.b32.xlu0 %v1468, 1
      %v1495 = vpop.permute.xlu0 %1494
      %v1496 = vsel %vm600, %v1479, %v1481
      %v1497 = vsel %vm600, %v1481, %v1483
      %v1498 = vsel %vm600, %v1483, %v1485
      %v1499 = vsel %vm600, %v1485, %v1487
      %v1500 = vsel %vm600, %v1487, %v1489
      %v1501 = vsel %vm600, %v1489, %v1491
      %v1502 = vsel %vm600, %v1491, %v1493
      %v1503 = vsel %vm600, %v1493, %v1495
      %v1513 = vadd.f32 %v1443, %v1479
      %v1514 = vadd.f32 %v1444, %v1496
      %v1515 = vadd.f32 %v1445, %v1497
      %v1516 = vadd.f32 %v1446, %v1498
      %v1517 = vadd.f32 %v1447, %v1499
      %v1518 = vadd.f32 %v1448, %v1500
      %v1519 = vadd.f32 %v1449, %v1501
      %v1520 = vadd.f32 %v1450, %v1502
      %v1521 = vadd.f32 %v1451, %v1503
      %s1522 = scalar_lea.vmem %s3, 14
      %v1523 = vld [vmem:[%s1522] sm:$0x1]
      %1525 = vset.pattern.permute.xlu0 0
      %1526 = vperm.xlu0 %1525, %v1523
      %v1527 = vpop.permute.xlu0 %1526
      %v1529 = vperm.slane %v1527, 0
      %v1530 = vmul.f32 %v1529, %v819
      %v1531 = vmul.f32 %v1529, %v820
      %v1532 = vmul.f32 %v1529, %v821
      %v1533 = vmul.f32 %v1529, %v822
      %v1534 = vmul.f32 %v1529, %v823
      %v1535 = vmul.f32 %v1529, %v824
      %v1536 = vmul.f32 %v1529, %v825
      %v1537 = vmul.f32 %v1529, %v826
      %v1538 = vmul.f32 %v1529, %v827
      %1548 = vrot.lane.b32.xlu0 %v1530, 32
      %v1549 = vpop.permute.xlu0 %1548
      %1550 = vrot.lane.b32.xlu0 %v1531, 32
      %v1551 = vpop.permute.xlu0 %1550
      %1552 = vrot.lane.b32.xlu0 %v1532, 32
      %v1553 = vpop.permute.xlu0 %1552
      %1554 = vrot.lane.b32.xlu0 %v1533, 32
      %v1555 = vpop.permute.xlu0 %1554
      %1556 = vrot.lane.b32.xlu0 %v1534, 32
      %v1557 = vpop.permute.xlu0 %1556
      %1558 = vrot.lane.b32.xlu0 %v1535, 32
      %v1559 = vpop.permute.xlu0 %1558
      %1560 = vrot.lane.b32.xlu0 %v1536, 32
      %v1561 = vpop.permute.xlu0 %1560
      %1562 = vrot.lane.b32.xlu0 %v1537, 32
      %v1563 = vpop.permute.xlu0 %1562
      %1564 = vrot.lane.b32.xlu0 %v1538, 32
      %v1565 = vpop.permute.xlu0 %1564
      %v1566 = vsel %vm530, %v1549, %v1551
      %v1567 = vsel %vm530, %v1551, %v1553
      %v1568 = vsel %vm530, %v1553, %v1555
      %v1569 = vsel %vm530, %v1555, %v1557
      %v1570 = vsel %vm530, %v1557, %v1559
      %v1571 = vsel %vm530, %v1559, %v1561
      %v1572 = vsel %vm530, %v1561, %v1563
      %v1573 = vsel %vm530, %v1563, %v1565
      %v1583 = vadd.f32 %v1513, %v1549
      %v1584 = vadd.f32 %v1514, %v1566
      %v1585 = vadd.f32 %v1515, %v1567
      %v1586 = vadd.f32 %v1516, %v1568
      %v1587 = vadd.f32 %v1517, %v1569
      %v1588 = vadd.f32 %v1518, %v1570
      %v1589 = vadd.f32 %v1519, %v1571
      %v1590 = vadd.f32 %v1520, %v1572
      %v1591 = vadd.f32 %v1521, %v1573
      %s1592 = scalar_lea.vmem %s3, 15
      %v1593 = vld [vmem:[%s1592] sm:$0x1]
      %1595 = vset.pattern.permute.xlu0 0
      %1596 = vperm.xlu0 %1595, %v1593
      %v1597 = vpop.permute.xlu0 %1596
      %v1599 = vperm.slane %v1597, 0
      %v1600 = vmul.f32 %v1599, %v470
      %v1601 = vmul.f32 %v1599, %v454
      %v1602 = vmul.f32 %v1599, %v455
      %v1603 = vmul.f32 %v1599, %v456
      %v1604 = vmul.f32 %v1599, %v457
      %v1605 = vmul.f32 %v1599, %v458
      %v1606 = vmul.f32 %v1599, %v459
      %v1607 = vmul.f32 %v1599, %v460
      %v1608 = vmul.f32 %v1599, %v471
      %1618 = vrot.lane.b32.xlu0 %v1600, 33
      %v1619 = vpop.permute.xlu0 %1618
      %1620 = vrot.lane.b32.xlu0 %v1601, 33
      %v1621 = vpop.permute.xlu0 %1620
      %1622 = vrot.lane.b32.xlu0 %v1602, 33
      %v1623 = vpop.permute.xlu0 %1622
      %1624 = vrot.lane.b32.xlu0 %v1603, 33
      %v1625 = vpop.permute.xlu0 %1624
      %1626 = vrot.lane.b32.xlu0 %v1604, 33
      %v1627 = vpop.permute.xlu0 %1626
      %1628 = vrot.lane.b32.xlu0 %v1605, 33
      %v1629 = vpop.permute.xlu0 %1628
      %1630 = vrot.lane.b32.xlu0 %v1606, 33
      %v1631 = vpop.permute.xlu0 %1630
      %1632 = vrot.lane.b32.xlu0 %v1607, 33
      %v1633 = vpop.permute.xlu0 %1632
      %1634 = vrot.lane.b32.xlu0 %v1608, 33
      %v1635 = vpop.permute.xlu0 %1634
      %v1636 = vsel %vm453, %v1619, %v1621
      %v1637 = vsel %vm453, %v1621, %v1623
      %v1638 = vsel %vm453, %v1623, %v1625
      %v1639 = vsel %vm453, %v1625, %v1627
      %v1640 = vsel %vm453, %v1627, %v1629
      %v1641 = vsel %vm453, %v1629, %v1631
      %v1642 = vsel %vm453, %v1631, %v1633
      %v1643 = vsel %vm453, %v1633, %v1635
      %v1653 = vadd.f32 %v1583, %v1619
      %v1654 = vadd.f32 %v1584, %v1636
      %v1655 = vadd.f32 %v1585, %v1637
      %v1656 = vadd.f32 %v1586, %v1638
      %v1657 = vadd.f32 %v1587, %v1639
      %v1658 = vadd.f32 %v1588, %v1640
      %v1659 = vadd.f32 %v1589, %v1641
      %v1660 = vadd.f32 %v1590, %v1642
      %v1661 = vadd.f32 %v1591, %v1643
      %1663 = vset.pattern.permute.xlu0 0
      %1664 = vperm.xlu0 %1663, %v476
      %v1665 = vpop.permute.xlu0 %1664
      %v1667 = vperm.slane %v1665, 0
      %v1668 = vadd.f32 %v769, %v1667
      %v1669 = vadd.f32 %v770, %v1667
      %v1670 = vadd.f32 %v771, %v1667
      %v1671 = vadd.f32 %v772, %v1667
      %v1672 = vadd.f32 %v773, %v1667
      %v1673 = vadd.f32 %v774, %v1667
      %v1674 = vadd.f32 %v775, %v1667
      %v1675 = vadd.f32 %v776, %v1667
      %v1676 = vadd.f32 %v777, %v1667
      %v1686 = vrot.slane %v1669, 7
      %v1687 = vrot.slane %v1670, 6
      %v1688 = vrot.slane %v1671, 5
      %v1689 = vrot.slane %v1672, 4
      %v1690 = vrot.slane %v1673, 3
      %v1691 = vrot.slane %v1674, 2
      %v1692 = vrot.slane %v1675, 1
      %vm1693 = vcmask 1040384
      %v1694 = vsel %vm1693, %v1668, %v1686
      %vm1695 = vcmask 1042434
      %v1696 = vsel %vm1695, %v1687, %v1688
      %vm1697 = vcmask 1041408
      %v1698 = vsel %vm1697, %v1694, %v1696
      %vm1699 = vcmask 1044484
      %v1700 = vsel %vm1699, %v1689, %v1690
      %vm1701 = vcmask 1046534
      %v1702 = vsel %vm1701, %v1691, %v1692
      %vm1703 = vcmask 1045508
      %v1704 = vsel %vm1703, %v1700, %v1702
      %vm1705 = vcmask 1043456
      %v1706 = vsel %vm1705, %v1698, %v1704
      %1707 = vrot.lane.b32.xlu0 %v1706, 95
      %v1708 = vpop.permute.xlu0 %1707
      %1709 = vrot.lane.b32.xlu0 %v1676, 95
      %v1710 = vpop.permute.xlu0 %1709
      %v1711 = vrot.slane %v1708, 1
      %v1712 = vrot.slane %v1710, 1
      %vm1713 = vcmask 1046528
      %v1714 = vsel %vm1713, %v1711, %v1712
      %vm1715 = vcmask 777216
      %v1716 = vsel %vm1715, %v1708, %v1714
      %1718 = vst [vmem:[%s255] ss:$4 sm:$0xff] %v1716
      %v1719 = vadd.f32 %v1097, %v1667
      %v1720 = vadd.f32 %v1098, %v1667
      %v1721 = vadd.f32 %v1099, %v1667
      %v1722 = vadd.f32 %v1100, %v1667
      %v1723 = vadd.f32 %v1101, %v1667
      %v1724 = vadd.f32 %v1102, %v1667
      %v1725 = vadd.f32 %v1103, %v1667
      %v1726 = vadd.f32 %v1104, %v1667
      %v1727 = vadd.f32 %v1105, %v1667
      %v1737 = vrot.slane %v1720, 7
      %v1738 = vrot.slane %v1721, 6
      %v1739 = vrot.slane %v1722, 5
      %v1740 = vrot.slane %v1723, 4
      %v1741 = vrot.slane %v1724, 3
      %v1742 = vrot.slane %v1725, 2
      %v1743 = vrot.slane %v1726, 1
      %v1744 = vsel %vm1693, %v1719, %v1737
      %v1745 = vsel %vm1695, %v1738, %v1739
      %v1746 = vsel %vm1697, %v1744, %v1745
      %v1747 = vsel %vm1699, %v1740, %v1741
      %v1748 = vsel %vm1701, %v1742, %v1743
      %v1749 = vsel %vm1703, %v1747, %v1748
      %v1750 = vsel %vm1705, %v1746, %v1749
      %1751 = vrot.lane.b32.xlu0 %v1750, 94
      %v1752 = vpop.permute.xlu0 %1751
      %1753 = vrot.lane.b32.xlu0 %v1727, 94
      %v1754 = vpop.permute.xlu0 %1753
      %v1755 = vrot.slane %v1752, 1
      %v1756 = vrot.slane %v1754, 1
      %v1757 = vsel %vm1713, %v1755, %v1756
      %vm1758 = vcmask 769024
      %v1759 = vsel %vm1758, %v1752, %v1757
      %s1761 = scalar_lea.vmem %s255, 1
      %1762 = vst [vmem:[%s1761] ss:$4 sm:$0xff] %v1759
      %v1763 = vadd.f32 %v1375, %v1667
      %v1764 = vadd.f32 %v1376, %v1667
      %v1765 = vadd.f32 %v1377, %v1667
      %v1766 = vadd.f32 %v1378, %v1667
      %v1767 = vadd.f32 %v1379, %v1667
      %v1768 = vadd.f32 %v1380, %v1667
      %v1769 = vadd.f32 %v1381, %v1667
      %v1770 = vadd.f32 %v1382, %v1667
      %v1771 = vadd.f32 %v1383, %v1667
      %v1781 = vrot.slane %v1764, 7
      %v1782 = vrot.slane %v1765, 6
      %v1783 = vrot.slane %v1766, 5
      %v1784 = vrot.slane %v1767, 4
      %v1785 = vrot.slane %v1768, 3
      %v1786 = vrot.slane %v1769, 2
      %v1787 = vrot.slane %v1770, 1
      %v1788 = vsel %vm1693, %v1763, %v1781
      %v1789 = vsel %vm1695, %v1782, %v1783
      %v1790 = vsel %vm1697, %v1788, %v1789
      %v1791 = vsel %vm1699, %v1784, %v1785
      %v1792 = vsel %vm1701, %v1786, %v1787
      %v1793 = vsel %vm1703, %v1791, %v1792
      %v1794 = vsel %vm1705, %v1790, %v1793
      %1795 = vrot.lane.b32.xlu0 %v1794, 63
      %v1796 = vpop.permute.xlu0 %1795
      %1797 = vrot.lane.b32.xlu0 %v1771, 63
      %v1798 = vpop.permute.xlu0 %1797
      %v1799 = vrot.slane %v1796, 1
      %v1800 = vrot.slane %v1798, 1
      %v1801 = vsel %vm1713, %v1799, %v1800
      %vm1802 = vcmask 515072
      %v1803 = vsel %vm1802, %v1796, %v1801
      %s1805 = scalar_lea.vmem %s255, 2
      %1806 = vst [vmem:[%s1805] ss:$4 sm:$0xff] %v1803
      %v1807 = vadd.f32 %v1653, %v1667
      %v1808 = vadd.f32 %v1654, %v1667
      %v1809 = vadd.f32 %v1655, %v1667
      %v1810 = vadd.f32 %v1656, %v1667
      %v1811 = vadd.f32 %v1657, %v1667
      %v1812 = vadd.f32 %v1658, %v1667
      %v1813 = vadd.f32 %v1659, %v1667
      %v1814 = vadd.f32 %v1660, %v1667
      %v1815 = vadd.f32 %v1661, %v1667
      %v1825 = vrot.slane %v1808, 7
      %v1826 = vrot.slane %v1809, 6
      %v1827 = vrot.slane %v1810, 5
      %v1828 = vrot.slane %v1811, 4
      %v1829 = vrot.slane %v1812, 3
      %v1830 = vrot.slane %v1813, 2
      %v1831 = vrot.slane %v1814, 1
      %v1832 = vsel %vm1693, %v1807, %v1825
      %v1833 = vsel %vm1695, %v1826, %v1827
      %v1834 = vsel %vm1697, %v1832, %v1833
      %v1835 = vsel %vm1699, %v1828, %v1829
      %v1836 = vsel %vm1701, %v1830, %v1831
      %v1837 = vsel %vm1703, %v1835, %v1836
      %v1838 = vsel %vm1705, %v1834, %v1837
      %1839 = vrot.lane.b32.xlu0 %v1838, 62
      %v1840 = vpop.permute.xlu0 %1839
      %1841 = vrot.lane.b32.xlu0 %v1815, 62
      %v1842 = vpop.permute.xlu0 %1841
      %v1843 = vrot.slane %v1840, 1
      %v1844 = vrot.slane %v1842, 1
      %v1845 = vsel %vm1713, %v1843, %v1844
      %vm1846 = vcmask 506880
      %v1847 = vsel %vm1846, %v1840, %v1845
      %s1849 = scalar_lea.vmem %s255, 3
      %1850 = vst [vmem:[%s1849] ss:$4 sm:$0xff] %v1847
      %p1851 = scmp.lt.s32.totalorder %s21, 1
      %s1852 = scalar_select %p1851, %s21, 1
      %s1853 = smul.addr %s1852, 8
      %s1854 = smul.addr %s1853, 4
      %s1855 = scalar_lea.vmem %s6, %s1854
      // Predicated region
      $region45: #{upconv_block_forward.4} parent=43 // pred_check
        %p1856 = pneg %p170
      $region46: #{upconv_block_forward.4} parent=43 // pred_check_branch
        %1858 = sbr.rel (%p1856) target = $region48
      $region47: #{upconv_block_forward.4} parent=43 // pred_region
        _
      $region48: #{upconv_block_forward.4} parent=43 // pred_fallthru
        _
    $region44: #{upconv_block_forward.4} parent=5 // pred_fallthru
      _
    %p1859 = scmp.le.s32.totalorder 2, %s16
    // Predicated region
    $region49: #{upconv_block_forward.4} parent=5 // pred_check
      %p1860 = pneg %p1859
    $region50: #{upconv_block_forward.4} parent=5 // pred_check_branch
      %1862 = sbr.rel (%p1860) target = $region52
    $region51: #{upconv_block_forward.4} parent=5 // pred_region
      %s1863 = ssub.s32 %s16, 2
      // Predicated region
      $region53: #{upconv_block_forward.4} parent=51 // pred_check
        %p1864 = pneg %p176
      $region54: #{upconv_block_forward.4} parent=51 // pred_check_branch
        %1866 = sbr.rel (%p1864) target = $region56
      $region55: #{upconv_block_forward.4} parent=51 // pred_region
        %p1867 = scmp.lt.s32.totalorder %s22, 1
        %s1868 = scalar_select %p1867, %s22, 1
        %s1869 = smul.addr %s1868, 8
        %s1870 = smul.addr %s1869, 4
        %s1871 = scalar_lea.vmem %s6, %s1870
      $region56: #{upconv_block_forward.4} parent=51 // pred_fallthru
        _
    $region52: #{upconv_block_forward.4} parent=5 // pred_fallthru
      _
  $region6: #{upconv_block_forward.4} parent=0 // loop_footer
    %s20 = sadd.s32 1, %s16
  $region7: #{upconv_block_forward.4} parent=0 // loop_footer_branch
    %15 = sbr.rel target = $region3
  $region8: #{upconv_block_forward.4} parent=0 // loop_exit
    _

// kernel: upconv_block_forward.5
$region0: #{upconv_block_forward.5}
  #allocation0 [shape = 'u32[]', space=smem, size = 0x4, offset = 0x4, fixed_abs, tag = 'smem constant byte address 0x4 - core index']
  #allocation1 [shape = 'u32[72,128]{1,0:T(1,128)}', space=vmem, size = 0x9000, scoped, tag = 'internal scratch']
  %s0 = inlined_call_operand.vmem [shape: f32[2,64,64], index: 0, kind: input, shape index: {}]
  %s1 = inlined_call_operand.vmem [shape: f32[70,64], index: 1, kind: input, shape index: {}]
  %s2 = inlined_call_operand.vmem [shape: f32[64,66], index: 2, kind: input, shape index: {}]
  %s3 = inlined_call_operand.vmem [shape: f32[2,70,66], index: 3, kind: output, shape index: {}]
  %s4 = sld [smem:[#allocation0]]
  $region45: #{upconv_block_forward.5} parent=0
    _
  %s6 = ssub.s32 1, %s4
  %s7 = scalar_select 0, %s6, %s4
  loop: start=0, step=1, limit=4
  $region2: #{upconv_block_forward.5} parent=0 // loop_pre_header
    _
  $region3: #{upconv_block_forward.5} parent=0 // loop_header
    %s9 = sphi 0, %s13
    %p10 = scmp.ge.s32.totalorder %s9, 4
    %s19 = sphi 0, %s21
    %s22 = sphi 0, %s19
    %s23 = sphi 0, %s22
    %s39 = sphi 0, %s23
    %s43 = sphi 0, %s43
    %s45 = sphi 0, %s43
    %s46 = sphi 0, %s45
    %s60 = sphi 0, %s46
    %s64 = sphi 0, %s64
    %s66 = sphi 0, %s64
    %s67 = sphi 0, %s66
    %s81 = sphi 0, %s67
    %s87 = sphi 0, %s89
    %s90 = sphi 0, %s87
    %s91 = sphi 0, %s90
    %s107 = sphi 0, %s91
  $region4: #{upconv_block_forward.5} parent=0 // loop_header_branch
    %12 = sbr.rel (%p10) target = $region8
  $region5: #{upconv_block_forward.5} parent=0 // loop_body
    %s14 = ssub.s32 %s9, 1
    %s15 = ssub.s32 %s9, 2
    %s16 = sadd.s32 %s9, 1
    %s17 = ssub.s32 %s9, %s16
    %p18 = scmp.eq.s32.totalorder %s17, 0
    %s20 = sadd.s32 %s19, 1
    %s21 = scalar_select %p18, %s19, %s20
    %p24 = pneg %p18
    %p25 = scmp.eq.s32.totalorder %s9, 1
    %p26 = por %p24, %p25
    %p27 = scmp.ne.s32.totalorder %s19, %s22
    %p28 = scmp.eq.s32.totalorder %s9, 0
    %p29 = por %p27, %p28
    %p30 = scmp.ne.s32.totalorder %s19, %s22
    %p31 = scmp.eq.s32.totalorder %s14, 1
    %p32 = por %p30, %p31
    %p33 = scmp.ne.s32.totalorder %s22, %s23
    %p34 = scmp.eq.s32.totalorder %s14, 0
    %p35 = por %p33, %p34
    %p36 = scmp.ne.s32.totalorder %s22, %s23
    %p37 = scmp.eq.s32.totalorder %s15, 1
    %p38 = por %p36, %p37
    %p40 = scmp.ne.s32.totalorder %s23, %s39
    %p41 = scmp.eq.s32.totalorder %s15, 0
    %p42 = por %p40, %p41
    %s44 = sadd.s32 %s43, 1
    %p47 = scmp.eq.s32.totalorder %s9, 1
    %p48 = scmp.ne.s32.totalorder %s43, %s45
    %p49 = scmp.eq.s32.totalorder %s9, 0
    %p50 = por %p48, %p49
    %p51 = scmp.ne.s32.totalorder %s43, %s45
    %p52 = scmp.eq.s32.totalorder %s14, 1
    %p53 = por %p51, %p52
    %p54 = scmp.ne.s32.totalorder %s45, %s46
    %p55 = scmp.eq.s32.totalorder %s14, 0
    %p56 = por %p54, %p55
    %p57 = scmp.ne.s32.totalorder %s45, %s46
    %p58 = scmp.eq.s32.totalorder %s15, 1
    %p59 = por %p57, %p58
    %p61 = scmp.ne.s32.totalorder %s46, %s60
    %p62 = scmp.eq.s32.totalorder %s15, 0
    %p63 = por %p61, %p62
    %s65 = sadd.s32 %s64, 1
    %p68 = scmp.eq.s32.totalorder %s9, 1
    %p69 = scmp.ne.s32.totalorder %s64, %s66
    %p70 = scmp.eq.s32.totalorder %s9, 0
    %p71 = por %p69, %p70
    %p72 = scmp.ne.s32.totalorder %s64, %s66
    %p73 = scmp.eq.s32.totalorder %s14, 1
    %p74 = por %p72, %p73
    %p75 = scmp.ne.s32.totalorder %s66, %s67
    %p76 = scmp.eq.s32.totalorder %s14, 0
    %p77 = por %p75, %p76
    %p78 = scmp.ne.s32.totalorder %s66, %s67
    %p79 = scmp.eq.s32.totalorder %s15, 1
    %p80 = por %p78, %p79
    %p82 = scmp.ne.s32.totalorder %s67, %s81
    %p83 = scmp.eq.s32.totalorder %s15, 0
    %p84 = por %p82, %p83
    %s85 = ssub.s32 %s9, %s16
    %p86 = scmp.eq.s32.totalorder %s85, 0
    %s88 = sadd.s32 %s87, 1
    %s89 = scalar_select %p86, %s87, %s88
    %p92 = pneg %p86
    %p93 = scmp.eq.s32.totalorder %s9, 1
    %p94 = por %p92, %p93
    %p95 = scmp.ne.s32.totalorder %s87, %s90
    %p96 = scmp.eq.s32.totalorder %s9, 0
    %p97 = por %p95, %p96
    %p98 = scmp.ne.s32.totalorder %s87, %s90
    %p99 = scmp.eq.s32.totalorder %s14, 1
    %p100 = por %p98, %p99
    %p101 = scmp.ne.s32.totalorder %s90, %s91
    %p102 = scmp.eq.s32.totalorder %s14, 0
    %p103 = por %p101, %p102
    %p104 = scmp.ne.s32.totalorder %s90, %s91
    %p105 = scmp.eq.s32.totalorder %s15, 1
    %p106 = por %p104, %p105
    %p108 = scmp.ne.s32.totalorder %s91, %s107
    %p109 = scmp.eq.s32.totalorder %s15, 0
    %p110 = por %p108, %p109
    %p111 = scmp.le.s32.totalorder 1, %s9
    %p112 = scmp.lt.s32.totalorder %s9, 3
    %p113 = pnand %p111, %p112
    %p114 = pneg %p113
    // Predicated region
    $region9: #{upconv_block_forward.5} parent=5 // pred_check
      _
    $region10: #{upconv_block_forward.5} parent=5 // pred_check_branch
      %116 = sbr.rel (%p113) target = $region12
    $region11: #{upconv_block_forward.5} parent=5 // pred_region
      %s117 = ssub.s32 %s9, 1
      // Predicated region
      $region13: #{upconv_block_forward.5} parent=11 // pred_check
        %p118 = pneg %p56
      $region14: #{upconv_block_forward.5} parent=11 // pred_check_branch
        %120 = sbr.rel (%p118) target = $region16
      $region15: #{upconv_block_forward.5} parent=11 // pred_region
        _
      $region16: #{upconv_block_forward.5} parent=11 // pred_fallthru
        _
      // Predicated region
      $region17: #{upconv_block_forward.5} parent=11 // pred_check
        %p121 = pneg %p77
      $region18: #{upconv_block_forward.5} parent=11 // pred_check_branch
        %123 = sbr.rel (%p121) target = $region20
      $region19: #{upconv_block_forward.5} parent=11 // pred_region
        _
      $region20: #{upconv_block_forward.5} parent=11 // pred_fallthru
        _
    $region12: #{upconv_block_forward.5} parent=5 // pred_fallthru
      _
    %p124 = scmp.lt.s32.totalorder %s9, 2
    // Predicated region
    $region21: #{upconv_block_forward.5} parent=5 // pred_check
      %p125 = pneg %p124
    $region22: #{upconv_block_forward.5} parent=5 // pred_check_branch
      %127 = sbr.rel (%p125) target = $region24
    $region23: #{upconv_block_forward.5} parent=5 // pred_region
      // Predicated region
      $region25: #{upconv_block_forward.5} parent=23 // pred_check
        %p128 = pneg %p29
      $region26: #{upconv_block_forward.5} parent=23 // pred_check_branch
        %130 = sbr.rel (%p128) target = $region28
      $region27: #{upconv_block_forward.5} parent=23 // pred_region
        %p131 = scmp.lt.s32.totalorder %s9, 1
        %s132 = scalar_select %p131, %s9, 1
        %s133 = smul.addr %s132, 8
        %s134 = smul.addr %s133, 8
        %s135 = scalar_lea.vmem %s0, %s134
      $region28: #{upconv_block_forward.5} parent=23 // pred_fallthru
        _
    $region24: #{upconv_block_forward.5} parent=5 // pred_fallthru
      _
    %p136 = scmp.le.s32.totalorder 1, %s9
    %p137 = scmp.lt.s32.totalorder %s9, 3
    %p138 = pnand %p136, %p137
    %p139 = pneg %p138
    // Predicated region
    $region29: #{upconv_block_forward.5} parent=5 // pred_check
      _
    $region30: #{upconv_block_forward.5} parent=5 // pred_check_branch
      %141 = sbr.rel (%p138) target = $region32
    $region31: #{upconv_block_forward.5} parent=5 // pred_region
      %s142 = ssub.s32 %s9, 1
      %p143 = scmp.lt.s32.totalorder %s14, 1
      %s144 = scalar_select %p143, %s14, 1
      %s145 = smul.addr %s144, 8
      %s146 = smul.addr %s145, 8
      %s147 = scalar_lea.vmem %s0, %s146
      %p148 = pneg %p35
      %p149 = pneg %p32
      %p150 = pneg %p56
      %p151 = pneg %p53
      %p152 = pneg %p77
      %p153 = pneg %p74
      %p154 = pneg %p103
      %p155 = pneg %p100
      %p156 = scmp.lt.s32.totalorder %s14, 1
      %s157 = scalar_select %p156, %s14, 1
      %s158 = smul.addr %s157, 9
      %s159 = smul.addr %s158, 8
      %s160 = scalar_lea.vmem %s3, %s159
      %p161 = scmp.lt.s32.totalorder %s14, 1
      %s162 = scalar_select %p161, %s14, 1
      %s163 = smul.addr %s162, 8
      %s164 = smul.addr %s163, 8
      %s165 = scalar_lea.vmem %s0, %s164
      %p166 = scmp.lt.s32.totalorder %s14, 1
      %s167 = scalar_select %p166, %s14, 1
      %s168 = smul.addr %s167, 9
      %s169 = smul.addr %s168, 8
      %s170 = scalar_lea.vmem %s3, %s169
      %v171 = vld [vmem:[%s1] sm:$0xff]
      %v172 = vld [vmem:[%s1 + $0x8] sm:$0xff]
      %v173 = vld [vmem:[%s1 + $0x10] sm:$0xff]
      %v174 = vld [vmem:[%s1 + $0x18] sm:$0xff]
      %v175 = vld [vmem:[%s1 + $0x20] sm:$0xff]
      %v176 = vld [vmem:[%s1 + $0x28] sm:$0xff]
      %v177 = vld [vmem:[%s1 + $0x30] sm:$0xff]
      %v178 = vld [vmem:[%s1 + $0x38] sm:$0xff]
      %v179 = vld [vmem:[%s1 + $0x40] sm:$0x3f]
      %v180 = vld [vmem:[%s165] sm:$0xff]
      %v181 = vld [vmem:[%s165 + $0x8] sm:$0xff]
      %v182 = vld [vmem:[%s165 + $0x10] sm:$0xff]
      %v183 = vld [vmem:[%s165 + $0x18] sm:$0xff]
      %v184 = vld [vmem:[%s165 + $0x20] sm:$0xff]
      %v185 = vld [vmem:[%s165 + $0x28] sm:$0xff]
      %v186 = vld [vmem:[%s165 + $0x30] sm:$0xff]
      %v187 = vld [vmem:[%s165 + $0x38] sm:$0xff]
      %vm188 = vcmask 523264
      %v190 = vsel %vm188, %v171, 0
      %v193 = vsel %vm188, %v172, 0
      %v196 = vsel %vm188, %v173, 0
      %v199 = vsel %vm188, %v174, 0
      %v202 = vsel %vm188, %v175, 0
      %v205 = vsel %vm188, %v176, 0
      %v208 = vsel %vm188, %v177, 0
      %v211 = vsel %vm188, %v178, 0
      %v214 = vsel %vm188, %v179, 0
      %216 = vmatpush.msra.mxu0 0.0
      %217 = vmatpush.msra.mxu0 0.0
      %218 = vmatpush.msra.mxu0 0.0
      %219 = vmatpush.msra.mxu0 0.0
      %220 = vmatpush.msra.mxu0 0.0
      %221 = vmatpush.msra.mxu0 0.0
      %222 = vmatpush.msra.mxu0 0.0
      %223 = vmatpush.msra.mxu0 0.0
      %224 = vmatpush.msra.mxu0 %v187
      %225 = vmatpush.msra.mxu0 %v186
      %226 = vmatpush.msra.mxu0 %v185
      %227 = vmatpush.msra.mxu0 %v184
      %228 = vmatpush.msra.mxu0 %v183
      %229 = vmatpush.msra.mxu0 %v182
      %230 = vmatpush.msra.mxu0 %v181
      %231 = vmatpush.msra.mxu0 %v180
      %232 = vmatmul.f32.gmra.mxu0 %v190
      %v233 = vpop.f32.mrf.mxu0
      %v234 = vadd.f32 0.0, %v233
      %235 = vmatmul.f32.gmra.mxu0 %v193
      %v236 = vpop.f32.mrf.mxu0
      %v237 = vadd.f32 0.0, %v236
      %238 = vmatmul.f32.gmra.mxu0 %v196
      %v239 = vpop.f32.mrf.mxu0
      %v240 = vadd.f32 0.0, %v239
      %241 = vmatmul.f32.gmra.mxu0 %v199
      %v242 = vpop.f32.mrf.mxu0
      %v243 = vadd.f32 0.0, %v242
      %244 = vmatmul.f32.gmra.mxu0 %v202
      %v245 = vpop.f32.mrf.mxu0
      %v246 = vadd.f32 0.0, %v245
      %247 = vmatmul.f32.gmra.mxu0 %v205
      %v248 = vpop.f32.mrf.mxu0
      %v249 = vadd.f32 0.0, %v248
      %250 = vmatmul.f32.gmra.mxu0 %v208
      %v251 = vpop.f32.mrf.mxu0
      %v252 = vadd.f32 0.0, %v251
      %253 = vmatmul.f32.gmra.mxu0 %v211
      %v254 = vpop.f32.mrf.mxu0
      %v255 = vadd.f32 0.0, %v254
      %256 = vmatmul.f32.gmra.mxu0 %v214
      %v257 = vpop.f32.mrf.mxu0
      %v258 = vadd.f32 0.0, %v257
      %259 = vdwg.mxu0
      %v260 = vld [vmem:[%s2] sm:$0xff]
      %v261 = vld [vmem:[%s2 + $0x8] sm:$0xff]
      %v262 = vld [vmem:[%s2 + $0x10] sm:$0xff]
      %v263 = vld [vmem:[%s2 + $0x18] sm:$0xff]
      %v264 = vld [vmem:[%s2 + $0x20] sm:$0xff]
      %v265 = vld [vmem:[%s2 + $0x28] sm:$0xff]
      %v266 = vld [vmem:[%s2 + $0x30] sm:$0xff]
      %v267 = vld [vmem:[%s2 + $0x38] sm:$0xff]
      %v269 = vsel %vm188, %v234, 0
      %v272 = vsel %vm188, %v237, 0
      %v275 = vsel %vm188, %v240, 0
      %v278 = vsel %vm188, %v243, 0
      %v281 = vsel %vm188, %v246, 0
      %v284 = vsel %vm188, %v249, 0
      %v287 = vsel %vm188, %v252, 0
      %v290 = vsel %vm188, %v255, 0
      %v293 = vsel %vm188, %v258, 0
      %295 = vmatpush.msra.mxu0 0.0
      %296 = vmatpush.msra.mxu0 0.0
      %297 = vmatpush.msra.mxu0 0.0
      %298 = vmatpush.msra.mxu0 0.0
      %299 = vmatpush.msra.mxu0 0.0
      %300 = vmatpush.msra.mxu0 0.0
      %301 = vmatpush.msra.mxu0 0.0
      %302 = vmatpush.msra.mxu0 0.0
      %303 = vmatpush.msra.mxu0 %v267
      %304 = vmatpush.msra.mxu0 %v266
      %305 = vmatpush.msra.mxu0 %v265
      %306 = vmatpush.msra.mxu0 %v264
      %307 = vmatpush.msra.mxu0 %v263
      %308 = vmatpush.msra.mxu0 %v262
      %309 = vmatpush.msra.mxu0 %v261
      %310 = vmatpush.msra.mxu0 %v260
      %311 = vmatmul.f32.gmra.mxu0 %v269
      %v312 = vpop.f32.mrf.mxu0
      %v313 = vadd.f32 0.0, %v312
      %314 = vmatmul.f32.gmra.mxu0 %v272
      %v315 = vpop.f32.mrf.mxu0
      %v316 = vadd.f32 0.0, %v315
      %317 = vmatmul.f32.gmra.mxu0 %v275
      %v318 = vpop.f32.mrf.mxu0
      %v319 = vadd.f32 0.0, %v318
      %320 = vmatmul.f32.gmra.mxu0 %v278
      %v321 = vpop.f32.mrf.mxu0
      %v322 = vadd.f32 0.0, %v321
      %323 = vmatmul.f32.gmra.mxu0 %v281
      %v324 = vpop.f32.mrf.mxu0
      %v325 = vadd.f32 0.0, %v324
      %326 = vmatmul.f32.gmra.mxu0 %v284
      %v327 = vpop.f32.mrf.mxu0
      %v328 = vadd.f32 0.0, %v327
      %329 = vmatmul.f32.gmra.mxu0 %v287
      %v330 = vpop.f32.mrf.mxu0
      %v331 = vadd.f32 0.0, %v330
      %332 = vmatmul.f32.gmra.mxu0 %v290
      %v333 = vpop.f32.mrf.mxu0
      %v334 = vadd.f32 0.0, %v333
      %335 = vmatmul.f32.gmra.mxu0 %v293
      %v336 = vpop.f32.mrf.mxu0
      %v337 = vadd.f32 0.0, %v336
      %338 = vdwg.mxu0
      %vm339 = vcmask 539648
      %340 = vst.msk [vmem:[%s170] sm:$0xff] %vm339, %v313
      %341 = vst.msk [vmem:[%s170 + $0x8] sm:$0xff] %vm339, %v316
      %342 = vst.msk [vmem:[%s170 + $0x10] sm:$0xff] %vm339, %v319
      %343 = vst.msk [vmem:[%s170 + $0x18] sm:$0xff] %vm339, %v322
      %344 = vst.msk [vmem:[%s170 + $0x20] sm:$0xff] %vm339, %v325
      %345 = vst.msk [vmem:[%s170 + $0x28] sm:$0xff] %vm339, %v328
      %346 = vst.msk [vmem:[%s170 + $0x30] sm:$0xff] %vm339, %v331
      %347 = vst.msk [vmem:[%s170 + $0x38] sm:$0xff] %vm339, %v334
      %vm348 = vcmask 537600
      %349 = vst.msk [vmem:[%s170 + $0x40] sm:$0x3f] %vm348, %v337
      %p350 = scmp.lt.s32.totalorder %s14, 1
      %s351 = scalar_select %p350, %s14, 1
      %s352 = smul.addr %s351, 9
      %s353 = smul.addr %s352, 8
      %s354 = scalar_lea.vmem %s3, %s353
      // Predicated region
      $region33: #{upconv_block_forward.5} parent=31 // pred_check
        %p355 = pneg %p100
      $region34: #{upconv_block_forward.5} parent=31 // pred_check_branch
        %357 = sbr.rel (%p355) target = $region36
      $region35: #{upconv_block_forward.5} parent=31 // pred_region
        _
      $region36: #{upconv_block_forward.5} parent=31 // pred_fallthru
        _
    $region32: #{upconv_block_forward.5} parent=5 // pred_fallthru
      _
    %p358 = scmp.le.s32.totalorder 2, %s9
    // Predicated region
    $region37: #{upconv_block_forward.5} parent=5 // pred_check
      %p359 = pneg %p358
    $region38: #{upconv_block_forward.5} parent=5 // pred_check_branch
      %361 = sbr.rel (%p359) target = $region40
    $region39: #{upconv_block_forward.5} parent=5 // pred_region
      %s362 = ssub.s32 %s9, 2
      // Predicated region
      $region41: #{upconv_block_forward.5} parent=39 // pred_check
        %p363 = pneg %p106
      $region42: #{upconv_block_forward.5} parent=39 // pred_check_branch
        %365 = sbr.rel (%p363) target = $region44
      $region43: #{upconv_block_forward.5} parent=39 // pred_region
        %p366 = scmp.lt.s32.totalorder %s15, 1
        %s367 = scalar_select %p366, %s15, 1
        %s368 = smul.addr %s367, 9
        %s369 = smul.addr %s368, 8
        %s370 = scalar_lea.vmem %s3, %s369
      $region44: #{upconv_block_forward.5} parent=39 // pred_fallthru
        _
    $region40: #{upconv_block_forward.5} parent=5 // pred_fallthru
      _
  $region6: #{upconv_block_forward.5} parent=0 // loop_footer
    %s13 = sadd.s32 1, %s9
  $region7: #{upconv_block_forward.5} parent=0 // loop_footer_branch
    %8 = sbr.rel target = $region3
  $region8: #{upconv_block_forward.5} parent=0 // loop_exit
    _

</llo_original>
